<compile_context>
chip_gen: v7x
topology: tpu7x:2x2x1
jax: 0.10.0
libtpu: 0.0.40
codegen_flags: <defaults>
</compile_context>

<pallas_src>
import functools

import jax
import jax.numpy as jnp
from jax.experimental import pallas as pl
from jax.experimental.pallas import tpu as pltpu

# Layer sizes exactly as in the PyTorch module.
LAYER_DIMS = [784, 512, 256, 128, 32, 128, 256, 512, 784]
NUM_LAYERS = len(LAYER_DIMS) - 1  # 8 linear layers

# Lane-padded feature dims (784 -> 896 = 7*128 on the input/output only).
PAD_DIMS = [896, 512, 256, 128, 32, 128, 256, 512, 896]


def _round_up(x, m):
    return ((x + m - 1) // m) * m


def _softplus(x):
    # torch.nn.Softplus(beta=1, threshold=20): x if x > 20 else log(1 + exp(x)).
    # For x > 20 the unselected branch is inf (never NaN), so no extra clamp.
    return jnp.where(x > 20.0, x, jnp.log1p(jnp.exp(x)))


def _make_kernel(bf16_activations):
    def autoencoder_kernel(x_ref, *refs):
        """Fused forward pass over one batch tile.

        refs = (w1, b1, w2, b2, ..., w8, b8, out_ref)
        Weights are bf16 (cast once in the wrapper), single-buffered and
        VMEM-resident across all grid steps; matmuls accumulate in f32.
        The whole encoder+decoder chain runs per batch tile: 8 MXU matmuls
        with VPU/EUP activations in between, no HBM round-trips for
        intermediates.
        """
        out_ref = refs[-1]
        params = refs[:-1]

        h = x_ref[...]  # bf16 [tb, 896]
        for i in range(NUM_LAYERS):
            w = params[2 * i][...]        # bf16 [in_p, out_p]
            b = params[2 * i + 1][...]    # f32  [1, out_p]
            lhs = h if h.dtype == jnp.bfloat16 else h.astype(jnp.bfloat16)
            z = jnp.dot(lhs, w, preferred_element_type=jnp.float32) + b
            if bf16_activations:
                # bf16 EUP transcendentals (roughly 2x throughput on v6e/v7x);
                # the next matmul consumes bf16 anyway.
                z = z.astype(jnp.bfloat16)
            if i < NUM_LAYERS - 1:
                h = _softplus(z)
            else:
                h = jax.nn.sigmoid(z)
        out_ref[...] = h.astype(out_ref.dtype)

    return autoencoder_kernel


def init_params(key):
    """Deterministic synthetic parameters (shapes match the PyTorch module)."""
    params = []
    for i in range(NUM_LAYERS):
        fan_in, fan_out = LAYER_DIMS[i], LAYER_DIMS[i + 1]
        key, kw, kb = jax.random.split(key, 3)
        scale = 1.0 / jnp.sqrt(jnp.float32(fan_in))
        w = jax.random.normal(kw, (fan_in, fan_out), dtype=jnp.float32) * scale
        b = jax.random.normal(kb, (1, fan_out), dtype=jnp.float32) * 0.01
        params.append((w, b))
    return params


def _prepare_padded_params(params):
    """Pad to lane-dense dims and cast weights to bf16 ONCE (outside kernel)."""
    flat = []
    for i, (w, b) in enumerate(params):
        in_p, out_p = PAD_DIMS[i], PAD_DIMS[i + 1]
        w_p = jnp.zeros((in_p, out_p), jnp.bfloat16)
        w_p = w_p.at[: w.shape[0], : w.shape[1]].set(w.astype(jnp.bfloat16))
        b_p = jnp.zeros((1, out_p), jnp.float32)
        b_p = b_p.at[:, : b.shape[1]].set(b)
        flat.extend([w_p, b_p])
    return flat


@functools.partial(
    jax.jit, static_argnames=("tb", "bf16_activations", "vmem_limit_bytes"))
def mnist_autoencoder(x, params, *, tb=512, bf16_activations=False,
                      vmem_limit_bytes=32 << 20):
    """x: [B, 784] f32 -> [B, 784] f32 reconstruction.

    v5e/v6e large-batch throughput: pass tb=1024, vmem_limit_bytes=64<<20.
    v6e/v7x: pass bf16_activations=True (EUP is the likely saturating slot).
    """
    B = x.shape[0]
    d_in, d_out = PAD_DIMS[0], PAD_DIMS[-1]

    # Batch tile: as large as practical, 8-aligned, no bigger than the batch.
    b8 = _round_up(B, 8)
    tb = max(8, min(int(tb), b8))
    # v7x megacore: guarantee >= 2 grid steps on the "parallel" batch axis
    # whenever the batch is large enough, otherwise one TensorCore idles.
    if b8 >= 16 and tb >= b8:
        tb = _round_up(b8 // 2, 8)
    b_pad = _round_up(B, tb)

    # Zero-pad batch rows + feature lanes (784 -> 896) and cast input to bf16
    # in one wrapper fusion (halves input DMA bytes; the MXU consumes bf16).
    x_p = jnp.zeros((b_pad, d_in), jnp.bfloat16)
    x_p = x_p.at[:B, : LAYER_DIMS[0]].set(x.astype(jnp.bfloat16))

    flat = _prepare_padded_params(params)

    # x / out: tiled over the batch (double-buffered by the pipeline).
    # Weights / biases: whole-array blocks, constant index_map (VMEM-resident
    # across grid steps) and single-buffered (double-buffering a never-changing
    # block is pure VMEM waste).
    in_specs = [pl.BlockSpec((tb, d_in), lambda i: (i, 0))]
    for li in range(NUM_LAYERS):
        in_p, out_p = PAD_DIMS[li], PAD_DIMS[li + 1]
        in_specs.append(pl.BlockSpec((in_p, out_p), lambda i: (0, 0),
                                     pipeline_mode=pl.Buffered(1)))
        in_specs.append(pl.BlockSpec((1, out_p), lambda i: (0, 0),
                                     pipeline_mode=pl.Buffered(1)))
    out_specs = pl.BlockSpec((tb, d_out), lambda i: (i, 0))

    hidden_sum = sum(LAYER_DIMS[1:-1])  # 1824 softplus cols per row
    cost = pl.CostEstimate(
        flops=2 * b_pad * sum(LAYER_DIMS[i] * LAYER_DIMS[i + 1]
                              for i in range(NUM_LAYERS)),
        transcendentals=b_pad * (2 * hidden_sum + LAYER_DIMS[-1]),
        bytes_accessed=(
            2 * sum(PAD_DIMS[i] * PAD_DIMS[i + 1] for i in range(NUM_LAYERS))
            + 4 * sum(PAD_DIMS[1:])
            + 2 * b_pad * d_in
            + 4 * b_pad * d_out
        ),
    )

    out = pl.pallas_call(
        _make_kernel(bf16_activations),
        out_shape=jax.ShapeDtypeStruct((b_pad, d_out), jnp.float32),
        grid=(b_pad // tb,),
        in_specs=in_specs,
        out_specs=out_specs,
        cost_estimate=cost,
        compiler_params=pltpu.CompilerParams(
            dimension_semantics=("parallel",),
            vmem_limit_bytes=vmem_limit_bytes,
        ),
    )(x_p, *flat)

    return out[:B, : LAYER_DIMS[-1]]


def reference_forward(x, params, *, bf16_activations=False):
    """Pure-JAX reference mirroring the kernel's precision (bf16 input/weights,
    bf16 matmul operands, f32 accumulation / bias; f32 or bf16 activations)."""
    h = x.astype(jnp.bfloat16)
    for i, (w, b) in enumerate(params):
        lhs = h if h.dtype == jnp.bfloat16 else h.astype(jnp.bfloat16)
        z = jnp.dot(lhs, w.astype(jnp.bfloat16),
                    preferred_element_type=jnp.float32) + b
        if bf16_activations:
            z = z.astype(jnp.bfloat16)
        if i < NUM_LAYERS - 1:
            h = _softplus(z)
        else:
            h = jax.nn.sigmoid(z)
    return h.astype(jnp.float32)


if __name__ == "__main__":
    key = jax.random.PRNGKey(0)
    key, kx = jax.random.split(key)

    B = 16  # small batch; the tb clamp yields tb=8 -> a 2-step batch grid
    x = jax.random.uniform(kx, (B, 28 * 28), dtype=jnp.float32)  # MNIST-like [0,1)

    params = init_params(key)

    # Default path: f32 activations (safe on all generations, incl. v5e).
    out = mnist_autoencoder(x, params)
    out = jax.block_until_ready(out)
    ref = reference_forward(x, params)
    assert out.shape == (B, 784)
    assert jnp.allclose(out, ref, rtol=2e-3, atol=2e-3), "mismatch (f32 act)"

    # bf16-EUP activation variant (recommended on v6e/v7x); looser tolerance
    # since bf16 transcendental implementations may differ slightly vs XLA.
    out_bf = mnist_autoencoder(x, params, bf16_activations=True)
    out_bf = jax.block_until_ready(out_bf)
    ref_bf = reference_forward(x, params, bf16_activations=True)
    assert out_bf.shape == (B, 784)
    assert jnp.all(jnp.isfinite(out_bf))
    assert jnp.allclose(out_bf, ref_bf, rtol=5e-2, atol=5e-2), "mismatch (bf16 act)"

    print("KERNEL_OK")
</pallas_src>

<mosaic_0001>
module attributes {stable_mosaic.version = 11 : i64} {
  func.func @autoencoder_kernel(%arg0: i32, %arg1: memref<8x896xbf16, #tpu.memory_space<vmem>>, %arg2: memref<896x512xbf16, #tpu.memory_space<vmem>>, %arg3: memref<1x512xf32, #tpu.memory_space<vmem>>, %arg4: memref<512x256xbf16, #tpu.memory_space<vmem>>, %arg5: memref<1x256xf32, #tpu.memory_space<vmem>>, %arg6: memref<256x128xbf16, #tpu.memory_space<vmem>>, %arg7: memref<1x128xf32, #tpu.memory_space<vmem>>, %arg8: memref<128x32xbf16, #tpu.memory_space<vmem>>, %arg9: memref<1x32xf32, #tpu.memory_space<vmem>>, %arg10: memref<32x128xbf16, #tpu.memory_space<vmem>>, %arg11: memref<1x128xf32, #tpu.memory_space<vmem>>, %arg12: memref<128x256xbf16, #tpu.memory_space<vmem>>, %arg13: memref<1x256xf32, #tpu.memory_space<vmem>>, %arg14: memref<256x512xbf16, #tpu.memory_space<vmem>>, %arg15: memref<1x512xf32, #tpu.memory_space<vmem>>, %arg16: memref<512x896xbf16, #tpu.memory_space<vmem>>, %arg17: memref<1x896xf32, #tpu.memory_space<vmem>>, %arg18: memref<8x896xf32, #tpu.memory_space<vmem>>) attributes {dimension_semantics = [#tpu.dimension_semantics<parallel>], iteration_bounds = array<i64: 2>, scalar_prefetch = 0 : i64, scratch_operands = 0 : i64, tpu.core_type = #tpu.core_type<tc>, window_params = [{transform_indices = @transform_0, window_bounds = array<i64: 8, 896>}, {pipeline_mode = #tpu.pipeline_mode<synchronous>, transform_indices = @transform_1, window_bounds = array<i64: 896, 512>}, {pipeline_mode = #tpu.pipeline_mode<synchronous>, transform_indices = @transform_2, window_bounds = array<i64: 1, 512>}, {pipeline_mode = #tpu.pipeline_mode<synchronous>, transform_indices = @transform_3, window_bounds = array<i64: 512, 256>}, {pipeline_mode = #tpu.pipeline_mode<synchronous>, transform_indices = @transform_4, window_bounds = array<i64: 1, 256>}, {pipeline_mode = #tpu.pipeline_mode<synchronous>, transform_indices = @transform_5, window_bounds = array<i64: 256, 128>}, {pipeline_mode = #tpu.pipeline_mode<synchronous>, transform_indices = @transform_6, window_bounds = array<i64: 1, 128>}, {pipeline_mode = #tpu.pipeline_mode<synchronous>, transform_indices = @transform_7, window_bounds = array<i64: 128, 32>}, {pipeline_mode = #tpu.pipeline_mode<synchronous>, transform_indices = @transform_8, window_bounds = array<i64: 1, 32>}, {pipeline_mode = #tpu.pipeline_mode<synchronous>, transform_indices = @transform_9, window_bounds = array<i64: 32, 128>}, {pipeline_mode = #tpu.pipeline_mode<synchronous>, transform_indices = @transform_10, window_bounds = array<i64: 1, 128>}, {pipeline_mode = #tpu.pipeline_mode<synchronous>, transform_indices = @transform_11, window_bounds = array<i64: 128, 256>}, {pipeline_mode = #tpu.pipeline_mode<synchronous>, transform_indices = @transform_12, window_bounds = array<i64: 1, 256>}, {pipeline_mode = #tpu.pipeline_mode<synchronous>, transform_indices = @transform_13, window_bounds = array<i64: 256, 512>}, {pipeline_mode = #tpu.pipeline_mode<synchronous>, transform_indices = @transform_14, window_bounds = array<i64: 1, 512>}, {pipeline_mode = #tpu.pipeline_mode<synchronous>, transform_indices = @transform_15, window_bounds = array<i64: 512, 896>}, {pipeline_mode = #tpu.pipeline_mode<synchronous>, transform_indices = @transform_16, window_bounds = array<i64: 1, 896>}, {transform_indices = @transform_17, window_bounds = array<i64: 8, 896>}]} {
    %c0 = arith.constant 0 : index
    %c0_0 = arith.constant 0 : index
    %0 = vector.load %arg1[%c0, %c0_0] : memref<8x896xbf16, #tpu.memory_space<vmem>>, vector<8x896xbf16>
    %c0_1 = arith.constant 0 : index
    %c0_2 = arith.constant 0 : index
    %1 = vector.load %arg2[%c0_1, %c0_2] : memref<896x512xbf16, #tpu.memory_space<vmem>>, vector<896x512xbf16>
    %c0_3 = arith.constant 0 : index
    %c0_4 = arith.constant 0 : index
    %2 = vector.load %arg3[%c0_3, %c0_4] : memref<1x512xf32, #tpu.memory_space<vmem>>, vector<1x512xf32>
    %cst = arith.constant dense<0.000000e+00> : vector<8x512xf32>
    %3 = tpu.matmul %0, %1, %cst {dimension_numbers = #tpu.dot_dimension_numbers<[1], [0], [0], [1], [0, 0, 1, 1], [], []>} : vector<8x896xbf16>, vector<896x512xbf16>, vector<8x512xf32> -> vector<8x512xf32>
    %4 = vector.broadcast %2 : vector<1x512xf32> to vector<8x512xf32>
    %5 = arith.addf %3, %4 : vector<8x512xf32>
    %cst_5 = arith.constant 2.000000e+01 : f32
    %6 = vector.broadcast %cst_5 : f32 to vector<8x512xf32>
    %7 = arith.cmpf ogt, %5, %6 : vector<8x512xf32>
    %8 = math.exp %5 : vector<8x512xf32>
    %9 = math.log1p %8 : vector<8x512xf32>
    %10 = arith.select %7, %5, %9 : vector<8x512xi1>, vector<8x512xf32>
    %c0_6 = arith.constant 0 : index
    %c0_7 = arith.constant 0 : index
    %11 = vector.load %arg4[%c0_6, %c0_7] : memref<512x256xbf16, #tpu.memory_space<vmem>>, vector<512x256xbf16>
    %c0_8 = arith.constant 0 : index
    %c0_9 = arith.constant 0 : index
    %12 = vector.load %arg5[%c0_8, %c0_9] : memref<1x256xf32, #tpu.memory_space<vmem>>, vector<1x256xf32>
    %13 = arith.truncf %10 : vector<8x512xf32> to vector<8x512xbf16>
    %cst_10 = arith.constant dense<0.000000e+00> : vector<8x256xf32>
    %14 = tpu.matmul %13, %11, %cst_10 {dimension_numbers = #tpu.dot_dimension_numbers<[1], [0], [0], [1], [0, 0, 1, 1], [], []>} : vector<8x512xbf16>, vector<512x256xbf16>, vector<8x256xf32> -> vector<8x256xf32>
    %15 = vector.broadcast %12 : vector<1x256xf32> to vector<8x256xf32>
    %16 = arith.addf %14, %15 : vector<8x256xf32>
    %cst_11 = arith.constant 2.000000e+01 : f32
    %17 = vector.broadcast %cst_11 : f32 to vector<8x256xf32>
    %18 = arith.cmpf ogt, %16, %17 : vector<8x256xf32>
    %19 = math.exp %16 : vector<8x256xf32>
    %20 = math.log1p %19 : vector<8x256xf32>
    %21 = arith.select %18, %16, %20 : vector<8x256xi1>, vector<8x256xf32>
    %c0_12 = arith.constant 0 : index
    %c0_13 = arith.constant 0 : index
    %22 = vector.load %arg6[%c0_12, %c0_13] : memref<256x128xbf16, #tpu.memory_space<vmem>>, vector<256x128xbf16>
    %c0_14 = arith.constant 0 : index
    %c0_15 = arith.constant 0 : index
    %23 = vector.load %arg7[%c0_14, %c0_15] : memref<1x128xf32, #tpu.memory_space<vmem>>, vector<1x128xf32>
    %24 = arith.truncf %21 : vector<8x256xf32> to vector<8x256xbf16>
    %cst_16 = arith.constant dense<0.000000e+00> : vector<8x128xf32>
    %25 = tpu.matmul %24, %22, %cst_16 {dimension_numbers = #tpu.dot_dimension_numbers<[1], [0], [0], [1], [0, 0, 1, 1], [], []>} : vector<8x256xbf16>, vector<256x128xbf16>, vector<8x128xf32> -> vector<8x128xf32>
    %26 = vector.broadcast %23 : vector<1x128xf32> to vector<8x128xf32>
    %27 = arith.addf %25, %26 : vector<8x128xf32>
    %cst_17 = arith.constant 2.000000e+01 : f32
    %28 = vector.broadcast %cst_17 : f32 to vector<8x128xf32>
    %29 = arith.cmpf ogt, %27, %28 : vector<8x128xf32>
    %30 = math.exp %27 : vector<8x128xf32>
    %31 = math.log1p %30 : vector<8x128xf32>
    %32 = arith.select %29, %27, %31 : vector<8x128xi1>, vector<8x128xf32>
    %c0_18 = arith.constant 0 : index
    %c0_19 = arith.constant 0 : index
    %33 = vector.load %arg8[%c0_18, %c0_19] : memref<128x32xbf16, #tpu.memory_space<vmem>>, vector<128x32xbf16>
    %c0_20 = arith.constant 0 : index
    %c0_21 = arith.constant 0 : index
    %34 = vector.load %arg9[%c0_20, %c0_21] : memref<1x32xf32, #tpu.memory_space<vmem>>, vector<1x32xf32>
    %35 = arith.truncf %32 : vector<8x128xf32> to vector<8x128xbf16>
    %cst_22 = arith.constant dense<0.000000e+00> : vector<8x32xf32>
    %36 = tpu.matmul %35, %33, %cst_22 {dimension_numbers = #tpu.dot_dimension_numbers<[1], [0], [0], [1], [0, 0, 1, 1], [], []>} : vector<8x128xbf16>, vector<128x32xbf16>, vector<8x32xf32> -> vector<8x32xf32>
    %37 = vector.broadcast %34 : vector<1x32xf32> to vector<8x32xf32>
    %38 = arith.addf %36, %37 : vector<8x32xf32>
    %cst_23 = arith.constant 2.000000e+01 : f32
    %39 = vector.broadcast %cst_23 : f32 to vector<8x32xf32>
    %40 = arith.cmpf ogt, %38, %39 : vector<8x32xf32>
    %41 = math.exp %38 : vector<8x32xf32>
    %42 = math.log1p %41 : vector<8x32xf32>
    %43 = arith.select %40, %38, %42 : vector<8x32xi1>, vector<8x32xf32>
    %c0_24 = arith.constant 0 : index
    %c0_25 = arith.constant 0 : index
    %44 = vector.load %arg10[%c0_24, %c0_25] : memref<32x128xbf16, #tpu.memory_space<vmem>>, vector<32x128xbf16>
    %c0_26 = arith.constant 0 : index
    %c0_27 = arith.constant 0 : index
    %45 = vector.load %arg11[%c0_26, %c0_27] : memref<1x128xf32, #tpu.memory_space<vmem>>, vector<1x128xf32>
    %46 = arith.truncf %43 : vector<8x32xf32> to vector<8x32xbf16>
    %cst_28 = arith.constant dense<0.000000e+00> : vector<8x128xf32>
    %47 = tpu.matmul %46, %44, %cst_28 {dimension_numbers = #tpu.dot_dimension_numbers<[1], [0], [0], [1], [0, 0, 1, 1], [], []>} : vector<8x32xbf16>, vector<32x128xbf16>, vector<8x128xf32> -> vector<8x128xf32>
    %48 = vector.broadcast %45 : vector<1x128xf32> to vector<8x128xf32>
    %49 = arith.addf %47, %48 : vector<8x128xf32>
    %cst_29 = arith.constant 2.000000e+01 : f32
    %50 = vector.broadcast %cst_29 : f32 to vector<8x128xf32>
    %51 = arith.cmpf ogt, %49, %50 : vector<8x128xf32>
    %52 = math.exp %49 : vector<8x128xf32>
    %53 = math.log1p %52 : vector<8x128xf32>
    %54 = arith.select %51, %49, %53 : vector<8x128xi1>, vector<8x128xf32>
    %c0_30 = arith.constant 0 : index
    %c0_31 = arith.constant 0 : index
    %55 = vector.load %arg12[%c0_30, %c0_31] : memref<128x256xbf16, #tpu.memory_space<vmem>>, vector<128x256xbf16>
    %c0_32 = arith.constant 0 : index
    %c0_33 = arith.constant 0 : index
    %56 = vector.load %arg13[%c0_32, %c0_33] : memref<1x256xf32, #tpu.memory_space<vmem>>, vector<1x256xf32>
    %57 = arith.truncf %54 : vector<8x128xf32> to vector<8x128xbf16>
    %cst_34 = arith.constant dense<0.000000e+00> : vector<8x256xf32>
    %58 = tpu.matmul %57, %55, %cst_34 {dimension_numbers = #tpu.dot_dimension_numbers<[1], [0], [0], [1], [0, 0, 1, 1], [], []>} : vector<8x128xbf16>, vector<128x256xbf16>, vector<8x256xf32> -> vector<8x256xf32>
    %59 = vector.broadcast %56 : vector<1x256xf32> to vector<8x256xf32>
    %60 = arith.addf %58, %59 : vector<8x256xf32>
    %cst_35 = arith.constant 2.000000e+01 : f32
    %61 = vector.broadcast %cst_35 : f32 to vector<8x256xf32>
    %62 = arith.cmpf ogt, %60, %61 : vector<8x256xf32>
    %63 = math.exp %60 : vector<8x256xf32>
    %64 = math.log1p %63 : vector<8x256xf32>
    %65 = arith.select %62, %60, %64 : vector<8x256xi1>, vector<8x256xf32>
    %c0_36 = arith.constant 0 : index
    %c0_37 = arith.constant 0 : index
    %66 = vector.load %arg14[%c0_36, %c0_37] : memref<256x512xbf16, #tpu.memory_space<vmem>>, vector<256x512xbf16>
    %c0_38 = arith.constant 0 : index
    %c0_39 = arith.constant 0 : index
    %67 = vector.load %arg15[%c0_38, %c0_39] : memref<1x512xf32, #tpu.memory_space<vmem>>, vector<1x512xf32>
    %68 = arith.truncf %65 : vector<8x256xf32> to vector<8x256xbf16>
    %cst_40 = arith.constant dense<0.000000e+00> : vector<8x512xf32>
    %69 = tpu.matmul %68, %66, %cst_40 {dimension_numbers = #tpu.dot_dimension_numbers<[1], [0], [0], [1], [0, 0, 1, 1], [], []>} : vector<8x256xbf16>, vector<256x512xbf16>, vector<8x512xf32> -> vector<8x512xf32>
    %70 = vector.broadcast %67 : vector<1x512xf32> to vector<8x512xf32>
    %71 = arith.addf %69, %70 : vector<8x512xf32>
    %cst_41 = arith.constant 2.000000e+01 : f32
    %72 = vector.broadcast %cst_41 : f32 to vector<8x512xf32>
    %73 = arith.cmpf ogt, %71, %72 : vector<8x512xf32>
    %74 = math.exp %71 : vector<8x512xf32>
    %75 = math.log1p %74 : vector<8x512xf32>
    %76 = arith.select %73, %71, %75 : vector<8x512xi1>, vector<8x512xf32>
    %c0_42 = arith.constant 0 : index
    %c0_43 = arith.constant 0 : index
    %77 = vector.load %arg16[%c0_42, %c0_43] : memref<512x896xbf16, #tpu.memory_space<vmem>>, vector<512x896xbf16>
    %c0_44 = arith.constant 0 : index
    %c0_45 = arith.constant 0 : index
    %78 = vector.load %arg17[%c0_44, %c0_45] : memref<1x896xf32, #tpu.memory_space<vmem>>, vector<1x896xf32>
    %79 = arith.truncf %76 : vector<8x512xf32> to vector<8x512xbf16>
    %cst_46 = arith.constant dense<0.000000e+00> : vector<8x896xf32>
    %80 = tpu.matmul %79, %77, %cst_46 {dimension_numbers = #tpu.dot_dimension_numbers<[1], [0], [0], [1], [0, 0, 1, 1], [], []>} : vector<8x512xbf16>, vector<512x896xbf16>, vector<8x896xf32> -> vector<8x896xf32>
    %81 = vector.broadcast %78 : vector<1x896xf32> to vector<8x896xf32>
    %82 = arith.addf %80, %81 : vector<8x896xf32>
    %83 = arith.negf %82 : vector<8x896xf32>
    %84 = math.exp %83 : vector<8x896xf32>
    %cst_47 = arith.constant 1.000000e+00 : f32
    %85 = vector.broadcast %cst_47 : f32 to vector<8x896xf32>
    %86 = arith.addf %85, %84 : vector<8x896xf32>
    %87 = arith.divf %85, %86 : vector<8x896xf32>
    %c0_48 = arith.constant 0 : index
    %c0_49 = arith.constant 0 : index
    %88 = vector.load %arg18[%c0_48, %c0_49] : memref<8x896xf32, #tpu.memory_space<vmem>>, vector<8x896xf32>
    tpu.vector_store %arg18[%c0_48, %c0_49], %87 {strides = array<i32>} : memref<8x896xf32, #tpu.memory_space<vmem>>, vector<8x896xf32>,
    return
  }
  func.func @transform_0(%arg0: i32) -> (i32, i32) {
    %c0_i32 = arith.constant 0 : i32
    %c0_i32_0 = arith.constant 0 : i32
    return %arg0, %c0_i32 : i32, i32
  }
  func.func @transform_1(%arg0: i32) -> (i32, i32) {
    %c0_i32 = arith.constant 0 : i32
    %c0_i32_0 = arith.constant 0 : i32
    %c0_i32_1 = arith.constant 0 : i32
    return %c0_i32, %c0_i32_0 : i32, i32
  }
  func.func @transform_2(%arg0: i32) -> (i32, i32) {
    %c0_i32 = arith.constant 0 : i32
    %c0_i32_0 = arith.constant 0 : i32
    %c0_i32_1 = arith.constant 0 : i32
    return %c0_i32, %c0_i32_0 : i32, i32
  }
  func.func @transform_3(%arg0: i32) -> (i32, i32) {
    %c0_i32 = arith.constant 0 : i32
    %c0_i32_0 = arith.constant 0 : i32
    %c0_i32_1 = arith.constant 0 : i32
    return %c0_i32, %c0_i32_0 : i32, i32
  }
  func.func @transform_4(%arg0: i32) -> (i32, i32) {
    %c0_i32 = arith.constant 0 : i32
    %c0_i32_0 = arith.constant 0 : i32
    %c0_i32_1 = arith.constant 0 : i32
    return %c0_i32, %c0_i32_0 : i32, i32
  }
  func.func @transform_5(%arg0: i32) -> (i32, i32) {
    %c0_i32 = arith.constant 0 : i32
    %c0_i32_0 = arith.constant 0 : i32
    %c0_i32_1 = arith.constant 0 : i32
    return %c0_i32, %c0_i32_0 : i32, i32
  }
  func.func @transform_6(%arg0: i32) -> (i32, i32) {
    %c0_i32 = arith.constant 0 : i32
    %c0_i32_0 = arith.constant 0 : i32
    %c0_i32_1 = arith.constant 0 : i32
    return %c0_i32, %c0_i32_0 : i32, i32
  }
  func.func @transform_7(%arg0: i32) -> (i32, i32) {
    %c0_i32 = arith.constant 0 : i32
    %c0_i32_0 = arith.constant 0 : i32
    %c0_i32_1 = arith.constant 0 : i32
    return %c0_i32, %c0_i32_0 : i32, i32
  }
  func.func @transform_8(%arg0: i32) -> (i32, i32) {
    %c0_i32 = arith.constant 0 : i32
    %c0_i32_0 = arith.constant 0 : i32
    %c0_i32_1 = arith.constant 0 : i32
    return %c0_i32, %c0_i32_0 : i32, i32
  }
  func.func @transform_9(%arg0: i32) -> (i32, i32) {
    %c0_i32 = arith.constant 0 : i32
    %c0_i32_0 = arith.constant 0 : i32
    %c0_i32_1 = arith.constant 0 : i32
    return %c0_i32, %c0_i32_0 : i32, i32
  }
  func.func @transform_10(%arg0: i32) -> (i32, i32) {
    %c0_i32 = arith.constant 0 : i32
    %c0_i32_0 = arith.constant 0 : i32
    %c0_i32_1 = arith.constant 0 : i32
    return %c0_i32, %c0_i32_0 : i32, i32
  }
  func.func @transform_11(%arg0: i32) -> (i32, i32) {
    %c0_i32 = arith.constant 0 : i32
    %c0_i32_0 = arith.constant 0 : i32
    %c0_i32_1 = arith.constant 0 : i32
    return %c0_i32, %c0_i32_0 : i32, i32
  }
  func.func @transform_12(%arg0: i32) -> (i32, i32) {
    %c0_i32 = arith.constant 0 : i32
    %c0_i32_0 = arith.constant 0 : i32
    %c0_i32_1 = arith.constant 0 : i32
    return %c0_i32, %c0_i32_0 : i32, i32
  }
  func.func @transform_13(%arg0: i32) -> (i32, i32) {
    %c0_i32 = arith.constant 0 : i32
    %c0_i32_0 = arith.constant 0 : i32
    %c0_i32_1 = arith.constant 0 : i32
    return %c0_i32, %c0_i32_0 : i32, i32
  }
  func.func @transform_14(%arg0: i32) -> (i32, i32) {
    %c0_i32 = arith.constant 0 : i32
    %c0_i32_0 = arith.constant 0 : i32
    %c0_i32_1 = arith.constant 0 : i32
    return %c0_i32, %c0_i32_0 : i32, i32
  }
  func.func @transform_15(%arg0: i32) -> (i32, i32) {
    %c0_i32 = arith.constant 0 : i32
    %c0_i32_0 = arith.constant 0 : i32
    %c0_i32_1 = arith.constant 0 : i32
    return %c0_i32, %c0_i32_0 : i32, i32
  }
  func.func @transform_16(%arg0: i32) -> (i32, i32) {
    %c0_i32 = arith.constant 0 : i32
    %c0_i32_0 = arith.constant 0 : i32
    %c0_i32_1 = arith.constant 0 : i32
    return %c0_i32, %c0_i32_0 : i32, i32
  }
  func.func @transform_17(%arg0: i32) -> (i32, i32) {
    %c0_i32 = arith.constant 0 : i32
    %c0_i32_0 = arith.constant 0 : i32
    return %arg0, %c0_i32 : i32, i32
  }
}

</mosaic_0001>

<llo_original>
// kernel: mnist_autoencoder.1
$region0: #{mnist_autoencoder.1}
  #allocation0 [shape = 'u32[]', space=smem, size = 0x4, offset = 0x4, fixed_abs, tag = 'smem constant byte address 0x4 - core index']
  #allocation1 [shape = 'u32[144,128]{1,0:T(1,128)}', space=vmem, size = 0x12000, scoped, tag = 'internal scratch']
  %s0 = inlined_call_operand.vmem [shape: bf16[16,896], index: 0, kind: input, shape index: {}]
  %s1 = inlined_call_operand.vmem [shape: bf16[896,512], index: 1, kind: input, shape index: {}]
  %s2 = inlined_call_operand.vmem [shape: f32[1,512], index: 2, kind: input, shape index: {}]
  %s3 = inlined_call_operand.vmem [shape: bf16[512,256], index: 3, kind: input, shape index: {}]
  %s4 = inlined_call_operand.vmem [shape: f32[1,256], index: 4, kind: input, shape index: {}]
  %s5 = inlined_call_operand.vmem [shape: bf16[256,128], index: 5, kind: input, shape index: {}]
  %s6 = inlined_call_operand.vmem [shape: f32[1,128], index: 6, kind: input, shape index: {}]
  %s7 = inlined_call_operand.vmem [shape: bf16[128,32], index: 7, kind: input, shape index: {}]
  %s8 = inlined_call_operand.vmem [shape: f32[1,32], index: 8, kind: input, shape index: {}]
  %s9 = inlined_call_operand.vmem [shape: bf16[32,128], index: 9, kind: input, shape index: {}]
  %s10 = inlined_call_operand.vmem [shape: f32[1,128], index: 10, kind: input, shape index: {}]
  %s11 = inlined_call_operand.vmem [shape: bf16[128,256], index: 11, kind: input, shape index: {}]
  %s12 = inlined_call_operand.vmem [shape: f32[1,256], index: 12, kind: input, shape index: {}]
  %s13 = inlined_call_operand.vmem [shape: bf16[256,512], index: 13, kind: input, shape index: {}]
  %s14 = inlined_call_operand.vmem [shape: f32[1,512], index: 14, kind: input, shape index: {}]
  %s15 = inlined_call_operand.vmem [shape: bf16[512,896], index: 15, kind: input, shape index: {}]
  %s16 = inlined_call_operand.vmem [shape: f32[1,896], index: 16, kind: input, shape index: {}]
  %s17 = inlined_call_operand.hbm [shape: f32[16,896], index: 17, kind: output, shape index: {}]
  %s18 = sld [smem:[#allocation0]]
  $region101: #{mnist_autoencoder.1} parent=0
    _
  %s20 = ssub.s32 1, %s18
  %s21 = scalar_select 0, %s20, %s18
  $region1: #{mnist_autoencoder.1} parent=0
    #allocation2 [shape = 'u8[57344]{0}', space=vmem, size = 0xe000, scoped, tag = 'output window, operand 0']
    #allocation3 [shape = 's32[2]{0}', space=sflag, size = 0x8, scoped, tag = 'scoped memory for mnist_autoencoder.1']
    %22 = vsyncpa [#allocation3], 0
    %s23 = scalar_lea.sflag [#allocation3], 1
    %24 = vsyncpa %s23, 0
    loop: start=0, step=1, limit=4
    $region2: #{mnist_autoencoder.1} parent=1 // loop_pre_header
      _
    $region3: #{mnist_autoencoder.1} parent=1 // loop_header
      %s26 = sphi 0, %s30
      %p27 = scmp.ge.s32.totalorder %s26, 4
      %s36 = sphi 0, %s38
      %s39 = sphi 0, %s36
      %s40 = sphi 0, %s39
      %s56 = sphi 0, %s40
      %s60 = sphi 0, %s60
      %s62 = sphi 0, %s60
      %s63 = sphi 0, %s62
      %s77 = sphi 0, %s63
      %s81 = sphi 0, %s81
      %s83 = sphi 0, %s81
      %s84 = sphi 0, %s83
      %s98 = sphi 0, %s84
      %s102 = sphi 0, %s102
      %s104 = sphi 0, %s102
      %s105 = sphi 0, %s104
      %s119 = sphi 0, %s105
      %s123 = sphi 0, %s123
      %s125 = sphi 0, %s123
      %s126 = sphi 0, %s125
      %s140 = sphi 0, %s126
      %s144 = sphi 0, %s144
      %s146 = sphi 0, %s144
      %s147 = sphi 0, %s146
      %s161 = sphi 0, %s147
      %s165 = sphi 0, %s165
      %s167 = sphi 0, %s165
      %s168 = sphi 0, %s167
      %s182 = sphi 0, %s168
      %s186 = sphi 0, %s186
      %s188 = sphi 0, %s186
      %s189 = sphi 0, %s188
      %s203 = sphi 0, %s189
      %s207 = sphi 0, %s207
      %s209 = sphi 0, %s207
      %s210 = sphi 0, %s209
      %s224 = sphi 0, %s210
      %s228 = sphi 0, %s228
      %s230 = sphi 0, %s228
      %s231 = sphi 0, %s230
      %s245 = sphi 0, %s231
      %s249 = sphi 0, %s249
      %s251 = sphi 0, %s249
      %s252 = sphi 0, %s251
      %s266 = sphi 0, %s252
      %s270 = sphi 0, %s270
      %s272 = sphi 0, %s270
      %s273 = sphi 0, %s272
      %s287 = sphi 0, %s273
      %s291 = sphi 0, %s291
      %s293 = sphi 0, %s291
      %s294 = sphi 0, %s293
      %s308 = sphi 0, %s294
      %s312 = sphi 0, %s312
      %s314 = sphi 0, %s312
      %s315 = sphi 0, %s314
      %s329 = sphi 0, %s315
      %s333 = sphi 0, %s333
      %s335 = sphi 0, %s333
      %s336 = sphi 0, %s335
      %s350 = sphi 0, %s336
      %s354 = sphi 0, %s354
      %s356 = sphi 0, %s354
      %s357 = sphi 0, %s356
      %s371 = sphi 0, %s357
      %s375 = sphi 0, %s375
      %s377 = sphi 0, %s375
      %s378 = sphi 0, %s377
      %s392 = sphi 0, %s378
      %s398 = sphi 0, %s400
      %s401 = sphi 0, %s398
      %s402 = sphi 0, %s401
      %s418 = sphi 0, %s402
    $region4: #{mnist_autoencoder.1} parent=1 // loop_header_branch
      %29 = sbr.rel (%p27) target = $region8
    $region5: #{mnist_autoencoder.1} parent=1 // loop_body
      %s31 = ssub.s32 %s26, 1
      %s32 = ssub.s32 %s26, 2
      %s33 = sadd.s32 %s26, 1
      %s34 = ssub.s32 %s26, %s33
      %p35 = scmp.eq.s32.totalorder %s34, 0
      %s37 = sadd.s32 %s36, 1
      %s38 = scalar_select %p35, %s36, %s37
      %p41 = pneg %p35
      %p42 = scmp.eq.s32.totalorder %s26, 1
      %p43 = por %p41, %p42
      %p44 = scmp.ne.s32.totalorder %s36, %s39
      %p45 = scmp.eq.s32.totalorder %s26, 0
      %p46 = por %p44, %p45
      %p47 = scmp.ne.s32.totalorder %s36, %s39
      %p48 = scmp.eq.s32.totalorder %s31, 1
      %p49 = por %p47, %p48
      %p50 = scmp.ne.s32.totalorder %s39, %s40
      %p51 = scmp.eq.s32.totalorder %s31, 0
      %p52 = por %p50, %p51
      %p53 = scmp.ne.s32.totalorder %s39, %s40
      %p54 = scmp.eq.s32.totalorder %s32, 1
      %p55 = por %p53, %p54
      %p57 = scmp.ne.s32.totalorder %s40, %s56
      %p58 = scmp.eq.s32.totalorder %s32, 0
      %p59 = por %p57, %p58
      %s61 = sadd.s32 %s60, 1
      %p64 = scmp.eq.s32.totalorder %s26, 1
      %p65 = scmp.ne.s32.totalorder %s60, %s62
      %p66 = scmp.eq.s32.totalorder %s26, 0
      %p67 = por %p65, %p66
      %p68 = scmp.ne.s32.totalorder %s60, %s62
      %p69 = scmp.eq.s32.totalorder %s31, 1
      %p70 = por %p68, %p69
      %p71 = scmp.ne.s32.totalorder %s62, %s63
      %p72 = scmp.eq.s32.totalorder %s31, 0
      %p73 = por %p71, %p72
      %p74 = scmp.ne.s32.totalorder %s62, %s63
      %p75 = scmp.eq.s32.totalorder %s32, 1
      %p76 = por %p74, %p75
      %p78 = scmp.ne.s32.totalorder %s63, %s77
      %p79 = scmp.eq.s32.totalorder %s32, 0
      %p80 = por %p78, %p79
      %s82 = sadd.s32 %s81, 1
      %p85 = scmp.eq.s32.totalorder %s26, 1
      %p86 = scmp.ne.s32.totalorder %s81, %s83
      %p87 = scmp.eq.s32.totalorder %s26, 0
      %p88 = por %p86, %p87
      %p89 = scmp.ne.s32.totalorder %s81, %s83
      %p90 = scmp.eq.s32.totalorder %s31, 1
      %p91 = por %p89, %p90
      %p92 = scmp.ne.s32.totalorder %s83, %s84
      %p93 = scmp.eq.s32.totalorder %s31, 0
      %p94 = por %p92, %p93
      %p95 = scmp.ne.s32.totalorder %s83, %s84
      %p96 = scmp.eq.s32.totalorder %s32, 1
      %p97 = por %p95, %p96
      %p99 = scmp.ne.s32.totalorder %s84, %s98
      %p100 = scmp.eq.s32.totalorder %s32, 0
      %p101 = por %p99, %p100
      %s103 = sadd.s32 %s102, 1
      %p106 = scmp.eq.s32.totalorder %s26, 1
      %p107 = scmp.ne.s32.totalorder %s102, %s104
      %p108 = scmp.eq.s32.totalorder %s26, 0
      %p109 = por %p107, %p108
      %p110 = scmp.ne.s32.totalorder %s102, %s104
      %p111 = scmp.eq.s32.totalorder %s31, 1
      %p112 = por %p110, %p111
      %p113 = scmp.ne.s32.totalorder %s104, %s105
      %p114 = scmp.eq.s32.totalorder %s31, 0
      %p115 = por %p113, %p114
      %p116 = scmp.ne.s32.totalorder %s104, %s105
      %p117 = scmp.eq.s32.totalorder %s32, 1
      %p118 = por %p116, %p117
      %p120 = scmp.ne.s32.totalorder %s105, %s119
      %p121 = scmp.eq.s32.totalorder %s32, 0
      %p122 = por %p120, %p121
      %s124 = sadd.s32 %s123, 1
      %p127 = scmp.eq.s32.totalorder %s26, 1
      %p128 = scmp.ne.s32.totalorder %s123, %s125
      %p129 = scmp.eq.s32.totalorder %s26, 0
      %p130 = por %p128, %p129
      %p131 = scmp.ne.s32.totalorder %s123, %s125
      %p132 = scmp.eq.s32.totalorder %s31, 1
      %p133 = por %p131, %p132
      %p134 = scmp.ne.s32.totalorder %s125, %s126
      %p135 = scmp.eq.s32.totalorder %s31, 0
      %p136 = por %p134, %p135
      %p137 = scmp.ne.s32.totalorder %s125, %s126
      %p138 = scmp.eq.s32.totalorder %s32, 1
      %p139 = por %p137, %p138
      %p141 = scmp.ne.s32.totalorder %s126, %s140
      %p142 = scmp.eq.s32.totalorder %s32, 0
      %p143 = por %p141, %p142
      %s145 = sadd.s32 %s144, 1
      %p148 = scmp.eq.s32.totalorder %s26, 1
      %p149 = scmp.ne.s32.totalorder %s144, %s146
      %p150 = scmp.eq.s32.totalorder %s26, 0
      %p151 = por %p149, %p150
      %p152 = scmp.ne.s32.totalorder %s144, %s146
      %p153 = scmp.eq.s32.totalorder %s31, 1
      %p154 = por %p152, %p153
      %p155 = scmp.ne.s32.totalorder %s146, %s147
      %p156 = scmp.eq.s32.totalorder %s31, 0
      %p157 = por %p155, %p156
      %p158 = scmp.ne.s32.totalorder %s146, %s147
      %p159 = scmp.eq.s32.totalorder %s32, 1
      %p160 = por %p158, %p159
      %p162 = scmp.ne.s32.totalorder %s147, %s161
      %p163 = scmp.eq.s32.totalorder %s32, 0
      %p164 = por %p162, %p163
      %s166 = sadd.s32 %s165, 1
      %p169 = scmp.eq.s32.totalorder %s26, 1
      %p170 = scmp.ne.s32.totalorder %s165, %s167
      %p171 = scmp.eq.s32.totalorder %s26, 0
      %p172 = por %p170, %p171
      %p173 = scmp.ne.s32.totalorder %s165, %s167
      %p174 = scmp.eq.s32.totalorder %s31, 1
      %p175 = por %p173, %p174
      %p176 = scmp.ne.s32.totalorder %s167, %s168
      %p177 = scmp.eq.s32.totalorder %s31, 0
      %p178 = por %p176, %p177
      %p179 = scmp.ne.s32.totalorder %s167, %s168
      %p180 = scmp.eq.s32.totalorder %s32, 1
      %p181 = por %p179, %p180
      %p183 = scmp.ne.s32.totalorder %s168, %s182
      %p184 = scmp.eq.s32.totalorder %s32, 0
      %p185 = por %p183, %p184
      %s187 = sadd.s32 %s186, 1
      %p190 = scmp.eq.s32.totalorder %s26, 1
      %p191 = scmp.ne.s32.totalorder %s186, %s188
      %p192 = scmp.eq.s32.totalorder %s26, 0
      %p193 = por %p191, %p192
      %p194 = scmp.ne.s32.totalorder %s186, %s188
      %p195 = scmp.eq.s32.totalorder %s31, 1
      %p196 = por %p194, %p195
      %p197 = scmp.ne.s32.totalorder %s188, %s189
      %p198 = scmp.eq.s32.totalorder %s31, 0
      %p199 = por %p197, %p198
      %p200 = scmp.ne.s32.totalorder %s188, %s189
      %p201 = scmp.eq.s32.totalorder %s32, 1
      %p202 = por %p200, %p201
      %p204 = scmp.ne.s32.totalorder %s189, %s203
      %p205 = scmp.eq.s32.totalorder %s32, 0
      %p206 = por %p204, %p205
      %s208 = sadd.s32 %s207, 1
      %p211 = scmp.eq.s32.totalorder %s26, 1
      %p212 = scmp.ne.s32.totalorder %s207, %s209
      %p213 = scmp.eq.s32.totalorder %s26, 0
      %p214 = por %p212, %p213
      %p215 = scmp.ne.s32.totalorder %s207, %s209
      %p216 = scmp.eq.s32.totalorder %s31, 1
      %p217 = por %p215, %p216
      %p218 = scmp.ne.s32.totalorder %s209, %s210
      %p219 = scmp.eq.s32.totalorder %s31, 0
      %p220 = por %p218, %p219
      %p221 = scmp.ne.s32.totalorder %s209, %s210
      %p222 = scmp.eq.s32.totalorder %s32, 1
      %p223 = por %p221, %p222
      %p225 = scmp.ne.s32.totalorder %s210, %s224
      %p226 = scmp.eq.s32.totalorder %s32, 0
      %p227 = por %p225, %p226
      %s229 = sadd.s32 %s228, 1
      %p232 = scmp.eq.s32.totalorder %s26, 1
      %p233 = scmp.ne.s32.totalorder %s228, %s230
      %p234 = scmp.eq.s32.totalorder %s26, 0
      %p235 = por %p233, %p234
      %p236 = scmp.ne.s32.totalorder %s228, %s230
      %p237 = scmp.eq.s32.totalorder %s31, 1
      %p238 = por %p236, %p237
      %p239 = scmp.ne.s32.totalorder %s230, %s231
      %p240 = scmp.eq.s32.totalorder %s31, 0
      %p241 = por %p239, %p240
      %p242 = scmp.ne.s32.totalorder %s230, %s231
      %p243 = scmp.eq.s32.totalorder %s32, 1
      %p244 = por %p242, %p243
      %p246 = scmp.ne.s32.totalorder %s231, %s245
      %p247 = scmp.eq.s32.totalorder %s32, 0
      %p248 = por %p246, %p247
      %s250 = sadd.s32 %s249, 1
      %p253 = scmp.eq.s32.totalorder %s26, 1
      %p254 = scmp.ne.s32.totalorder %s249, %s251
      %p255 = scmp.eq.s32.totalorder %s26, 0
      %p256 = por %p254, %p255
      %p257 = scmp.ne.s32.totalorder %s249, %s251
      %p258 = scmp.eq.s32.totalorder %s31, 1
      %p259 = por %p257, %p258
      %p260 = scmp.ne.s32.totalorder %s251, %s252
      %p261 = scmp.eq.s32.totalorder %s31, 0
      %p262 = por %p260, %p261
      %p263 = scmp.ne.s32.totalorder %s251, %s252
      %p264 = scmp.eq.s32.totalorder %s32, 1
      %p265 = por %p263, %p264
      %p267 = scmp.ne.s32.totalorder %s252, %s266
      %p268 = scmp.eq.s32.totalorder %s32, 0
      %p269 = por %p267, %p268
      %s271 = sadd.s32 %s270, 1
      %p274 = scmp.eq.s32.totalorder %s26, 1
      %p275 = scmp.ne.s32.totalorder %s270, %s272
      %p276 = scmp.eq.s32.totalorder %s26, 0
      %p277 = por %p275, %p276
      %p278 = scmp.ne.s32.totalorder %s270, %s272
      %p279 = scmp.eq.s32.totalorder %s31, 1
      %p280 = por %p278, %p279
      %p281 = scmp.ne.s32.totalorder %s272, %s273
      %p282 = scmp.eq.s32.totalorder %s31, 0
      %p283 = por %p281, %p282
      %p284 = scmp.ne.s32.totalorder %s272, %s273
      %p285 = scmp.eq.s32.totalorder %s32, 1
      %p286 = por %p284, %p285
      %p288 = scmp.ne.s32.totalorder %s273, %s287
      %p289 = scmp.eq.s32.totalorder %s32, 0
      %p290 = por %p288, %p289
      %s292 = sadd.s32 %s291, 1
      %p295 = scmp.eq.s32.totalorder %s26, 1
      %p296 = scmp.ne.s32.totalorder %s291, %s293
      %p297 = scmp.eq.s32.totalorder %s26, 0
      %p298 = por %p296, %p297
      %p299 = scmp.ne.s32.totalorder %s291, %s293
      %p300 = scmp.eq.s32.totalorder %s31, 1
      %p301 = por %p299, %p300
      %p302 = scmp.ne.s32.totalorder %s293, %s294
      %p303 = scmp.eq.s32.totalorder %s31, 0
      %p304 = por %p302, %p303
      %p305 = scmp.ne.s32.totalorder %s293, %s294
      %p306 = scmp.eq.s32.totalorder %s32, 1
      %p307 = por %p305, %p306
      %p309 = scmp.ne.s32.totalorder %s294, %s308
      %p310 = scmp.eq.s32.totalorder %s32, 0
      %p311 = por %p309, %p310
      %s313 = sadd.s32 %s312, 1
      %p316 = scmp.eq.s32.totalorder %s26, 1
      %p317 = scmp.ne.s32.totalorder %s312, %s314
      %p318 = scmp.eq.s32.totalorder %s26, 0
      %p319 = por %p317, %p318
      %p320 = scmp.ne.s32.totalorder %s312, %s314
      %p321 = scmp.eq.s32.totalorder %s31, 1
      %p322 = por %p320, %p321
      %p323 = scmp.ne.s32.totalorder %s314, %s315
      %p324 = scmp.eq.s32.totalorder %s31, 0
      %p325 = por %p323, %p324
      %p326 = scmp.ne.s32.totalorder %s314, %s315
      %p327 = scmp.eq.s32.totalorder %s32, 1
      %p328 = por %p326, %p327
      %p330 = scmp.ne.s32.totalorder %s315, %s329
      %p331 = scmp.eq.s32.totalorder %s32, 0
      %p332 = por %p330, %p331
      %s334 = sadd.s32 %s333, 1
      %p337 = scmp.eq.s32.totalorder %s26, 1
      %p338 = scmp.ne.s32.totalorder %s333, %s335
      %p339 = scmp.eq.s32.totalorder %s26, 0
      %p340 = por %p338, %p339
      %p341 = scmp.ne.s32.totalorder %s333, %s335
      %p342 = scmp.eq.s32.totalorder %s31, 1
      %p343 = por %p341, %p342
      %p344 = scmp.ne.s32.totalorder %s335, %s336
      %p345 = scmp.eq.s32.totalorder %s31, 0
      %p346 = por %p344, %p345
      %p347 = scmp.ne.s32.totalorder %s335, %s336
      %p348 = scmp.eq.s32.totalorder %s32, 1
      %p349 = por %p347, %p348
      %p351 = scmp.ne.s32.totalorder %s336, %s350
      %p352 = scmp.eq.s32.totalorder %s32, 0
      %p353 = por %p351, %p352
      %s355 = sadd.s32 %s354, 1
      %p358 = scmp.eq.s32.totalorder %s26, 1
      %p359 = scmp.ne.s32.totalorder %s354, %s356
      %p360 = scmp.eq.s32.totalorder %s26, 0
      %p361 = por %p359, %p360
      %p362 = scmp.ne.s32.totalorder %s354, %s356
      %p363 = scmp.eq.s32.totalorder %s31, 1
      %p364 = por %p362, %p363
      %p365 = scmp.ne.s32.totalorder %s356, %s357
      %p366 = scmp.eq.s32.totalorder %s31, 0
      %p367 = por %p365, %p366
      %p368 = scmp.ne.s32.totalorder %s356, %s357
      %p369 = scmp.eq.s32.totalorder %s32, 1
      %p370 = por %p368, %p369
      %p372 = scmp.ne.s32.totalorder %s357, %s371
      %p373 = scmp.eq.s32.totalorder %s32, 0
      %p374 = por %p372, %p373
      %s376 = sadd.s32 %s375, 1
      %p379 = scmp.eq.s32.totalorder %s26, 1
      %p380 = scmp.ne.s32.totalorder %s375, %s377
      %p381 = scmp.eq.s32.totalorder %s26, 0
      %p382 = por %p380, %p381
      %p383 = scmp.ne.s32.totalorder %s375, %s377
      %p384 = scmp.eq.s32.totalorder %s31, 1
      %p385 = por %p383, %p384
      %p386 = scmp.ne.s32.totalorder %s377, %s378
      %p387 = scmp.eq.s32.totalorder %s31, 0
      %p388 = por %p386, %p387
      %p389 = scmp.ne.s32.totalorder %s377, %s378
      %p390 = scmp.eq.s32.totalorder %s32, 1
      %p391 = por %p389, %p390
      %p393 = scmp.ne.s32.totalorder %s378, %s392
      %p394 = scmp.eq.s32.totalorder %s32, 0
      %p395 = por %p393, %p394
      %s396 = ssub.s32 %s26, %s33
      %p397 = scmp.eq.s32.totalorder %s396, 0
      %s399 = sadd.s32 %s398, 1
      %s400 = scalar_select %p397, %s398, %s399
      %p403 = pneg %p397
      %p404 = scmp.eq.s32.totalorder %s26, 1
      %p405 = por %p403, %p404
      %p406 = scmp.ne.s32.totalorder %s398, %s401
      %p407 = scmp.eq.s32.totalorder %s26, 0
      %p408 = por %p406, %p407
      %p409 = scmp.ne.s32.totalorder %s398, %s401
      %p410 = scmp.eq.s32.totalorder %s31, 1
      %p411 = por %p409, %p410
      %p412 = scmp.ne.s32.totalorder %s401, %s402
      %p413 = scmp.eq.s32.totalorder %s31, 0
      %p414 = por %p412, %p413
      %p415 = scmp.ne.s32.totalorder %s401, %s402
      %p416 = scmp.eq.s32.totalorder %s32, 1
      %p417 = por %p415, %p416
      %p419 = scmp.ne.s32.totalorder %s402, %s418
      %p420 = scmp.eq.s32.totalorder %s32, 0
      %p421 = por %p419, %p420
      %p422 = scmp.le.s32.totalorder 1, %s26
      %p423 = scmp.lt.s32.totalorder %s26, 3
      %p424 = pnand %p422, %p423
      %p425 = pneg %p424
      // Predicated region
      $region9: #{mnist_autoencoder.1} parent=5 // pred_check
        _
      $region10: #{mnist_autoencoder.1} parent=5 // pred_check_branch
        %427 = sbr.rel (%p424) target = $region12
      $region11: #{mnist_autoencoder.1} parent=5 // pred_region
        %s428 = ssub.s32 %s26, 1
        // Predicated region
        $region13: #{mnist_autoencoder.1} parent=11 // pred_check
          %p429 = pneg %p73
        $region14: #{mnist_autoencoder.1} parent=11 // pred_check_branch
          %431 = sbr.rel (%p429) target = $region16
        $region15: #{mnist_autoencoder.1} parent=11 // pred_region
          _
        $region16: #{mnist_autoencoder.1} parent=11 // pred_fallthru
          _
        // Predicated region
        $region17: #{mnist_autoencoder.1} parent=11 // pred_check
          %p432 = pneg %p94
        $region18: #{mnist_autoencoder.1} parent=11 // pred_check_branch
          %434 = sbr.rel (%p432) target = $region20
        $region19: #{mnist_autoencoder.1} parent=11 // pred_region
          _
        $region20: #{mnist_autoencoder.1} parent=11 // pred_fallthru
          _
        // Predicated region
        $region21: #{mnist_autoencoder.1} parent=11 // pred_check
          %p435 = pneg %p115
        $region22: #{mnist_autoencoder.1} parent=11 // pred_check_branch
          %437 = sbr.rel (%p435) target = $region24
        $region23: #{mnist_autoencoder.1} parent=11 // pred_region
          _
        $region24: #{mnist_autoencoder.1} parent=11 // pred_fallthru
          _
        // Predicated region
        $region25: #{mnist_autoencoder.1} parent=11 // pred_check
          %p438 = pneg %p136
        $region26: #{mnist_autoencoder.1} parent=11 // pred_check_branch
          %440 = sbr.rel (%p438) target = $region28
        $region27: #{mnist_autoencoder.1} parent=11 // pred_region
          _
        $region28: #{mnist_autoencoder.1} parent=11 // pred_fallthru
          _
        // Predicated region
        $region29: #{mnist_autoencoder.1} parent=11 // pred_check
          %p441 = pneg %p157
        $region30: #{mnist_autoencoder.1} parent=11 // pred_check_branch
          %443 = sbr.rel (%p441) target = $region32
        $region31: #{mnist_autoencoder.1} parent=11 // pred_region
          _
        $region32: #{mnist_autoencoder.1} parent=11 // pred_fallthru
          _
        // Predicated region
        $region33: #{mnist_autoencoder.1} parent=11 // pred_check
          %p444 = pneg %p178
        $region34: #{mnist_autoencoder.1} parent=11 // pred_check_branch
          %446 = sbr.rel (%p444) target = $region36
        $region35: #{mnist_autoencoder.1} parent=11 // pred_region
          _
        $region36: #{mnist_autoencoder.1} parent=11 // pred_fallthru
          _
        // Predicated region
        $region37: #{mnist_autoencoder.1} parent=11 // pred_check
          %p447 = pneg %p199
        $region38: #{mnist_autoencoder.1} parent=11 // pred_check_branch
          %449 = sbr.rel (%p447) target = $region40
        $region39: #{mnist_autoencoder.1} parent=11 // pred_region
          _
        $region40: #{mnist_autoencoder.1} parent=11 // pred_fallthru
          _
        // Predicated region
        $region41: #{mnist_autoencoder.1} parent=11 // pred_check
          %p450 = pneg %p220
        $region42: #{mnist_autoencoder.1} parent=11 // pred_check_branch
          %452 = sbr.rel (%p450) target = $region44
        $region43: #{mnist_autoencoder.1} parent=11 // pred_region
          _
        $region44: #{mnist_autoencoder.1} parent=11 // pred_fallthru
          _
        // Predicated region
        $region45: #{mnist_autoencoder.1} parent=11 // pred_check
          %p453 = pneg %p241
        $region46: #{mnist_autoencoder.1} parent=11 // pred_check_branch
          %455 = sbr.rel (%p453) target = $region48
        $region47: #{mnist_autoencoder.1} parent=11 // pred_region
          _
        $region48: #{mnist_autoencoder.1} parent=11 // pred_fallthru
          _
        // Predicated region
        $region49: #{mnist_autoencoder.1} parent=11 // pred_check
          %p456 = pneg %p262
        $region50: #{mnist_autoencoder.1} parent=11 // pred_check_branch
          %458 = sbr.rel (%p456) target = $region52
        $region51: #{mnist_autoencoder.1} parent=11 // pred_region
          _
        $region52: #{mnist_autoencoder.1} parent=11 // pred_fallthru
          _
        // Predicated region
        $region53: #{mnist_autoencoder.1} parent=11 // pred_check
          %p459 = pneg %p283
        $region54: #{mnist_autoencoder.1} parent=11 // pred_check_branch
          %461 = sbr.rel (%p459) target = $region56
        $region55: #{mnist_autoencoder.1} parent=11 // pred_region
          _
        $region56: #{mnist_autoencoder.1} parent=11 // pred_fallthru
          _
        // Predicated region
        $region57: #{mnist_autoencoder.1} parent=11 // pred_check
          %p462 = pneg %p304
        $region58: #{mnist_autoencoder.1} parent=11 // pred_check_branch
          %464 = sbr.rel (%p462) target = $region60
        $region59: #{mnist_autoencoder.1} parent=11 // pred_region
          _
        $region60: #{mnist_autoencoder.1} parent=11 // pred_fallthru
          _
        // Predicated region
        $region61: #{mnist_autoencoder.1} parent=11 // pred_check
          %p465 = pneg %p325
        $region62: #{mnist_autoencoder.1} parent=11 // pred_check_branch
          %467 = sbr.rel (%p465) target = $region64
        $region63: #{mnist_autoencoder.1} parent=11 // pred_region
          _
        $region64: #{mnist_autoencoder.1} parent=11 // pred_fallthru
          _
        // Predicated region
        $region65: #{mnist_autoencoder.1} parent=11 // pred_check
          %p468 = pneg %p346
        $region66: #{mnist_autoencoder.1} parent=11 // pred_check_branch
          %470 = sbr.rel (%p468) target = $region68
        $region67: #{mnist_autoencoder.1} parent=11 // pred_region
          _
        $region68: #{mnist_autoencoder.1} parent=11 // pred_fallthru
          _
        // Predicated region
        $region69: #{mnist_autoencoder.1} parent=11 // pred_check
          %p471 = pneg %p367
        $region70: #{mnist_autoencoder.1} parent=11 // pred_check_branch
          %473 = sbr.rel (%p471) target = $region72
        $region71: #{mnist_autoencoder.1} parent=11 // pred_region
          _
        $region72: #{mnist_autoencoder.1} parent=11 // pred_fallthru
          _
        // Predicated region
        $region73: #{mnist_autoencoder.1} parent=11 // pred_check
          %p474 = pneg %p388
        $region74: #{mnist_autoencoder.1} parent=11 // pred_check_branch
          %476 = sbr.rel (%p474) target = $region76
        $region75: #{mnist_autoencoder.1} parent=11 // pred_region
          _
        $region76: #{mnist_autoencoder.1} parent=11 // pred_fallthru
          _
      $region12: #{mnist_autoencoder.1} parent=5 // pred_fallthru
        _
      %p477 = scmp.lt.s32.totalorder %s26, 2
      // Predicated region
      $region77: #{mnist_autoencoder.1} parent=5 // pred_check
        %p478 = pneg %p477
      $region78: #{mnist_autoencoder.1} parent=5 // pred_check_branch
        %480 = sbr.rel (%p478) target = $region80
      $region79: #{mnist_autoencoder.1} parent=5 // pred_region
        // Predicated region
        $region81: #{mnist_autoencoder.1} parent=79 // pred_check
          %p481 = pneg %p46
        $region82: #{mnist_autoencoder.1} parent=79 // pred_check_branch
          %483 = sbr.rel (%p481) target = $region84
        $region83: #{mnist_autoencoder.1} parent=79 // pred_region
          %p484 = scmp.lt.s32.totalorder %s26, 1
          %s485 = scalar_select %p484, %s26, 1
          %s486 = smul.addr %s485, 7
          %s487 = smul.addr %s486, 4
          %s488 = scalar_lea.vmem %s0, %s487
        $region84: #{mnist_autoencoder.1} parent=79 // pred_fallthru
          _
      $region80: #{mnist_autoencoder.1} parent=5 // pred_fallthru
        _
      %p489 = scmp.le.s32.totalorder 1, %s26
      %p490 = scmp.lt.s32.totalorder %s26, 3
      %p491 = pnand %p489, %p490
      %p492 = pneg %p491
      // Predicated region
      $region85: #{mnist_autoencoder.1} parent=5 // pred_check
        _
      $region86: #{mnist_autoencoder.1} parent=5 // pred_check_branch
        %494 = sbr.rel (%p491) target = $region88
      $region87: #{mnist_autoencoder.1} parent=5 // pred_region
        %s495 = ssub.s32 %s26, 1
        %p496 = scmp.lt.s32.totalorder %s31, 1
        %s497 = scalar_select %p496, %s31, 1
        %s498 = smul.addr %s497, 7
        %s499 = smul.addr %s498, 4
        %s500 = scalar_lea.vmem %s0, %s499
        %p501 = pneg %p52
        %p502 = pneg %p49
        %p503 = pneg %p73
        %p504 = pneg %p70
        %p505 = pneg %p94
        %p506 = pneg %p91
        %p507 = pneg %p115
        %p508 = pneg %p112
        %p509 = pneg %p136
        %p510 = pneg %p133
        %p511 = pneg %p157
        %p512 = pneg %p154
        %p513 = pneg %p178
        %p514 = pneg %p175
        %p515 = pneg %p199
        %p516 = pneg %p196
        %p517 = pneg %p220
        %p518 = pneg %p217
        %p519 = pneg %p241
        %p520 = pneg %p238
        %p521 = pneg %p262
        %p522 = pneg %p259
        %p523 = pneg %p283
        %p524 = pneg %p280
        %p525 = pneg %p304
        %p526 = pneg %p301
        %p527 = pneg %p325
        %p528 = pneg %p322
        %p529 = pneg %p346
        %p530 = pneg %p343
        %p531 = pneg %p367
        %p532 = pneg %p364
        %p533 = pneg %p388
        %p534 = pneg %p385
        %p535 = pneg %p414
        %p536 = pneg %p411
        %s537 = sand.u32 %s401, 1
        %s538 = scalar_lea.sflag [#allocation3], %s537
        %s539 = sand.u32 %s401, 1
        %s540 = smul.addr %s539, 56
        %s541 = scalar_lea.vmem [#allocation2], %s540
        %p542 = scmp.lt.s32.totalorder %s31, 1
        %s543 = scalar_select %p542, %s31, 1
        %s544 = smul.addr %s543, 7
        %s545 = smul.addr %s544, 4
        %s546 = scalar_lea.vmem %s0, %s545
        %v548 = vld [vmem:[%s546] sm:$0xff]
        %v549 = vld [vmem:[%s546 + $0x8] sm:$0xff]
        %v550 = vld [vmem:[%s546 + $0x10] sm:$0xff]
        %v551 = vld [vmem:[%s546 + $0x18] sm:$0xf]
        %v552 = vld [vmem:[%s1] sm:$0xff]
        %v553 = vld [vmem:[%s1 + $0x8] sm:$0xff]
        %v554 = vld [vmem:[%s1 + $0x10] sm:$0xff]
        %v555 = vld [vmem:[%s1 + $0x18] sm:$0xff]
        %v556 = vld [vmem:[%s1 + $0x20] sm:$0xff]
        %v557 = vld [vmem:[%s1 + $0x28] sm:$0xff]
        %v558 = vld [vmem:[%s1 + $0x30] sm:$0xff]
        %v559 = vld [vmem:[%s1 + $0x38] sm:$0xff]
        %v560 = vld [vmem:[%s1 + $0x40] sm:$0xff]
        %v561 = vld [vmem:[%s1 + $0x48] sm:$0xff]
        %v562 = vld [vmem:[%s1 + $0x50] sm:$0xff]
        %v563 = vld [vmem:[%s1 + $0x58] sm:$0xff]
        %v564 = vld [vmem:[%s1 + $0x60] sm:$0xff]
        %v565 = vld [vmem:[%s1 + $0x68] sm:$0xff]
        %v566 = vld [vmem:[%s1 + $0x70] sm:$0xff]
        %v567 = vld [vmem:[%s1 + $0x78] sm:$0xff]
        %v568 = vld [vmem:[%s1 + $0x80] sm:$0xff]
        %v569 = vld [vmem:[%s1 + $0x88] sm:$0xff]
        %v570 = vld [vmem:[%s1 + $0x90] sm:$0xff]
        %v571 = vld [vmem:[%s1 + $0x98] sm:$0xff]
        %v572 = vld [vmem:[%s1 + $0xa0] sm:$0xff]
        %v573 = vld [vmem:[%s1 + $0xa8] sm:$0xff]
        %v574 = vld [vmem:[%s1 + $0xb0] sm:$0xff]
        %v575 = vld [vmem:[%s1 + $0xb8] sm:$0xff]
        %v576 = vld [vmem:[%s1 + $0xc0] sm:$0xff]
        %v577 = vld [vmem:[%s1 + $0xc8] sm:$0xff]
        %v578 = vld [vmem:[%s1 + $0xd0] sm:$0xff]
        %v579 = vld [vmem:[%s1 + $0xd8] sm:$0xff]
        %v580 = vld [vmem:[%s1 + $0xe0] sm:$0xff]
        %v581 = vld [vmem:[%s1 + $0xe8] sm:$0xff]
        %v582 = vld [vmem:[%s1 + $0xf0] sm:$0xff]
        %v583 = vld [vmem:[%s1 + $0xf8] sm:$0xff]
        %v584 = vld [vmem:[%s1 + $0x100] sm:$0xff]
        %v585 = vld [vmem:[%s1 + $0x108] sm:$0xff]
        %v586 = vld [vmem:[%s1 + $0x110] sm:$0xff]
        %v587 = vld [vmem:[%s1 + $0x118] sm:$0xff]
        %v588 = vld [vmem:[%s1 + $0x120] sm:$0xff]
        %v589 = vld [vmem:[%s1 + $0x128] sm:$0xff]
        %v590 = vld [vmem:[%s1 + $0x130] sm:$0xff]
        %v591 = vld [vmem:[%s1 + $0x138] sm:$0xff]
        %v592 = vld [vmem:[%s1 + $0x140] sm:$0xff]
        %v593 = vld [vmem:[%s1 + $0x148] sm:$0xff]
        %v594 = vld [vmem:[%s1 + $0x150] sm:$0xff]
        %v595 = vld [vmem:[%s1 + $0x158] sm:$0xff]
        %v596 = vld [vmem:[%s1 + $0x160] sm:$0xff]
        %v597 = vld [vmem:[%s1 + $0x168] sm:$0xff]
        %v598 = vld [vmem:[%s1 + $0x170] sm:$0xff]
        %v599 = vld [vmem:[%s1 + $0x178] sm:$0xff]
        %v600 = vld [vmem:[%s1 + $0x180] sm:$0xff]
        %v601 = vld [vmem:[%s1 + $0x188] sm:$0xff]
        %v602 = vld [vmem:[%s1 + $0x190] sm:$0xff]
        %v603 = vld [vmem:[%s1 + $0x198] sm:$0xff]
        %v604 = vld [vmem:[%s1 + $0x1a0] sm:$0xff]
        %v605 = vld [vmem:[%s1 + $0x1a8] sm:$0xff]
        %v606 = vld [vmem:[%s1 + $0x1b0] sm:$0xff]
        %v607 = vld [vmem:[%s1 + $0x1b8] sm:$0xff]
        %v608 = vld [vmem:[%s1 + $0x1c0] sm:$0xff]
        %v609 = vld [vmem:[%s1 + $0x1c8] sm:$0xff]
        %v610 = vld [vmem:[%s1 + $0x1d0] sm:$0xff]
        %v611 = vld [vmem:[%s1 + $0x1d8] sm:$0xff]
        %v612 = vld [vmem:[%s1 + $0x1e0] sm:$0xff]
        %v613 = vld [vmem:[%s1 + $0x1e8] sm:$0xff]
        %v614 = vld [vmem:[%s1 + $0x1f0] sm:$0xff]
        %v615 = vld [vmem:[%s1 + $0x1f8] sm:$0xff]
        %v616 = vld [vmem:[%s1 + $0x200] sm:$0xff]
        %v617 = vld [vmem:[%s1 + $0x208] sm:$0xff]
        %v618 = vld [vmem:[%s1 + $0x210] sm:$0xff]
        %v619 = vld [vmem:[%s1 + $0x218] sm:$0xff]
        %v620 = vld [vmem:[%s1 + $0x220] sm:$0xff]
        %v621 = vld [vmem:[%s1 + $0x228] sm:$0xff]
        %v622 = vld [vmem:[%s1 + $0x230] sm:$0xff]
        %v623 = vld [vmem:[%s1 + $0x238] sm:$0xff]
        %v624 = vld [vmem:[%s1 + $0x240] sm:$0xff]
        %v625 = vld [vmem:[%s1 + $0x248] sm:$0xff]
        %v626 = vld [vmem:[%s1 + $0x250] sm:$0xff]
        %v627 = vld [vmem:[%s1 + $0x258] sm:$0xff]
        %v628 = vld [vmem:[%s1 + $0x260] sm:$0xff]
        %v629 = vld [vmem:[%s1 + $0x268] sm:$0xff]
        %v630 = vld [vmem:[%s1 + $0x270] sm:$0xff]
        %v631 = vld [vmem:[%s1 + $0x278] sm:$0xff]
        %v632 = vld [vmem:[%s1 + $0x280] sm:$0xff]
        %v633 = vld [vmem:[%s1 + $0x288] sm:$0xff]
        %v634 = vld [vmem:[%s1 + $0x290] sm:$0xff]
        %v635 = vld [vmem:[%s1 + $0x298] sm:$0xff]
        %v636 = vld [vmem:[%s1 + $0x2a0] sm:$0xff]
        %v637 = vld [vmem:[%s1 + $0x2a8] sm:$0xff]
        %v638 = vld [vmem:[%s1 + $0x2b0] sm:$0xff]
        %v639 = vld [vmem:[%s1 + $0x2b8] sm:$0xff]
        %v640 = vld [vmem:[%s1 + $0x2c0] sm:$0xff]
        %v641 = vld [vmem:[%s1 + $0x2c8] sm:$0xff]
        %v642 = vld [vmem:[%s1 + $0x2d0] sm:$0xff]
        %v643 = vld [vmem:[%s1 + $0x2d8] sm:$0xff]
        %v644 = vld [vmem:[%s1 + $0x2e0] sm:$0xff]
        %v645 = vld [vmem:[%s1 + $0x2e8] sm:$0xff]
        %v646 = vld [vmem:[%s1 + $0x2f0] sm:$0xff]
        %v647 = vld [vmem:[%s1 + $0x2f8] sm:$0xff]
        %v648 = vld [vmem:[%s1 + $0x300] sm:$0xff]
        %v649 = vld [vmem:[%s1 + $0x308] sm:$0xff]
        %v650 = vld [vmem:[%s1 + $0x310] sm:$0xff]
        %v651 = vld [vmem:[%s1 + $0x318] sm:$0xff]
        %v652 = vld [vmem:[%s1 + $0x320] sm:$0xff]
        %v653 = vld [vmem:[%s1 + $0x328] sm:$0xff]
        %v654 = vld [vmem:[%s1 + $0x330] sm:$0xff]
        %v655 = vld [vmem:[%s1 + $0x338] sm:$0xff]
        %v656 = vld [vmem:[%s1 + $0x340] sm:$0xff]
        %v657 = vld [vmem:[%s1 + $0x348] sm:$0xff]
        %v658 = vld [vmem:[%s1 + $0x350] sm:$0xff]
        %v659 = vld [vmem:[%s1 + $0x358] sm:$0xff]
        %v660 = vld [vmem:[%s1 + $0x360] sm:$0xff]
        %v661 = vld [vmem:[%s1 + $0x368] sm:$0xff]
        %v662 = vld [vmem:[%s1 + $0x370] sm:$0xff]
        %v663 = vld [vmem:[%s1 + $0x378] sm:$0xff]
        %v664 = vld [vmem:[%s1 + $0x380] sm:$0xff]
        %v665 = vld [vmem:[%s1 + $0x388] sm:$0xff]
        %v666 = vld [vmem:[%s1 + $0x390] sm:$0xff]
        %v667 = vld [vmem:[%s1 + $0x398] sm:$0xff]
        %v668 = vld [vmem:[%s1 + $0x3a0] sm:$0xff]
        %v669 = vld [vmem:[%s1 + $0x3a8] sm:$0xff]
        %v670 = vld [vmem:[%s1 + $0x3b0] sm:$0xff]
        %v671 = vld [vmem:[%s1 + $0x3b8] sm:$0xff]
        %v672 = vld [vmem:[%s1 + $0x3c0] sm:$0xff]
        %v673 = vld [vmem:[%s1 + $0x3c8] sm:$0xff]
        %v674 = vld [vmem:[%s1 + $0x3d0] sm:$0xff]
        %v675 = vld [vmem:[%s1 + $0x3d8] sm:$0xff]
        %v676 = vld [vmem:[%s1 + $0x3e0] sm:$0xff]
        %v677 = vld [vmem:[%s1 + $0x3e8] sm:$0xff]
        %v678 = vld [vmem:[%s1 + $0x3f0] sm:$0xff]
        %v679 = vld [vmem:[%s1 + $0x3f8] sm:$0xff]
        %v680 = vld [vmem:[%s1 + $0x400] sm:$0xff]
        %v681 = vld [vmem:[%s1 + $0x408] sm:$0xff]
        %v682 = vld [vmem:[%s1 + $0x410] sm:$0xff]
        %v683 = vld [vmem:[%s1 + $0x418] sm:$0xff]
        %v684 = vld [vmem:[%s1 + $0x420] sm:$0xff]
        %v685 = vld [vmem:[%s1 + $0x428] sm:$0xff]
        %v686 = vld [vmem:[%s1 + $0x430] sm:$0xff]
        %v687 = vld [vmem:[%s1 + $0x438] sm:$0xff]
        %v688 = vld [vmem:[%s1 + $0x440] sm:$0xff]
        %v689 = vld [vmem:[%s1 + $0x448] sm:$0xff]
        %v690 = vld [vmem:[%s1 + $0x450] sm:$0xff]
        %v691 = vld [vmem:[%s1 + $0x458] sm:$0xff]
        %v692 = vld [vmem:[%s1 + $0x460] sm:$0xff]
        %v693 = vld [vmem:[%s1 + $0x468] sm:$0xff]
        %v694 = vld [vmem:[%s1 + $0x470] sm:$0xff]
        %v695 = vld [vmem:[%s1 + $0x478] sm:$0xff]
        %v696 = vld [vmem:[%s1 + $0x480] sm:$0xff]
        %v697 = vld [vmem:[%s1 + $0x488] sm:$0xff]
        %v698 = vld [vmem:[%s1 + $0x490] sm:$0xff]
        %v699 = vld [vmem:[%s1 + $0x498] sm:$0xff]
        %v700 = vld [vmem:[%s1 + $0x4a0] sm:$0xff]
        %v701 = vld [vmem:[%s1 + $0x4a8] sm:$0xff]
        %v702 = vld [vmem:[%s1 + $0x4b0] sm:$0xff]
        %v703 = vld [vmem:[%s1 + $0x4b8] sm:$0xff]
        %v704 = vld [vmem:[%s1 + $0x4c0] sm:$0xff]
        %v705 = vld [vmem:[%s1 + $0x4c8] sm:$0xff]
        %v706 = vld [vmem:[%s1 + $0x4d0] sm:$0xff]
        %v707 = vld [vmem:[%s1 + $0x4d8] sm:$0xff]
        %v708 = vld [vmem:[%s1 + $0x4e0] sm:$0xff]
        %v709 = vld [vmem:[%s1 + $0x4e8] sm:$0xff]
        %v710 = vld [vmem:[%s1 + $0x4f0] sm:$0xff]
        %v711 = vld [vmem:[%s1 + $0x4f8] sm:$0xff]
        %v712 = vld [vmem:[%s1 + $0x500] sm:$0xff]
        %v713 = vld [vmem:[%s1 + $0x508] sm:$0xff]
        %v714 = vld [vmem:[%s1 + $0x510] sm:$0xff]
        %v715 = vld [vmem:[%s1 + $0x518] sm:$0xff]
        %v716 = vld [vmem:[%s1 + $0x520] sm:$0xff]
        %v717 = vld [vmem:[%s1 + $0x528] sm:$0xff]
        %v718 = vld [vmem:[%s1 + $0x530] sm:$0xff]
        %v719 = vld [vmem:[%s1 + $0x538] sm:$0xff]
        %v720 = vld [vmem:[%s1 + $0x540] sm:$0xff]
        %v721 = vld [vmem:[%s1 + $0x548] sm:$0xff]
        %v722 = vld [vmem:[%s1 + $0x550] sm:$0xff]
        %v723 = vld [vmem:[%s1 + $0x558] sm:$0xff]
        %v724 = vld [vmem:[%s1 + $0x560] sm:$0xff]
        %v725 = vld [vmem:[%s1 + $0x568] sm:$0xff]
        %v726 = vld [vmem:[%s1 + $0x570] sm:$0xff]
        %v727 = vld [vmem:[%s1 + $0x578] sm:$0xff]
        %v728 = vld [vmem:[%s1 + $0x580] sm:$0xff]
        %v729 = vld [vmem:[%s1 + $0x588] sm:$0xff]
        %v730 = vld [vmem:[%s1 + $0x590] sm:$0xff]
        %v731 = vld [vmem:[%s1 + $0x598] sm:$0xff]
        %v732 = vld [vmem:[%s1 + $0x5a0] sm:$0xff]
        %v733 = vld [vmem:[%s1 + $0x5a8] sm:$0xff]
        %v734 = vld [vmem:[%s1 + $0x5b0] sm:$0xff]
        %v735 = vld [vmem:[%s1 + $0x5b8] sm:$0xff]
        %v736 = vld [vmem:[%s1 + $0x5c0] sm:$0xff]
        %v737 = vld [vmem:[%s1 + $0x5c8] sm:$0xff]
        %v738 = vld [vmem:[%s1 + $0x5d0] sm:$0xff]
        %v739 = vld [vmem:[%s1 + $0x5d8] sm:$0xff]
        %v740 = vld [vmem:[%s1 + $0x5e0] sm:$0xff]
        %v741 = vld [vmem:[%s1 + $0x5e8] sm:$0xff]
        %v742 = vld [vmem:[%s1 + $0x5f0] sm:$0xff]
        %v743 = vld [vmem:[%s1 + $0x5f8] sm:$0xff]
        %v744 = vld [vmem:[%s1 + $0x600] sm:$0xff]
        %v745 = vld [vmem:[%s1 + $0x608] sm:$0xff]
        %v746 = vld [vmem:[%s1 + $0x610] sm:$0xff]
        %v747 = vld [vmem:[%s1 + $0x618] sm:$0xff]
        %v748 = vld [vmem:[%s1 + $0x620] sm:$0xff]
        %v749 = vld [vmem:[%s1 + $0x628] sm:$0xff]
        %v750 = vld [vmem:[%s1 + $0x630] sm:$0xff]
        %v751 = vld [vmem:[%s1 + $0x638] sm:$0xff]
        %v752 = vld [vmem:[%s1 + $0x640] sm:$0xff]
        %v753 = vld [vmem:[%s1 + $0x648] sm:$0xff]
        %v754 = vld [vmem:[%s1 + $0x650] sm:$0xff]
        %v755 = vld [vmem:[%s1 + $0x658] sm:$0xff]
        %v756 = vld [vmem:[%s1 + $0x660] sm:$0xff]
        %v757 = vld [vmem:[%s1 + $0x668] sm:$0xff]
        %v758 = vld [vmem:[%s1 + $0x670] sm:$0xff]
        %v759 = vld [vmem:[%s1 + $0x678] sm:$0xff]
        %v760 = vld [vmem:[%s1 + $0x680] sm:$0xff]
        %v761 = vld [vmem:[%s1 + $0x688] sm:$0xff]
        %v762 = vld [vmem:[%s1 + $0x690] sm:$0xff]
        %v763 = vld [vmem:[%s1 + $0x698] sm:$0xff]
        %v764 = vld [vmem:[%s1 + $0x6a0] sm:$0xff]
        %v765 = vld [vmem:[%s1 + $0x6a8] sm:$0xff]
        %v766 = vld [vmem:[%s1 + $0x6b0] sm:$0xff]
        %v767 = vld [vmem:[%s1 + $0x6b8] sm:$0xff]
        %v768 = vld [vmem:[%s1 + $0x6c0] sm:$0xff]
        %v769 = vld [vmem:[%s1 + $0x6c8] sm:$0xff]
        %v770 = vld [vmem:[%s1 + $0x6d0] sm:$0xff]
        %v771 = vld [vmem:[%s1 + $0x6d8] sm:$0xff]
        %v772 = vld [vmem:[%s1 + $0x6e0] sm:$0xff]
        %v773 = vld [vmem:[%s1 + $0x6e8] sm:$0xff]
        %v774 = vld [vmem:[%s1 + $0x6f0] sm:$0xff]
        %v775 = vld [vmem:[%s1 + $0x6f8] sm:$0xff]
        %v776 = vld [vmem:[%s2] sm:$0xf]
        %v778 = vlaneseq
        %v779 = vshrl.u32 %v778, 7
        %v780 = vsub.s32 0, %v779
        %v781 = vrot.slane %v776, %v780
        %v782 = vlaneseq
        %v783 = vshrl.u32 %v782, 7
        %v784 = vsub.s32 1, %v783
        %v785 = vrot.slane %v776, %v784
        %v786 = vlaneseq
        %v787 = vshrl.u32 %v786, 7
        %v788 = vsub.s32 2, %v787
        %v789 = vrot.slane %v776, %v788
        %v790 = vlaneseq
        %v791 = vshrl.u32 %v790, 7
        %v792 = vsub.s32 3, %v791
        %v793 = vrot.slane %v776, %v792
        %v802 = vunpack.c.l.b16 %v548
        %v803 = vunpack.c.h.b16 %v548
        %v804 = vunpack.c.l.b16 %v549
        %v805 = vunpack.c.h.b16 %v549
        %v806 = vunpack.c.l.b16 %v550
        %v807 = vunpack.c.h.b16 %v550
        %v808 = vunpack.c.l.b16 %v551
        %v809 = vpack.c.b16 %v802, %v802
        %v810 = vpack.c.b16 %v803, %v803
        %v811 = vpack.c.b16 %v804, %v804
        %v812 = vpack.c.b16 %v805, %v805
        %v813 = vpack.c.b16 %v806, %v806
        %v814 = vpack.c.b16 %v807, %v807
        %v815 = vpack.c.b16 %v808, %v808
        %v1047 = vunpack.c.l.b16 %v552
        %v1048 = vunpack.c.h.b16 %v552
        %v1049 = vunpack.c.l.b16 %v553
        %v1050 = vunpack.c.h.b16 %v553
        %v1051 = vunpack.c.l.b16 %v554
        %v1052 = vunpack.c.h.b16 %v554
        %v1053 = vunpack.c.l.b16 %v555
        %v1054 = vunpack.c.h.b16 %v555
        %v1055 = vunpack.c.l.b16 %v556
        %v1056 = vunpack.c.h.b16 %v556
        %v1057 = vunpack.c.l.b16 %v557
        %v1058 = vunpack.c.h.b16 %v557
        %v1059 = vunpack.c.l.b16 %v558
        %v1060 = vunpack.c.h.b16 %v558
        %v1061 = vunpack.c.l.b16 %v559
        %v1062 = vunpack.c.h.b16 %v559
        %v1063 = vunpack.c.l.b16 %v560
        %v1064 = vunpack.c.h.b16 %v560
        %v1065 = vunpack.c.l.b16 %v561
        %v1066 = vunpack.c.h.b16 %v561
        %v1067 = vunpack.c.l.b16 %v562
        %v1068 = vunpack.c.h.b16 %v562
        %v1069 = vunpack.c.l.b16 %v563
        %v1070 = vunpack.c.h.b16 %v563
        %v1071 = vunpack.c.l.b16 %v564
        %v1072 = vunpack.c.h.b16 %v564
        %v1073 = vunpack.c.l.b16 %v565
        %v1074 = vunpack.c.h.b16 %v565
        %v1075 = vunpack.c.l.b16 %v566
        %v1076 = vunpack.c.h.b16 %v566
        %v1077 = vunpack.c.l.b16 %v567
        %v1078 = vunpack.c.h.b16 %v567
        %v1079 = vunpack.c.l.b16 %v568
        %v1080 = vunpack.c.h.b16 %v568
        %v1081 = vunpack.c.l.b16 %v569
        %v1082 = vunpack.c.h.b16 %v569
        %v1083 = vunpack.c.l.b16 %v570
        %v1084 = vunpack.c.h.b16 %v570
        %v1085 = vunpack.c.l.b16 %v571
        %v1086 = vunpack.c.h.b16 %v571
        %v1087 = vunpack.c.l.b16 %v572
        %v1088 = vunpack.c.h.b16 %v572
        %v1089 = vunpack.c.l.b16 %v573
        %v1090 = vunpack.c.h.b16 %v573
        %v1091 = vunpack.c.l.b16 %v574
        %v1092 = vunpack.c.h.b16 %v574
        %v1093 = vunpack.c.l.b16 %v575
        %v1094 = vunpack.c.h.b16 %v575
        %v1095 = vunpack.c.l.b16 %v576
        %v1096 = vunpack.c.h.b16 %v576
        %v1097 = vunpack.c.l.b16 %v577
        %v1098 = vunpack.c.h.b16 %v577
        %v1099 = vunpack.c.l.b16 %v578
        %v1100 = vunpack.c.h.b16 %v578
        %v1101 = vunpack.c.l.b16 %v579
        %v1102 = vunpack.c.h.b16 %v579
        %v1103 = vunpack.c.l.b16 %v580
        %v1104 = vunpack.c.h.b16 %v580
        %v1105 = vunpack.c.l.b16 %v581
        %v1106 = vunpack.c.h.b16 %v581
        %v1107 = vunpack.c.l.b16 %v582
        %v1108 = vunpack.c.h.b16 %v582
        %v1109 = vunpack.c.l.b16 %v583
        %v1110 = vunpack.c.h.b16 %v583
        %v1111 = vunpack.c.l.b16 %v584
        %v1112 = vunpack.c.h.b16 %v584
        %v1113 = vunpack.c.l.b16 %v585
        %v1114 = vunpack.c.h.b16 %v585
        %v1115 = vunpack.c.l.b16 %v586
        %v1116 = vunpack.c.h.b16 %v586
        %v1117 = vunpack.c.l.b16 %v587
        %v1118 = vunpack.c.h.b16 %v587
        %v1119 = vunpack.c.l.b16 %v588
        %v1120 = vunpack.c.h.b16 %v588
        %v1121 = vunpack.c.l.b16 %v589
        %v1122 = vunpack.c.h.b16 %v589
        %v1123 = vunpack.c.l.b16 %v590
        %v1124 = vunpack.c.h.b16 %v590
        %v1125 = vunpack.c.l.b16 %v591
        %v1126 = vunpack.c.h.b16 %v591
        %v1127 = vunpack.c.l.b16 %v592
        %v1128 = vunpack.c.h.b16 %v592
        %v1129 = vunpack.c.l.b16 %v593
        %v1130 = vunpack.c.h.b16 %v593
        %v1131 = vunpack.c.l.b16 %v594
        %v1132 = vunpack.c.h.b16 %v594
        %v1133 = vunpack.c.l.b16 %v595
        %v1134 = vunpack.c.h.b16 %v595
        %v1135 = vunpack.c.l.b16 %v596
        %v1136 = vunpack.c.h.b16 %v596
        %v1137 = vunpack.c.l.b16 %v597
        %v1138 = vunpack.c.h.b16 %v597
        %v1139 = vunpack.c.l.b16 %v598
        %v1140 = vunpack.c.h.b16 %v598
        %v1141 = vunpack.c.l.b16 %v599
        %v1142 = vunpack.c.h.b16 %v599
        %v1143 = vunpack.c.l.b16 %v600
        %v1144 = vunpack.c.h.b16 %v600
        %v1145 = vunpack.c.l.b16 %v601
        %v1146 = vunpack.c.h.b16 %v601
        %v1147 = vunpack.c.l.b16 %v602
        %v1148 = vunpack.c.h.b16 %v602
        %v1149 = vunpack.c.l.b16 %v603
        %v1150 = vunpack.c.h.b16 %v603
        %v1151 = vunpack.c.l.b16 %v604
        %v1152 = vunpack.c.h.b16 %v604
        %v1153 = vunpack.c.l.b16 %v605
        %v1154 = vunpack.c.h.b16 %v605
        %v1155 = vunpack.c.l.b16 %v606
        %v1156 = vunpack.c.h.b16 %v606
        %v1157 = vunpack.c.l.b16 %v607
        %v1158 = vunpack.c.h.b16 %v607
        %v1159 = vunpack.c.l.b16 %v608
        %v1160 = vunpack.c.h.b16 %v608
        %v1161 = vunpack.c.l.b16 %v609
        %v1162 = vunpack.c.h.b16 %v609
        %v1163 = vunpack.c.l.b16 %v610
        %v1164 = vunpack.c.h.b16 %v610
        %v1165 = vunpack.c.l.b16 %v611
        %v1166 = vunpack.c.h.b16 %v611
        %v1167 = vunpack.c.l.b16 %v612
        %v1168 = vunpack.c.h.b16 %v612
        %v1169 = vunpack.c.l.b16 %v613
        %v1170 = vunpack.c.h.b16 %v613
        %v1171 = vunpack.c.l.b16 %v614
        %v1172 = vunpack.c.h.b16 %v614
        %v1173 = vunpack.c.l.b16 %v615
        %v1174 = vunpack.c.h.b16 %v615
        %v1175 = vunpack.c.l.b16 %v616
        %v1176 = vunpack.c.h.b16 %v616
        %v1177 = vunpack.c.l.b16 %v617
        %v1178 = vunpack.c.h.b16 %v617
        %v1179 = vunpack.c.l.b16 %v618
        %v1180 = vunpack.c.h.b16 %v618
        %v1181 = vunpack.c.l.b16 %v619
        %v1182 = vunpack.c.h.b16 %v619
        %v1183 = vunpack.c.l.b16 %v620
        %v1184 = vunpack.c.h.b16 %v620
        %v1185 = vunpack.c.l.b16 %v621
        %v1186 = vunpack.c.h.b16 %v621
        %v1187 = vunpack.c.l.b16 %v622
        %v1188 = vunpack.c.h.b16 %v622
        %v1189 = vunpack.c.l.b16 %v623
        %v1190 = vunpack.c.h.b16 %v623
        %v1191 = vunpack.c.l.b16 %v624
        %v1192 = vunpack.c.h.b16 %v624
        %v1193 = vunpack.c.l.b16 %v625
        %v1194 = vunpack.c.h.b16 %v625
        %v1195 = vunpack.c.l.b16 %v626
        %v1196 = vunpack.c.h.b16 %v626
        %v1197 = vunpack.c.l.b16 %v627
        %v1198 = vunpack.c.h.b16 %v627
        %v1199 = vunpack.c.l.b16 %v628
        %v1200 = vunpack.c.h.b16 %v628
        %v1201 = vunpack.c.l.b16 %v629
        %v1202 = vunpack.c.h.b16 %v629
        %v1203 = vunpack.c.l.b16 %v630
        %v1204 = vunpack.c.h.b16 %v630
        %v1205 = vunpack.c.l.b16 %v631
        %v1206 = vunpack.c.h.b16 %v631
        %v1207 = vunpack.c.l.b16 %v632
        %v1208 = vunpack.c.h.b16 %v632
        %v1209 = vunpack.c.l.b16 %v633
        %v1210 = vunpack.c.h.b16 %v633
        %v1211 = vunpack.c.l.b16 %v634
        %v1212 = vunpack.c.h.b16 %v634
        %v1213 = vunpack.c.l.b16 %v635
        %v1214 = vunpack.c.h.b16 %v635
        %v1215 = vunpack.c.l.b16 %v636
        %v1216 = vunpack.c.h.b16 %v636
        %v1217 = vunpack.c.l.b16 %v637
        %v1218 = vunpack.c.h.b16 %v637
        %v1219 = vunpack.c.l.b16 %v638
        %v1220 = vunpack.c.h.b16 %v638
        %v1221 = vunpack.c.l.b16 %v639
        %v1222 = vunpack.c.h.b16 %v639
        %v1223 = vunpack.c.l.b16 %v640
        %v1224 = vunpack.c.h.b16 %v640
        %v1225 = vunpack.c.l.b16 %v641
        %v1226 = vunpack.c.h.b16 %v641
        %v1227 = vunpack.c.l.b16 %v642
        %v1228 = vunpack.c.h.b16 %v642
        %v1229 = vunpack.c.l.b16 %v643
        %v1230 = vunpack.c.h.b16 %v643
        %v1231 = vunpack.c.l.b16 %v644
        %v1232 = vunpack.c.h.b16 %v644
        %v1233 = vunpack.c.l.b16 %v645
        %v1234 = vunpack.c.h.b16 %v645
        %v1235 = vunpack.c.l.b16 %v646
        %v1236 = vunpack.c.h.b16 %v646
        %v1237 = vunpack.c.l.b16 %v647
        %v1238 = vunpack.c.h.b16 %v647
        %v1239 = vunpack.c.l.b16 %v648
        %v1240 = vunpack.c.h.b16 %v648
        %v1241 = vunpack.c.l.b16 %v649
        %v1242 = vunpack.c.h.b16 %v649
        %v1243 = vunpack.c.l.b16 %v650
        %v1244 = vunpack.c.h.b16 %v650
        %v1245 = vunpack.c.l.b16 %v651
        %v1246 = vunpack.c.h.b16 %v651
        %v1247 = vunpack.c.l.b16 %v652
        %v1248 = vunpack.c.h.b16 %v652
        %v1249 = vunpack.c.l.b16 %v653
        %v1250 = vunpack.c.h.b16 %v653
        %v1251 = vunpack.c.l.b16 %v654
        %v1252 = vunpack.c.h.b16 %v654
        %v1253 = vunpack.c.l.b16 %v655
        %v1254 = vunpack.c.h.b16 %v655
        %v1255 = vunpack.c.l.b16 %v656
        %v1256 = vunpack.c.h.b16 %v656
        %v1257 = vunpack.c.l.b16 %v657
        %v1258 = vunpack.c.h.b16 %v657
        %v1259 = vunpack.c.l.b16 %v658
        %v1260 = vunpack.c.h.b16 %v658
        %v1261 = vunpack.c.l.b16 %v659
        %v1262 = vunpack.c.h.b16 %v659
        %v1263 = vunpack.c.l.b16 %v660
        %v1264 = vunpack.c.h.b16 %v660
        %v1265 = vunpack.c.l.b16 %v661
        %v1266 = vunpack.c.h.b16 %v661
        %v1267 = vunpack.c.l.b16 %v662
        %v1268 = vunpack.c.h.b16 %v662
        %v1269 = vunpack.c.l.b16 %v663
        %v1270 = vunpack.c.h.b16 %v663
        %v1271 = vunpack.c.l.b16 %v664
        %v1272 = vunpack.c.h.b16 %v664
        %v1273 = vunpack.c.l.b16 %v665
        %v1274 = vunpack.c.h.b16 %v665
        %v1275 = vunpack.c.l.b16 %v666
        %v1276 = vunpack.c.h.b16 %v666
        %v1277 = vunpack.c.l.b16 %v667
        %v1278 = vunpack.c.h.b16 %v667
        %v1279 = vunpack.c.l.b16 %v668
        %v1280 = vunpack.c.h.b16 %v668
        %v1281 = vunpack.c.l.b16 %v669
        %v1282 = vunpack.c.h.b16 %v669
        %v1283 = vunpack.c.l.b16 %v670
        %v1284 = vunpack.c.h.b16 %v670
        %v1285 = vunpack.c.l.b16 %v671
        %v1286 = vunpack.c.h.b16 %v671
        %v1287 = vunpack.c.l.b16 %v672
        %v1288 = vunpack.c.h.b16 %v672
        %v1289 = vunpack.c.l.b16 %v673
        %v1290 = vunpack.c.h.b16 %v673
        %v1291 = vunpack.c.l.b16 %v674
        %v1292 = vunpack.c.h.b16 %v674
        %v1293 = vunpack.c.l.b16 %v675
        %v1294 = vunpack.c.h.b16 %v675
        %v1295 = vunpack.c.l.b16 %v676
        %v1296 = vunpack.c.h.b16 %v676
        %v1297 = vunpack.c.l.b16 %v677
        %v1298 = vunpack.c.h.b16 %v677
        %v1299 = vunpack.c.l.b16 %v678
        %v1300 = vunpack.c.h.b16 %v678
        %v1301 = vunpack.c.l.b16 %v679
        %v1302 = vunpack.c.h.b16 %v679
        %v1303 = vunpack.c.l.b16 %v680
        %v1304 = vunpack.c.h.b16 %v680
        %v1305 = vunpack.c.l.b16 %v681
        %v1306 = vunpack.c.h.b16 %v681
        %v1307 = vunpack.c.l.b16 %v682
        %v1308 = vunpack.c.h.b16 %v682
        %v1309 = vunpack.c.l.b16 %v683
        %v1310 = vunpack.c.h.b16 %v683
        %v1311 = vunpack.c.l.b16 %v684
        %v1312 = vunpack.c.h.b16 %v684
        %v1313 = vunpack.c.l.b16 %v685
        %v1314 = vunpack.c.h.b16 %v685
        %v1315 = vunpack.c.l.b16 %v686
        %v1316 = vunpack.c.h.b16 %v686
        %v1317 = vunpack.c.l.b16 %v687
        %v1318 = vunpack.c.h.b16 %v687
        %v1319 = vunpack.c.l.b16 %v688
        %v1320 = vunpack.c.h.b16 %v688
        %v1321 = vunpack.c.l.b16 %v689
        %v1322 = vunpack.c.h.b16 %v689
        %v1323 = vunpack.c.l.b16 %v690
        %v1324 = vunpack.c.h.b16 %v690
        %v1325 = vunpack.c.l.b16 %v691
        %v1326 = vunpack.c.h.b16 %v691
        %v1327 = vunpack.c.l.b16 %v692
        %v1328 = vunpack.c.h.b16 %v692
        %v1329 = vunpack.c.l.b16 %v693
        %v1330 = vunpack.c.h.b16 %v693
        %v1331 = vunpack.c.l.b16 %v694
        %v1332 = vunpack.c.h.b16 %v694
        %v1333 = vunpack.c.l.b16 %v695
        %v1334 = vunpack.c.h.b16 %v695
        %v1335 = vunpack.c.l.b16 %v696
        %v1336 = vunpack.c.h.b16 %v696
        %v1337 = vunpack.c.l.b16 %v697
        %v1338 = vunpack.c.h.b16 %v697
        %v1339 = vunpack.c.l.b16 %v698
        %v1340 = vunpack.c.h.b16 %v698
        %v1341 = vunpack.c.l.b16 %v699
        %v1342 = vunpack.c.h.b16 %v699
        %v1343 = vunpack.c.l.b16 %v700
        %v1344 = vunpack.c.h.b16 %v700
        %v1345 = vunpack.c.l.b16 %v701
        %v1346 = vunpack.c.h.b16 %v701
        %v1347 = vunpack.c.l.b16 %v702
        %v1348 = vunpack.c.h.b16 %v702
        %v1349 = vunpack.c.l.b16 %v703
        %v1350 = vunpack.c.h.b16 %v703
        %v1351 = vunpack.c.l.b16 %v704
        %v1352 = vunpack.c.h.b16 %v704
        %v1353 = vunpack.c.l.b16 %v705
        %v1354 = vunpack.c.h.b16 %v705
        %v1355 = vunpack.c.l.b16 %v706
        %v1356 = vunpack.c.h.b16 %v706
        %v1357 = vunpack.c.l.b16 %v707
        %v1358 = vunpack.c.h.b16 %v707
        %v1359 = vunpack.c.l.b16 %v708
        %v1360 = vunpack.c.h.b16 %v708
        %v1361 = vunpack.c.l.b16 %v709
        %v1362 = vunpack.c.h.b16 %v709
        %v1363 = vunpack.c.l.b16 %v710
        %v1364 = vunpack.c.h.b16 %v710
        %v1365 = vunpack.c.l.b16 %v711
        %v1366 = vunpack.c.h.b16 %v711
        %v1367 = vunpack.c.l.b16 %v712
        %v1368 = vunpack.c.h.b16 %v712
        %v1369 = vunpack.c.l.b16 %v713
        %v1370 = vunpack.c.h.b16 %v713
        %v1371 = vunpack.c.l.b16 %v714
        %v1372 = vunpack.c.h.b16 %v714
        %v1373 = vunpack.c.l.b16 %v715
        %v1374 = vunpack.c.h.b16 %v715
        %v1375 = vunpack.c.l.b16 %v716
        %v1376 = vunpack.c.h.b16 %v716
        %v1377 = vunpack.c.l.b16 %v717
        %v1378 = vunpack.c.h.b16 %v717
        %v1379 = vunpack.c.l.b16 %v718
        %v1380 = vunpack.c.h.b16 %v718
        %v1381 = vunpack.c.l.b16 %v719
        %v1382 = vunpack.c.h.b16 %v719
        %v1383 = vunpack.c.l.b16 %v720
        %v1384 = vunpack.c.h.b16 %v720
        %v1385 = vunpack.c.l.b16 %v721
        %v1386 = vunpack.c.h.b16 %v721
        %v1387 = vunpack.c.l.b16 %v722
        %v1388 = vunpack.c.h.b16 %v722
        %v1389 = vunpack.c.l.b16 %v723
        %v1390 = vunpack.c.h.b16 %v723
        %v1391 = vunpack.c.l.b16 %v724
        %v1392 = vunpack.c.h.b16 %v724
        %v1393 = vunpack.c.l.b16 %v725
        %v1394 = vunpack.c.h.b16 %v725
        %v1395 = vunpack.c.l.b16 %v726
        %v1396 = vunpack.c.h.b16 %v726
        %v1397 = vunpack.c.l.b16 %v727
        %v1398 = vunpack.c.h.b16 %v727
        %v1399 = vunpack.c.l.b16 %v728
        %v1400 = vunpack.c.h.b16 %v728
        %v1401 = vunpack.c.l.b16 %v729
        %v1402 = vunpack.c.h.b16 %v729
        %v1403 = vunpack.c.l.b16 %v730
        %v1404 = vunpack.c.h.b16 %v730
        %v1405 = vunpack.c.l.b16 %v731
        %v1406 = vunpack.c.h.b16 %v731
        %v1407 = vunpack.c.l.b16 %v732
        %v1408 = vunpack.c.h.b16 %v732
        %v1409 = vunpack.c.l.b16 %v733
        %v1410 = vunpack.c.h.b16 %v733
        %v1411 = vunpack.c.l.b16 %v734
        %v1412 = vunpack.c.h.b16 %v734
        %v1413 = vunpack.c.l.b16 %v735
        %v1414 = vunpack.c.h.b16 %v735
        %v1415 = vunpack.c.l.b16 %v736
        %v1416 = vunpack.c.h.b16 %v736
        %v1417 = vunpack.c.l.b16 %v737
        %v1418 = vunpack.c.h.b16 %v737
        %v1419 = vunpack.c.l.b16 %v738
        %v1420 = vunpack.c.h.b16 %v738
        %v1421 = vunpack.c.l.b16 %v739
        %v1422 = vunpack.c.h.b16 %v739
        %v1423 = vunpack.c.l.b16 %v740
        %v1424 = vunpack.c.h.b16 %v740
        %v1425 = vunpack.c.l.b16 %v741
        %v1426 = vunpack.c.h.b16 %v741
        %v1427 = vunpack.c.l.b16 %v742
        %v1428 = vunpack.c.h.b16 %v742
        %v1429 = vunpack.c.l.b16 %v743
        %v1430 = vunpack.c.h.b16 %v743
        %v1431 = vunpack.c.l.b16 %v744
        %v1432 = vunpack.c.h.b16 %v744
        %v1433 = vunpack.c.l.b16 %v745
        %v1434 = vunpack.c.h.b16 %v745
        %v1435 = vunpack.c.l.b16 %v746
        %v1436 = vunpack.c.h.b16 %v746
        %v1437 = vunpack.c.l.b16 %v747
        %v1438 = vunpack.c.h.b16 %v747
        %v1439 = vunpack.c.l.b16 %v748
        %v1440 = vunpack.c.h.b16 %v748
        %v1441 = vunpack.c.l.b16 %v749
        %v1442 = vunpack.c.h.b16 %v749
        %v1443 = vunpack.c.l.b16 %v750
        %v1444 = vunpack.c.h.b16 %v750
        %v1445 = vunpack.c.l.b16 %v751
        %v1446 = vunpack.c.h.b16 %v751
        %v1447 = vunpack.c.l.b16 %v752
        %v1448 = vunpack.c.h.b16 %v752
        %v1449 = vunpack.c.l.b16 %v753
        %v1450 = vunpack.c.h.b16 %v753
        %v1451 = vunpack.c.l.b16 %v754
        %v1452 = vunpack.c.h.b16 %v754
        %v1453 = vunpack.c.l.b16 %v755
        %v1454 = vunpack.c.h.b16 %v755
        %v1455 = vunpack.c.l.b16 %v756
        %v1456 = vunpack.c.h.b16 %v756
        %v1457 = vunpack.c.l.b16 %v757
        %v1458 = vunpack.c.h.b16 %v757
        %v1459 = vunpack.c.l.b16 %v758
        %v1460 = vunpack.c.h.b16 %v758
        %v1461 = vunpack.c.l.b16 %v759
        %v1462 = vunpack.c.h.b16 %v759
        %v1463 = vunpack.c.l.b16 %v760
        %v1464 = vunpack.c.h.b16 %v760
        %v1465 = vunpack.c.l.b16 %v761
        %v1466 = vunpack.c.h.b16 %v761
        %v1467 = vunpack.c.l.b16 %v762
        %v1468 = vunpack.c.h.b16 %v762
        %v1469 = vunpack.c.l.b16 %v763
        %v1470 = vunpack.c.h.b16 %v763
        %v1471 = vunpack.c.l.b16 %v764
        %v1472 = vunpack.c.h.b16 %v764
        %v1473 = vunpack.c.l.b16 %v765
        %v1474 = vunpack.c.h.b16 %v765
        %v1475 = vunpack.c.l.b16 %v766
        %v1476 = vunpack.c.h.b16 %v766
        %v1477 = vunpack.c.l.b16 %v767
        %v1478 = vunpack.c.h.b16 %v767
        %v1479 = vunpack.c.l.b16 %v768
        %v1480 = vunpack.c.h.b16 %v768
        %v1481 = vunpack.c.l.b16 %v769
        %v1482 = vunpack.c.h.b16 %v769
        %v1483 = vunpack.c.l.b16 %v770
        %v1484 = vunpack.c.h.b16 %v770
        %v1485 = vunpack.c.l.b16 %v771
        %v1486 = vunpack.c.h.b16 %v771
        %v1487 = vunpack.c.l.b16 %v772
        %v1488 = vunpack.c.h.b16 %v772
        %v1489 = vunpack.c.l.b16 %v773
        %v1490 = vunpack.c.h.b16 %v773
        %v1491 = vunpack.c.l.b16 %v774
        %v1492 = vunpack.c.h.b16 %v774
        %v1493 = vunpack.c.l.b16 %v775
        %v1494 = vunpack.c.h.b16 %v775
        %v1495 = vpack.c.b16 %v1051, %v1047
        %v1496 = vpack.c.b16 %v1052, %v1048
        %v1497 = vpack.c.b16 %v1053, %v1049
        %v1498 = vpack.c.b16 %v1054, %v1050
        %v1499 = vpack.c.b16 %v1059, %v1055
        %v1500 = vpack.c.b16 %v1060, %v1056
        %v1501 = vpack.c.b16 %v1061, %v1057
        %v1502 = vpack.c.b16 %v1062, %v1058
        %v1503 = vpack.c.b16 %v1067, %v1063
        %v1504 = vpack.c.b16 %v1068, %v1064
        %v1505 = vpack.c.b16 %v1069, %v1065
        %v1506 = vpack.c.b16 %v1070, %v1066
        %v1507 = vpack.c.b16 %v1075, %v1071
        %v1508 = vpack.c.b16 %v1076, %v1072
        %v1509 = vpack.c.b16 %v1077, %v1073
        %v1510 = vpack.c.b16 %v1078, %v1074
        %v1511 = vpack.c.b16 %v1083, %v1079
        %v1512 = vpack.c.b16 %v1084, %v1080
        %v1513 = vpack.c.b16 %v1085, %v1081
        %v1514 = vpack.c.b16 %v1086, %v1082
        %v1515 = vpack.c.b16 %v1091, %v1087
        %v1516 = vpack.c.b16 %v1092, %v1088
        %v1517 = vpack.c.b16 %v1093, %v1089
        %v1518 = vpack.c.b16 %v1094, %v1090
        %v1519 = vpack.c.b16 %v1099, %v1095
        %v1520 = vpack.c.b16 %v1100, %v1096
        %v1521 = vpack.c.b16 %v1101, %v1097
        %v1522 = vpack.c.b16 %v1102, %v1098
        %v1523 = vpack.c.b16 %v1107, %v1103
        %v1524 = vpack.c.b16 %v1108, %v1104
        %v1525 = vpack.c.b16 %v1109, %v1105
        %v1526 = vpack.c.b16 %v1110, %v1106
        %v1527 = vpack.c.b16 %v1115, %v1111
        %v1528 = vpack.c.b16 %v1116, %v1112
        %v1529 = vpack.c.b16 %v1117, %v1113
        %v1530 = vpack.c.b16 %v1118, %v1114
        %v1531 = vpack.c.b16 %v1123, %v1119
        %v1532 = vpack.c.b16 %v1124, %v1120
        %v1533 = vpack.c.b16 %v1125, %v1121
        %v1534 = vpack.c.b16 %v1126, %v1122
        %v1535 = vpack.c.b16 %v1131, %v1127
        %v1536 = vpack.c.b16 %v1132, %v1128
        %v1537 = vpack.c.b16 %v1133, %v1129
        %v1538 = vpack.c.b16 %v1134, %v1130
        %v1539 = vpack.c.b16 %v1139, %v1135
        %v1540 = vpack.c.b16 %v1140, %v1136
        %v1541 = vpack.c.b16 %v1141, %v1137
        %v1542 = vpack.c.b16 %v1142, %v1138
        %v1543 = vpack.c.b16 %v1147, %v1143
        %v1544 = vpack.c.b16 %v1148, %v1144
        %v1545 = vpack.c.b16 %v1149, %v1145
        %v1546 = vpack.c.b16 %v1150, %v1146
        %v1547 = vpack.c.b16 %v1155, %v1151
        %v1548 = vpack.c.b16 %v1156, %v1152
        %v1549 = vpack.c.b16 %v1157, %v1153
        %v1550 = vpack.c.b16 %v1158, %v1154
        %v1551 = vpack.c.b16 %v1163, %v1159
        %v1552 = vpack.c.b16 %v1164, %v1160
        %v1553 = vpack.c.b16 %v1165, %v1161
        %v1554 = vpack.c.b16 %v1166, %v1162
        %v1555 = vpack.c.b16 %v1171, %v1167
        %v1556 = vpack.c.b16 %v1172, %v1168
        %v1557 = vpack.c.b16 %v1173, %v1169
        %v1558 = vpack.c.b16 %v1174, %v1170
        %v1559 = vpack.c.b16 %v1179, %v1175
        %v1560 = vpack.c.b16 %v1180, %v1176
        %v1561 = vpack.c.b16 %v1181, %v1177
        %v1562 = vpack.c.b16 %v1182, %v1178
        %v1563 = vpack.c.b16 %v1187, %v1183
        %v1564 = vpack.c.b16 %v1188, %v1184
        %v1565 = vpack.c.b16 %v1189, %v1185
        %v1566 = vpack.c.b16 %v1190, %v1186
        %v1567 = vpack.c.b16 %v1195, %v1191
        %v1568 = vpack.c.b16 %v1196, %v1192
        %v1569 = vpack.c.b16 %v1197, %v1193
        %v1570 = vpack.c.b16 %v1198, %v1194
        %v1571 = vpack.c.b16 %v1203, %v1199
        %v1572 = vpack.c.b16 %v1204, %v1200
        %v1573 = vpack.c.b16 %v1205, %v1201
        %v1574 = vpack.c.b16 %v1206, %v1202
        %v1575 = vpack.c.b16 %v1211, %v1207
        %v1576 = vpack.c.b16 %v1212, %v1208
        %v1577 = vpack.c.b16 %v1213, %v1209
        %v1578 = vpack.c.b16 %v1214, %v1210
        %v1579 = vpack.c.b16 %v1219, %v1215
        %v1580 = vpack.c.b16 %v1220, %v1216
        %v1581 = vpack.c.b16 %v1221, %v1217
        %v1582 = vpack.c.b16 %v1222, %v1218
        %v1583 = vpack.c.b16 %v1227, %v1223
        %v1584 = vpack.c.b16 %v1228, %v1224
        %v1585 = vpack.c.b16 %v1229, %v1225
        %v1586 = vpack.c.b16 %v1230, %v1226
        %v1587 = vpack.c.b16 %v1235, %v1231
        %v1588 = vpack.c.b16 %v1236, %v1232
        %v1589 = vpack.c.b16 %v1237, %v1233
        %v1590 = vpack.c.b16 %v1238, %v1234
        %v1591 = vpack.c.b16 %v1243, %v1239
        %v1592 = vpack.c.b16 %v1244, %v1240
        %v1593 = vpack.c.b16 %v1245, %v1241
        %v1594 = vpack.c.b16 %v1246, %v1242
        %v1595 = vpack.c.b16 %v1251, %v1247
        %v1596 = vpack.c.b16 %v1252, %v1248
        %v1597 = vpack.c.b16 %v1253, %v1249
        %v1598 = vpack.c.b16 %v1254, %v1250
        %v1599 = vpack.c.b16 %v1259, %v1255
        %v1600 = vpack.c.b16 %v1260, %v1256
        %v1601 = vpack.c.b16 %v1261, %v1257
        %v1602 = vpack.c.b16 %v1262, %v1258
        %v1603 = vpack.c.b16 %v1267, %v1263
        %v1604 = vpack.c.b16 %v1268, %v1264
        %v1605 = vpack.c.b16 %v1269, %v1265
        %v1606 = vpack.c.b16 %v1270, %v1266
        %v1607 = vpack.c.b16 %v1275, %v1271
        %v1608 = vpack.c.b16 %v1276, %v1272
        %v1609 = vpack.c.b16 %v1277, %v1273
        %v1610 = vpack.c.b16 %v1278, %v1274
        %v1611 = vpack.c.b16 %v1283, %v1279
        %v1612 = vpack.c.b16 %v1284, %v1280
        %v1613 = vpack.c.b16 %v1285, %v1281
        %v1614 = vpack.c.b16 %v1286, %v1282
        %v1615 = vpack.c.b16 %v1291, %v1287
        %v1616 = vpack.c.b16 %v1292, %v1288
        %v1617 = vpack.c.b16 %v1293, %v1289
        %v1618 = vpack.c.b16 %v1294, %v1290
        %v1619 = vpack.c.b16 %v1299, %v1295
        %v1620 = vpack.c.b16 %v1300, %v1296
        %v1621 = vpack.c.b16 %v1301, %v1297
        %v1622 = vpack.c.b16 %v1302, %v1298
        %v1623 = vpack.c.b16 %v1307, %v1303
        %v1624 = vpack.c.b16 %v1308, %v1304
        %v1625 = vpack.c.b16 %v1309, %v1305
        %v1626 = vpack.c.b16 %v1310, %v1306
        %v1627 = vpack.c.b16 %v1315, %v1311
        %v1628 = vpack.c.b16 %v1316, %v1312
        %v1629 = vpack.c.b16 %v1317, %v1313
        %v1630 = vpack.c.b16 %v1318, %v1314
        %v1631 = vpack.c.b16 %v1323, %v1319
        %v1632 = vpack.c.b16 %v1324, %v1320
        %v1633 = vpack.c.b16 %v1325, %v1321
        %v1634 = vpack.c.b16 %v1326, %v1322
        %v1635 = vpack.c.b16 %v1331, %v1327
        %v1636 = vpack.c.b16 %v1332, %v1328
        %v1637 = vpack.c.b16 %v1333, %v1329
        %v1638 = vpack.c.b16 %v1334, %v1330
        %v1639 = vpack.c.b16 %v1339, %v1335
        %v1640 = vpack.c.b16 %v1340, %v1336
        %v1641 = vpack.c.b16 %v1341, %v1337
        %v1642 = vpack.c.b16 %v1342, %v1338
        %v1643 = vpack.c.b16 %v1347, %v1343
        %v1644 = vpack.c.b16 %v1348, %v1344
        %v1645 = vpack.c.b16 %v1349, %v1345
        %v1646 = vpack.c.b16 %v1350, %v1346
        %v1647 = vpack.c.b16 %v1355, %v1351
        %v1648 = vpack.c.b16 %v1356, %v1352
        %v1649 = vpack.c.b16 %v1357, %v1353
        %v1650 = vpack.c.b16 %v1358, %v1354
        %v1651 = vpack.c.b16 %v1363, %v1359
        %v1652 = vpack.c.b16 %v1364, %v1360
        %v1653 = vpack.c.b16 %v1365, %v1361
        %v1654 = vpack.c.b16 %v1366, %v1362
        %v1655 = vpack.c.b16 %v1371, %v1367
        %v1656 = vpack.c.b16 %v1372, %v1368
        %v1657 = vpack.c.b16 %v1373, %v1369
        %v1658 = vpack.c.b16 %v1374, %v1370
        %v1659 = vpack.c.b16 %v1379, %v1375
        %v1660 = vpack.c.b16 %v1380, %v1376
        %v1661 = vpack.c.b16 %v1381, %v1377
        %v1662 = vpack.c.b16 %v1382, %v1378
        %v1663 = vpack.c.b16 %v1387, %v1383
        %v1664 = vpack.c.b16 %v1388, %v1384
        %v1665 = vpack.c.b16 %v1389, %v1385
        %v1666 = vpack.c.b16 %v1390, %v1386
        %v1667 = vpack.c.b16 %v1395, %v1391
        %v1668 = vpack.c.b16 %v1396, %v1392
        %v1669 = vpack.c.b16 %v1397, %v1393
        %v1670 = vpack.c.b16 %v1398, %v1394
        %v1671 = vpack.c.b16 %v1403, %v1399
        %v1672 = vpack.c.b16 %v1404, %v1400
        %v1673 = vpack.c.b16 %v1405, %v1401
        %v1674 = vpack.c.b16 %v1406, %v1402
        %v1675 = vpack.c.b16 %v1411, %v1407
        %v1676 = vpack.c.b16 %v1412, %v1408
        %v1677 = vpack.c.b16 %v1413, %v1409
        %v1678 = vpack.c.b16 %v1414, %v1410
        %v1679 = vpack.c.b16 %v1419, %v1415
        %v1680 = vpack.c.b16 %v1420, %v1416
        %v1681 = vpack.c.b16 %v1421, %v1417
        %v1682 = vpack.c.b16 %v1422, %v1418
        %v1683 = vpack.c.b16 %v1427, %v1423
        %v1684 = vpack.c.b16 %v1428, %v1424
        %v1685 = vpack.c.b16 %v1429, %v1425
        %v1686 = vpack.c.b16 %v1430, %v1426
        %v1687 = vpack.c.b16 %v1435, %v1431
        %v1688 = vpack.c.b16 %v1436, %v1432
        %v1689 = vpack.c.b16 %v1437, %v1433
        %v1690 = vpack.c.b16 %v1438, %v1434
        %v1691 = vpack.c.b16 %v1443, %v1439
        %v1692 = vpack.c.b16 %v1444, %v1440
        %v1693 = vpack.c.b16 %v1445, %v1441
        %v1694 = vpack.c.b16 %v1446, %v1442
        %v1695 = vpack.c.b16 %v1451, %v1447
        %v1696 = vpack.c.b16 %v1452, %v1448
        %v1697 = vpack.c.b16 %v1453, %v1449
        %v1698 = vpack.c.b16 %v1454, %v1450
        %v1699 = vpack.c.b16 %v1459, %v1455
        %v1700 = vpack.c.b16 %v1460, %v1456
        %v1701 = vpack.c.b16 %v1461, %v1457
        %v1702 = vpack.c.b16 %v1462, %v1458
        %v1703 = vpack.c.b16 %v1467, %v1463
        %v1704 = vpack.c.b16 %v1468, %v1464
        %v1705 = vpack.c.b16 %v1469, %v1465
        %v1706 = vpack.c.b16 %v1470, %v1466
        %v1707 = vpack.c.b16 %v1475, %v1471
        %v1708 = vpack.c.b16 %v1476, %v1472
        %v1709 = vpack.c.b16 %v1477, %v1473
        %v1710 = vpack.c.b16 %v1478, %v1474
        %v1711 = vpack.c.b16 %v1483, %v1479
        %v1712 = vpack.c.b16 %v1484, %v1480
        %v1713 = vpack.c.b16 %v1485, %v1481
        %v1714 = vpack.c.b16 %v1486, %v1482
        %v1715 = vpack.c.b16 %v1491, %v1487
        %v1716 = vpack.c.b16 %v1492, %v1488
        %v1717 = vpack.c.b16 %v1493, %v1489
        %v1718 = vpack.c.b16 %v1494, %v1490
        %1943 = vmatprep.subr.bf16.mxu0 %v1496
        %1944 = vmatpush1.bf16.msra.mxu0 %v1495
        %1945 = vmatprep.subr.bf16.mxu0 %v1500
        %1946 = vmatpush1.bf16.msra.mxu0 %v1499
        %1947 = vmatprep.subr.bf16.mxu0 %v1504
        %1948 = vmatpush1.bf16.msra.mxu0 %v1503
        %1949 = vmatprep.subr.bf16.mxu0 %v1508
        %1950 = vmatpush1.bf16.msra.mxu0 %v1507
        %1951 = vmatprep.subr.bf16.mxu0 %v1512
        %1952 = vmatpush1.bf16.msra.mxu0 %v1511
        %1953 = vmatprep.subr.bf16.mxu0 %v1516
        %1954 = vmatpush1.bf16.msra.mxu0 %v1515
        %1955 = vmatprep.subr.bf16.mxu0 %v1520
        %1956 = vmatpush1.bf16.msra.mxu0 %v1519
        %1957 = vmatprep.subr.bf16.mxu0 %v1524
        %1958 = vmatpush1.bf16.msra.mxu0 %v1523
        %1959 = vmatprep.subr.bf16.mxu0 %v1528
        %1960 = vmatpush1.bf16.msra.mxu0 %v1527
        %1961 = vmatprep.subr.bf16.mxu0 %v1532
        %1962 = vmatpush1.bf16.msra.mxu0 %v1531
        %1963 = vmatprep.subr.bf16.mxu0 %v1536
        %1964 = vmatpush1.bf16.msra.mxu0 %v1535
        %1965 = vmatprep.subr.bf16.mxu0 %v1540
        %1966 = vmatpush1.bf16.msra.mxu0 %v1539
        %1967 = vmatprep.subr.bf16.mxu0 %v1544
        %1968 = vmatpush1.bf16.msra.mxu0 %v1543
        %1969 = vmatprep.subr.bf16.mxu0 %v1548
        %1970 = vmatpush1.bf16.msra.mxu0 %v1547
        %1971 = vmatprep.subr.bf16.mxu0 %v1552
        %1972 = vmatpush1.bf16.msra.mxu0 %v1551
        %1973 = vmatprep.subr.bf16.mxu0 %v1556
        %1974 = vmatpush1.bf16.msra.mxu0 %v1555
        %1975 = vmatprep.mubr.bf16.mxu0 %v810
        %1976 = vmatmul.mubr.bf16.gmra.mrb[0].mxu0 %v809
        %v1977 = vpop.f32.mrb[0].mxu0
        %v1978 = vadd.f32 %v781, %v1977
        %v1979 = vpop.f32.mrb[0].mxu0
        %v1980 = vadd.f32 %v785, %v1979
        %v1981 = vpop.f32.mrb[0].mxu0
        %v1982 = vpop.f32.mrb[0].mxu0
        %1983 = vdwg.mxu0
        %1984 = vmatprep.subr.bf16.mxu0 %v1560
        %1985 = vmatpush1.bf16.msra.mxu0 %v1559
        %1986 = vmatprep.subr.bf16.mxu0 %v1564
        %1987 = vmatpush1.bf16.msra.mxu0 %v1563
        %1988 = vmatprep.subr.bf16.mxu0 %v1568
        %1989 = vmatpush1.bf16.msra.mxu0 %v1567
        %1990 = vmatprep.subr.bf16.mxu0 %v1572
        %1991 = vmatpush1.bf16.msra.mxu0 %v1571
        %1992 = vmatprep.subr.bf16.mxu0 %v1576
        %1993 = vmatpush1.bf16.msra.mxu0 %v1575
        %1994 = vmatprep.subr.bf16.mxu0 %v1580
        %1995 = vmatpush1.bf16.msra.mxu0 %v1579
        %1996 = vmatprep.subr.bf16.mxu0 %v1584
        %1997 = vmatpush1.bf16.msra.mxu0 %v1583
        %1998 = vmatprep.subr.bf16.mxu0 %v1588
        %1999 = vmatpush1.bf16.msra.mxu0 %v1587
        %2000 = vmatprep.subr.bf16.mxu0 %v1592
        %2001 = vmatpush1.bf16.msra.mxu0 %v1591
        %2002 = vmatprep.subr.bf16.mxu0 %v1596
        %2003 = vmatpush1.bf16.msra.mxu0 %v1595
        %2004 = vmatprep.subr.bf16.mxu0 %v1600
        %2005 = vmatpush1.bf16.msra.mxu0 %v1599
        %2006 = vmatprep.subr.bf16.mxu0 %v1604
        %2007 = vmatpush1.bf16.msra.mxu0 %v1603
        %2008 = vmatprep.subr.bf16.mxu0 %v1608
        %2009 = vmatpush1.bf16.msra.mxu0 %v1607
        %2010 = vmatprep.subr.bf16.mxu0 %v1612
        %2011 = vmatpush1.bf16.msra.mxu0 %v1611
        %2012 = vmatprep.subr.bf16.mxu0 %v1616
        %2013 = vmatpush1.bf16.msra.mxu0 %v1615
        %2014 = vmatprep.subr.bf16.mxu0 %v1620
        %2015 = vmatpush1.bf16.msra.mxu0 %v1619
        %2016 = vmatprep.mubr.bf16.mxu0 %v812
        %2017 = vmatmul.mubr.bf16.gmra.mrb[0].mxu0 %v811
        %v2018 = vpop.f32.mrb[0].mxu0
        %v2019 = vadd.f32 %v1978, %v2018
        %v2020 = vpop.f32.mrb[0].mxu0
        %v2021 = vadd.f32 %v1980, %v2020
        %v2022 = vpop.f32.mrb[0].mxu0
        %v2023 = vpop.f32.mrb[0].mxu0
        %2024 = vdwg.mxu0
        %2025 = vmatprep.subr.bf16.mxu0 %v1624
        %2026 = vmatpush1.bf16.msra.mxu0 %v1623
        %2027 = vmatprep.subr.bf16.mxu0 %v1628
        %2028 = vmatpush1.bf16.msra.mxu0 %v1627
        %2029 = vmatprep.subr.bf16.mxu0 %v1632
        %2030 = vmatpush1.bf16.msra.mxu0 %v1631
        %2031 = vmatprep.subr.bf16.mxu0 %v1636
        %2032 = vmatpush1.bf16.msra.mxu0 %v1635
        %2033 = vmatprep.subr.bf16.mxu0 %v1640
        %2034 = vmatpush1.bf16.msra.mxu0 %v1639
        %2035 = vmatprep.subr.bf16.mxu0 %v1644
        %2036 = vmatpush1.bf16.msra.mxu0 %v1643
        %2037 = vmatprep.subr.bf16.mxu0 %v1648
        %2038 = vmatpush1.bf16.msra.mxu0 %v1647
        %2039 = vmatprep.subr.bf16.mxu0 %v1652
        %2040 = vmatpush1.bf16.msra.mxu0 %v1651
        %2041 = vmatprep.subr.bf16.mxu0 %v1656
        %2042 = vmatpush1.bf16.msra.mxu0 %v1655
        %2043 = vmatprep.subr.bf16.mxu0 %v1660
        %2044 = vmatpush1.bf16.msra.mxu0 %v1659
        %2045 = vmatprep.subr.bf16.mxu0 %v1664
        %2046 = vmatpush1.bf16.msra.mxu0 %v1663
        %2047 = vmatprep.subr.bf16.mxu0 %v1668
        %2048 = vmatpush1.bf16.msra.mxu0 %v1667
        %2049 = vmatprep.subr.bf16.mxu0 %v1672
        %2050 = vmatpush1.bf16.msra.mxu0 %v1671
        %2051 = vmatprep.subr.bf16.mxu0 %v1676
        %2052 = vmatpush1.bf16.msra.mxu0 %v1675
        %2053 = vmatprep.subr.bf16.mxu0 %v1680
        %2054 = vmatpush1.bf16.msra.mxu0 %v1679
        %2055 = vmatprep.subr.bf16.mxu0 %v1684
        %2056 = vmatpush1.bf16.msra.mxu0 %v1683
        %2057 = vmatprep.mubr.bf16.mxu0 %v814
        %2058 = vmatmul.mubr.bf16.gmra.mrb[0].mxu0 %v813
        %v2059 = vpop.f32.mrb[0].mxu0
        %v2060 = vadd.f32 %v2019, %v2059
        %v2061 = vpop.f32.mrb[0].mxu0
        %v2062 = vadd.f32 %v2021, %v2061
        %v2063 = vpop.f32.mrb[0].mxu0
        %v2064 = vpop.f32.mrb[0].mxu0
        %2065 = vdwg.mxu0
        %2066 = vmatprep.subr.bf16.mxu0 %v1688
        %2067 = vmatpush1.bf16.msra.mxu0 %v1687
        %2068 = vmatprep.subr.bf16.mxu0 %v1692
        %2069 = vmatpush1.bf16.msra.mxu0 %v1691
        %2070 = vmatprep.subr.bf16.mxu0 %v1696
        %2071 = vmatpush1.bf16.msra.mxu0 %v1695
        %2072 = vmatprep.subr.bf16.mxu0 %v1700
        %2073 = vmatpush1.bf16.msra.mxu0 %v1699
        %2074 = vmatprep.subr.bf16.mxu0 %v1704
        %2075 = vmatpush1.bf16.msra.mxu0 %v1703
        %2076 = vmatprep.subr.bf16.mxu0 %v1708
        %2077 = vmatpush1.bf16.msra.mxu0 %v1707
        %2078 = vmatprep.subr.bf16.mxu0 %v1712
        %2079 = vmatpush1.bf16.msra.mxu0 %v1711
        %2080 = vmatprep.subr.bf16.mxu0 %v1716
        %2081 = vmatpush1.bf16.msra.mxu0 %v1715
        %2082 = vmatprep.subr.bf16.mxu0 0
        %2083 = vmatpush1.bf16.msra.mxu0 0
        %2084 = vmatprep.subr.bf16.mxu0 0
        %2085 = vmatpush1.bf16.msra.mxu0 0
        %2086 = vmatprep.subr.bf16.mxu0 0
        %2087 = vmatpush1.bf16.msra.mxu0 0
        %2088 = vmatprep.subr.bf16.mxu0 0
        %2089 = vmatpush1.bf16.msra.mxu0 0
        %2090 = vmatprep.subr.bf16.mxu0 0
        %2091 = vmatpush1.bf16.msra.mxu0 0
        %2092 = vmatprep.subr.bf16.mxu0 0
        %2093 = vmatpush1.bf16.msra.mxu0 0
        %2094 = vmatprep.subr.bf16.mxu0 0
        %2095 = vmatpush1.bf16.msra.mxu0 0
        %2096 = vmatprep.subr.bf16.mxu0 0
        %2097 = vmatpush1.bf16.msra.mxu0 0
        %2098 = vmatprep.mubr.bf16.mxu0 0
        %2099 = vmatmul.mubr.bf16.gmra.mrb[0].mxu0 %v815
        %v2100 = vpop.f32.mrb[0].mxu0
        %v2101 = vadd.f32 %v2060, %v2100
        %v2102 = vpop.f32.mrb[0].mxu0
        %v2103 = vadd.f32 %v2062, %v2102
        %v2104 = vpop.f32.mrb[0].mxu0
        %v2105 = vpop.f32.mrb[0].mxu0
        %2106 = vdwg.mxu0
        %2107 = vmatprep.subr.bf16.mxu0 %v1498
        %2108 = vmatpush1.bf16.msra.mxu0 %v1497
        %2109 = vmatprep.subr.bf16.mxu0 %v1502
        %2110 = vmatpush1.bf16.msra.mxu0 %v1501
        %2111 = vmatprep.subr.bf16.mxu0 %v1506
        %2112 = vmatpush1.bf16.msra.mxu0 %v1505
        %2113 = vmatprep.subr.bf16.mxu0 %v1510
        %2114 = vmatpush1.bf16.msra.mxu0 %v1509
        %2115 = vmatprep.subr.bf16.mxu0 %v1514
        %2116 = vmatpush1.bf16.msra.mxu0 %v1513
        %2117 = vmatprep.subr.bf16.mxu0 %v1518
        %2118 = vmatpush1.bf16.msra.mxu0 %v1517
        %2119 = vmatprep.subr.bf16.mxu0 %v1522
        %2120 = vmatpush1.bf16.msra.mxu0 %v1521
        %2121 = vmatprep.subr.bf16.mxu0 %v1526
        %2122 = vmatpush1.bf16.msra.mxu0 %v1525
        %2123 = vmatprep.subr.bf16.mxu0 %v1530
        %2124 = vmatpush1.bf16.msra.mxu0 %v1529
        %2125 = vmatprep.subr.bf16.mxu0 %v1534
        %2126 = vmatpush1.bf16.msra.mxu0 %v1533
        %2127 = vmatprep.subr.bf16.mxu0 %v1538
        %2128 = vmatpush1.bf16.msra.mxu0 %v1537
        %2129 = vmatprep.subr.bf16.mxu0 %v1542
        %2130 = vmatpush1.bf16.msra.mxu0 %v1541
        %2131 = vmatprep.subr.bf16.mxu0 %v1546
        %2132 = vmatpush1.bf16.msra.mxu0 %v1545
        %2133 = vmatprep.subr.bf16.mxu0 %v1550
        %2134 = vmatpush1.bf16.msra.mxu0 %v1549
        %2135 = vmatprep.subr.bf16.mxu0 %v1554
        %2136 = vmatpush1.bf16.msra.mxu0 %v1553
        %2137 = vmatprep.subr.bf16.mxu0 %v1558
        %2138 = vmatpush1.bf16.msra.mxu0 %v1557
        %2139 = vmatprep.mubr.bf16.mxu0 %v810
        %2140 = vmatmul.mubr.bf16.gmra.mrb[0].mxu0 %v809
        %v2141 = vpop.f32.mrb[0].mxu0
        %v2142 = vadd.f32 %v789, %v2141
        %v2143 = vpop.f32.mrb[0].mxu0
        %v2144 = vadd.f32 %v793, %v2143
        %v2145 = vpop.f32.mrb[0].mxu0
        %v2146 = vpop.f32.mrb[0].mxu0
        %2147 = vdwg.mxu0
        %2148 = vmatprep.subr.bf16.mxu0 %v1562
        %2149 = vmatpush1.bf16.msra.mxu0 %v1561
        %2150 = vmatprep.subr.bf16.mxu0 %v1566
        %2151 = vmatpush1.bf16.msra.mxu0 %v1565
        %2152 = vmatprep.subr.bf16.mxu0 %v1570
        %2153 = vmatpush1.bf16.msra.mxu0 %v1569
        %2154 = vmatprep.subr.bf16.mxu0 %v1574
        %2155 = vmatpush1.bf16.msra.mxu0 %v1573
        %2156 = vmatprep.subr.bf16.mxu0 %v1578
        %2157 = vmatpush1.bf16.msra.mxu0 %v1577
        %2158 = vmatprep.subr.bf16.mxu0 %v1582
        %2159 = vmatpush1.bf16.msra.mxu0 %v1581
        %2160 = vmatprep.subr.bf16.mxu0 %v1586
        %2161 = vmatpush1.bf16.msra.mxu0 %v1585
        %2162 = vmatprep.subr.bf16.mxu0 %v1590
        %2163 = vmatpush1.bf16.msra.mxu0 %v1589
        %2164 = vmatprep.subr.bf16.mxu0 %v1594
        %2165 = vmatpush1.bf16.msra.mxu0 %v1593
        %2166 = vmatprep.subr.bf16.mxu0 %v1598
        %2167 = vmatpush1.bf16.msra.mxu0 %v1597
        %2168 = vmatprep.subr.bf16.mxu0 %v1602
        %2169 = vmatpush1.bf16.msra.mxu0 %v1601
        %2170 = vmatprep.subr.bf16.mxu0 %v1606
        %2171 = vmatpush1.bf16.msra.mxu0 %v1605
        %2172 = vmatprep.subr.bf16.mxu0 %v1610
        %2173 = vmatpush1.bf16.msra.mxu0 %v1609
        %2174 = vmatprep.subr.bf16.mxu0 %v1614
        %2175 = vmatpush1.bf16.msra.mxu0 %v1613
        %2176 = vmatprep.subr.bf16.mxu0 %v1618
        %2177 = vmatpush1.bf16.msra.mxu0 %v1617
        %2178 = vmatprep.subr.bf16.mxu0 %v1622
        %2179 = vmatpush1.bf16.msra.mxu0 %v1621
        %2180 = vmatprep.mubr.bf16.mxu0 %v812
        %2181 = vmatmul.mubr.bf16.gmra.mrb[0].mxu0 %v811
        %v2182 = vpop.f32.mrb[0].mxu0
        %v2183 = vadd.f32 %v2142, %v2182
        %v2184 = vpop.f32.mrb[0].mxu0
        %v2185 = vadd.f32 %v2144, %v2184
        %v2186 = vpop.f32.mrb[0].mxu0
        %v2187 = vpop.f32.mrb[0].mxu0
        %2188 = vdwg.mxu0
        %2189 = vmatprep.subr.bf16.mxu0 %v1626
        %2190 = vmatpush1.bf16.msra.mxu0 %v1625
        %2191 = vmatprep.subr.bf16.mxu0 %v1630
        %2192 = vmatpush1.bf16.msra.mxu0 %v1629
        %2193 = vmatprep.subr.bf16.mxu0 %v1634
        %2194 = vmatpush1.bf16.msra.mxu0 %v1633
        %2195 = vmatprep.subr.bf16.mxu0 %v1638
        %2196 = vmatpush1.bf16.msra.mxu0 %v1637
        %2197 = vmatprep.subr.bf16.mxu0 %v1642
        %2198 = vmatpush1.bf16.msra.mxu0 %v1641
        %2199 = vmatprep.subr.bf16.mxu0 %v1646
        %2200 = vmatpush1.bf16.msra.mxu0 %v1645
        %2201 = vmatprep.subr.bf16.mxu0 %v1650
        %2202 = vmatpush1.bf16.msra.mxu0 %v1649
        %2203 = vmatprep.subr.bf16.mxu0 %v1654
        %2204 = vmatpush1.bf16.msra.mxu0 %v1653
        %2205 = vmatprep.subr.bf16.mxu0 %v1658
        %2206 = vmatpush1.bf16.msra.mxu0 %v1657
        %2207 = vmatprep.subr.bf16.mxu0 %v1662
        %2208 = vmatpush1.bf16.msra.mxu0 %v1661
        %2209 = vmatprep.subr.bf16.mxu0 %v1666
        %2210 = vmatpush1.bf16.msra.mxu0 %v1665
        %2211 = vmatprep.subr.bf16.mxu0 %v1670
        %2212 = vmatpush1.bf16.msra.mxu0 %v1669
        %2213 = vmatprep.subr.bf16.mxu0 %v1674
        %2214 = vmatpush1.bf16.msra.mxu0 %v1673
        %2215 = vmatprep.subr.bf16.mxu0 %v1678
        %2216 = vmatpush1.bf16.msra.mxu0 %v1677
        %2217 = vmatprep.subr.bf16.mxu0 %v1682
        %2218 = vmatpush1.bf16.msra.mxu0 %v1681
        %2219 = vmatprep.subr.bf16.mxu0 %v1686
        %2220 = vmatpush1.bf16.msra.mxu0 %v1685
        %2221 = vmatprep.mubr.bf16.mxu0 %v814
        %2222 = vmatmul.mubr.bf16.gmra.mrb[0].mxu0 %v813
        %v2223 = vpop.f32.mrb[0].mxu0
        %v2224 = vadd.f32 %v2183, %v2223
        %v2225 = vpop.f32.mrb[0].mxu0
        %v2226 = vadd.f32 %v2185, %v2225
        %v2227 = vpop.f32.mrb[0].mxu0
        %v2228 = vpop.f32.mrb[0].mxu0
        %2229 = vdwg.mxu0
        %2230 = vmatprep.subr.bf16.mxu0 %v1690
        %2231 = vmatpush1.bf16.msra.mxu0 %v1689
        %2232 = vmatprep.subr.bf16.mxu0 %v1694
        %2233 = vmatpush1.bf16.msra.mxu0 %v1693
        %2234 = vmatprep.subr.bf16.mxu0 %v1698
        %2235 = vmatpush1.bf16.msra.mxu0 %v1697
        %2236 = vmatprep.subr.bf16.mxu0 %v1702
        %2237 = vmatpush1.bf16.msra.mxu0 %v1701
        %2238 = vmatprep.subr.bf16.mxu0 %v1706
        %2239 = vmatpush1.bf16.msra.mxu0 %v1705
        %2240 = vmatprep.subr.bf16.mxu0 %v1710
        %2241 = vmatpush1.bf16.msra.mxu0 %v1709
        %2242 = vmatprep.subr.bf16.mxu0 %v1714
        %2243 = vmatpush1.bf16.msra.mxu0 %v1713
        %2244 = vmatprep.subr.bf16.mxu0 %v1718
        %2245 = vmatpush1.bf16.msra.mxu0 %v1717
        %2246 = vmatprep.subr.bf16.mxu0 0
        %2247 = vmatpush1.bf16.msra.mxu0 0
        %2248 = vmatprep.subr.bf16.mxu0 0
        %2249 = vmatpush1.bf16.msra.mxu0 0
        %2250 = vmatprep.subr.bf16.mxu0 0
        %2251 = vmatpush1.bf16.msra.mxu0 0
        %2252 = vmatprep.subr.bf16.mxu0 0
        %2253 = vmatpush1.bf16.msra.mxu0 0
        %2254 = vmatprep.subr.bf16.mxu0 0
        %2255 = vmatpush1.bf16.msra.mxu0 0
        %2256 = vmatprep.subr.bf16.mxu0 0
        %2257 = vmatpush1.bf16.msra.mxu0 0
        %2258 = vmatprep.subr.bf16.mxu0 0
        %2259 = vmatpush1.bf16.msra.mxu0 0
        %2260 = vmatprep.subr.bf16.mxu0 0
        %2261 = vmatpush1.bf16.msra.mxu0 0
        %2262 = vmatprep.mubr.bf16.mxu0 0
        %2263 = vmatmul.mubr.bf16.gmra.mrb[0].mxu0 %v815
        %v2264 = vpop.f32.mrb[0].mxu0
        %v2265 = vadd.f32 %v2224, %v2264
        %v2266 = vpop.f32.mrb[0].mxu0
        %v2267 = vadd.f32 %v2226, %v2266
        %v2268 = vpop.f32.mrb[0].mxu0
        %v2269 = vpop.f32.mrb[0].mxu0
        %2270 = vdwg.mxu0
        %vm2271 = vcmp.gt.f32.partialorder %v2101, 20.0
        %vm2272 = vcmp.gt.f32.partialorder %v2103, 20.0
        %vm2273 = vcmp.gt.f32.partialorder %v2265, 20.0
        %vm2274 = vcmp.gt.f32.partialorder %v2267, 20.0
        %v2275 = vmul.f32 %v2101, 1.442695
        %v2276 = vpow.pop %v2275
        %v2277 = vmul.f32 %v2103, 1.442695
        %v2278 = vpow.pop %v2277
        %v2279 = vmul.f32 %v2265, 1.442695
        %v2280 = vpow.pop %v2279
        %v2281 = vmul.f32 %v2267, 1.442695
        %v2282 = vpow.pop %v2281
        %v2283 = vadd.f32 %v2276, 1.0
        %v2284 = vlog2.pop %v2283
        %v2285 = vmul.f32 %v2284, 0.6931472
        %v2286 = vmul.f32 -0.5, %v2276
        %v2287 = vadd.f32 %v2286, 1.0
        %v2288 = vmul.f32 %v2287, %v2276
        %v2289 = vand.u32 2147483647, %v2276
        %vm2290 = vcmp.lt.f32.partialorder %v2289, 0.0004427343
        %v2291 = vsel %vm2290, %v2288, %v2285
        %v2292 = vadd.f32 %v2278, 1.0
        %v2293 = vlog2.pop %v2292
        %v2294 = vmul.f32 %v2293, 0.6931472
        %v2295 = vmul.f32 -0.5, %v2278
        %v2296 = vadd.f32 %v2295, 1.0
        %v2297 = vmul.f32 %v2296, %v2278
        %v2298 = vand.u32 2147483647, %v2278
        %vm2299 = vcmp.lt.f32.partialorder %v2298, 0.0004427343
        %v2300 = vsel %vm2299, %v2297, %v2294
        %v2301 = vadd.f32 %v2280, 1.0
        %v2302 = vlog2.pop %v2301
        %v2303 = vmul.f32 %v2302, 0.6931472
        %v2304 = vmul.f32 -0.5, %v2280
        %v2305 = vadd.f32 %v2304, 1.0
        %v2306 = vmul.f32 %v2305, %v2280
        %v2307 = vand.u32 2147483647, %v2280
        %vm2308 = vcmp.lt.f32.partialorder %v2307, 0.0004427343
        %v2309 = vsel %vm2308, %v2306, %v2303
        %v2310 = vadd.f32 %v2282, 1.0
        %v2311 = vlog2.pop %v2310
        %v2312 = vmul.f32 %v2311, 0.6931472
        %v2313 = vmul.f32 -0.5, %v2282
        %v2314 = vadd.f32 %v2313, 1.0
        %v2315 = vmul.f32 %v2314, %v2282
        %v2316 = vand.u32 2147483647, %v2282
        %vm2317 = vcmp.lt.f32.partialorder %v2316, 0.0004427343
        %v2318 = vsel %vm2317, %v2315, %v2312
        %v2319 = vsel %vm2271, %v2101, %v2291
        %v2320 = vsel %vm2272, %v2103, %v2300
        %v2321 = vsel %vm2273, %v2265, %v2309
        %v2322 = vsel %vm2274, %v2267, %v2318
        %v2323 = vld [vmem:[%s3] sm:$0xff]
        %v2324 = vld [vmem:[%s3 + $0x8] sm:$0xff]
        %v2325 = vld [vmem:[%s3 + $0x10] sm:$0xff]
        %v2326 = vld [vmem:[%s3 + $0x18] sm:$0xff]
        %v2327 = vld [vmem:[%s3 + $0x20] sm:$0xff]
        %v2328 = vld [vmem:[%s3 + $0x28] sm:$0xff]
        %v2329 = vld [vmem:[%s3 + $0x30] sm:$0xff]
        %v2330 = vld [vmem:[%s3 + $0x38] sm:$0xff]
        %v2331 = vld [vmem:[%s3 + $0x40] sm:$0xff]
        %v2332 = vld [vmem:[%s3 + $0x48] sm:$0xff]
        %v2333 = vld [vmem:[%s3 + $0x50] sm:$0xff]
        %v2334 = vld [vmem:[%s3 + $0x58] sm:$0xff]
        %v2335 = vld [vmem:[%s3 + $0x60] sm:$0xff]
        %v2336 = vld [vmem:[%s3 + $0x68] sm:$0xff]
        %v2337 = vld [vmem:[%s3 + $0x70] sm:$0xff]
        %v2338 = vld [vmem:[%s3 + $0x78] sm:$0xff]
        %v2339 = vld [vmem:[%s3 + $0x80] sm:$0xff]
        %v2340 = vld [vmem:[%s3 + $0x88] sm:$0xff]
        %v2341 = vld [vmem:[%s3 + $0x90] sm:$0xff]
        %v2342 = vld [vmem:[%s3 + $0x98] sm:$0xff]
        %v2343 = vld [vmem:[%s3 + $0xa0] sm:$0xff]
        %v2344 = vld [vmem:[%s3 + $0xa8] sm:$0xff]
        %v2345 = vld [vmem:[%s3 + $0xb0] sm:$0xff]
        %v2346 = vld [vmem:[%s3 + $0xb8] sm:$0xff]
        %v2347 = vld [vmem:[%s3 + $0xc0] sm:$0xff]
        %v2348 = vld [vmem:[%s3 + $0xc8] sm:$0xff]
        %v2349 = vld [vmem:[%s3 + $0xd0] sm:$0xff]
        %v2350 = vld [vmem:[%s3 + $0xd8] sm:$0xff]
        %v2351 = vld [vmem:[%s3 + $0xe0] sm:$0xff]
        %v2352 = vld [vmem:[%s3 + $0xe8] sm:$0xff]
        %v2353 = vld [vmem:[%s3 + $0xf0] sm:$0xff]
        %v2354 = vld [vmem:[%s3 + $0xf8] sm:$0xff]
        %v2355 = vld [vmem:[%s3 + $0x100] sm:$0xff]
        %v2356 = vld [vmem:[%s3 + $0x108] sm:$0xff]
        %v2357 = vld [vmem:[%s3 + $0x110] sm:$0xff]
        %v2358 = vld [vmem:[%s3 + $0x118] sm:$0xff]
        %v2359 = vld [vmem:[%s3 + $0x120] sm:$0xff]
        %v2360 = vld [vmem:[%s3 + $0x128] sm:$0xff]
        %v2361 = vld [vmem:[%s3 + $0x130] sm:$0xff]
        %v2362 = vld [vmem:[%s3 + $0x138] sm:$0xff]
        %v2363 = vld [vmem:[%s3 + $0x140] sm:$0xff]
        %v2364 = vld [vmem:[%s3 + $0x148] sm:$0xff]
        %v2365 = vld [vmem:[%s3 + $0x150] sm:$0xff]
        %v2366 = vld [vmem:[%s3 + $0x158] sm:$0xff]
        %v2367 = vld [vmem:[%s3 + $0x160] sm:$0xff]
        %v2368 = vld [vmem:[%s3 + $0x168] sm:$0xff]
        %v2369 = vld [vmem:[%s3 + $0x170] sm:$0xff]
        %v2370 = vld [vmem:[%s3 + $0x178] sm:$0xff]
        %v2371 = vld [vmem:[%s3 + $0x180] sm:$0xff]
        %v2372 = vld [vmem:[%s3 + $0x188] sm:$0xff]
        %v2373 = vld [vmem:[%s3 + $0x190] sm:$0xff]
        %v2374 = vld [vmem:[%s3 + $0x198] sm:$0xff]
        %v2375 = vld [vmem:[%s3 + $0x1a0] sm:$0xff]
        %v2376 = vld [vmem:[%s3 + $0x1a8] sm:$0xff]
        %v2377 = vld [vmem:[%s3 + $0x1b0] sm:$0xff]
        %v2378 = vld [vmem:[%s3 + $0x1b8] sm:$0xff]
        %v2379 = vld [vmem:[%s3 + $0x1c0] sm:$0xff]
        %v2380 = vld [vmem:[%s3 + $0x1c8] sm:$0xff]
        %v2381 = vld [vmem:[%s3 + $0x1d0] sm:$0xff]
        %v2382 = vld [vmem:[%s3 + $0x1d8] sm:$0xff]
        %v2383 = vld [vmem:[%s3 + $0x1e0] sm:$0xff]
        %v2384 = vld [vmem:[%s3 + $0x1e8] sm:$0xff]
        %v2385 = vld [vmem:[%s3 + $0x1f0] sm:$0xff]
        %v2386 = vld [vmem:[%s3 + $0x1f8] sm:$0xff]
        %v2387 = vld [vmem:[%s4] sm:$0x3]
        %v2388 = vpack.c.bf16 %v2319, %v2319
        %v2389 = vpack.c.bf16 %v2320, %v2320
        %v2390 = vpack.c.bf16 %v2321, %v2321
        %v2391 = vpack.c.bf16 %v2322, %v2322
        %v2393 = vlaneseq
        %v2394 = vshrl.u32 %v2393, 7
        %v2395 = vsub.s32 0, %v2394
        %v2396 = vrot.slane %v2387, %v2395
        %v2397 = vlaneseq
        %v2398 = vshrl.u32 %v2397, 7
        %v2399 = vsub.s32 1, %v2398
        %v2400 = vrot.slane %v2387, %v2399
        %v2467 = vunpack.c.l.b16 %v2323
        %v2468 = vunpack.c.h.b16 %v2323
        %v2469 = vunpack.c.l.b16 %v2324
        %v2470 = vunpack.c.h.b16 %v2324
        %v2471 = vunpack.c.l.b16 %v2325
        %v2472 = vunpack.c.h.b16 %v2325
        %v2473 = vunpack.c.l.b16 %v2326
        %v2474 = vunpack.c.h.b16 %v2326
        %v2475 = vunpack.c.l.b16 %v2327
        %v2476 = vunpack.c.h.b16 %v2327
        %v2477 = vunpack.c.l.b16 %v2328
        %v2478 = vunpack.c.h.b16 %v2328
        %v2479 = vunpack.c.l.b16 %v2329
        %v2480 = vunpack.c.h.b16 %v2329
        %v2481 = vunpack.c.l.b16 %v2330
        %v2482 = vunpack.c.h.b16 %v2330
        %v2483 = vunpack.c.l.b16 %v2331
        %v2484 = vunpack.c.h.b16 %v2331
        %v2485 = vunpack.c.l.b16 %v2332
        %v2486 = vunpack.c.h.b16 %v2332
        %v2487 = vunpack.c.l.b16 %v2333
        %v2488 = vunpack.c.h.b16 %v2333
        %v2489 = vunpack.c.l.b16 %v2334
        %v2490 = vunpack.c.h.b16 %v2334
        %v2491 = vunpack.c.l.b16 %v2335
        %v2492 = vunpack.c.h.b16 %v2335
        %v2493 = vunpack.c.l.b16 %v2336
        %v2494 = vunpack.c.h.b16 %v2336
        %v2495 = vunpack.c.l.b16 %v2337
        %v2496 = vunpack.c.h.b16 %v2337
        %v2497 = vunpack.c.l.b16 %v2338
        %v2498 = vunpack.c.h.b16 %v2338
        %v2499 = vunpack.c.l.b16 %v2339
        %v2500 = vunpack.c.h.b16 %v2339
        %v2501 = vunpack.c.l.b16 %v2340
        %v2502 = vunpack.c.h.b16 %v2340
        %v2503 = vunpack.c.l.b16 %v2341
        %v2504 = vunpack.c.h.b16 %v2341
        %v2505 = vunpack.c.l.b16 %v2342
        %v2506 = vunpack.c.h.b16 %v2342
        %v2507 = vunpack.c.l.b16 %v2343
        %v2508 = vunpack.c.h.b16 %v2343
        %v2509 = vunpack.c.l.b16 %v2344
        %v2510 = vunpack.c.h.b16 %v2344
        %v2511 = vunpack.c.l.b16 %v2345
        %v2512 = vunpack.c.h.b16 %v2345
        %v2513 = vunpack.c.l.b16 %v2346
        %v2514 = vunpack.c.h.b16 %v2346
        %v2515 = vunpack.c.l.b16 %v2347
        %v2516 = vunpack.c.h.b16 %v2347
        %v2517 = vunpack.c.l.b16 %v2348
        %v2518 = vunpack.c.h.b16 %v2348
        %v2519 = vunpack.c.l.b16 %v2349
        %v2520 = vunpack.c.h.b16 %v2349
        %v2521 = vunpack.c.l.b16 %v2350
        %v2522 = vunpack.c.h.b16 %v2350
        %v2523 = vunpack.c.l.b16 %v2351
        %v2524 = vunpack.c.h.b16 %v2351
        %v2525 = vunpack.c.l.b16 %v2352
        %v2526 = vunpack.c.h.b16 %v2352
        %v2527 = vunpack.c.l.b16 %v2353
        %v2528 = vunpack.c.h.b16 %v2353
        %v2529 = vunpack.c.l.b16 %v2354
        %v2530 = vunpack.c.h.b16 %v2354
        %v2531 = vunpack.c.l.b16 %v2355
        %v2532 = vunpack.c.h.b16 %v2355
        %v2533 = vunpack.c.l.b16 %v2356
        %v2534 = vunpack.c.h.b16 %v2356
        %v2535 = vunpack.c.l.b16 %v2357
        %v2536 = vunpack.c.h.b16 %v2357
        %v2537 = vunpack.c.l.b16 %v2358
        %v2538 = vunpack.c.h.b16 %v2358
        %v2539 = vunpack.c.l.b16 %v2359
        %v2540 = vunpack.c.h.b16 %v2359
        %v2541 = vunpack.c.l.b16 %v2360
        %v2542 = vunpack.c.h.b16 %v2360
        %v2543 = vunpack.c.l.b16 %v2361
        %v2544 = vunpack.c.h.b16 %v2361
        %v2545 = vunpack.c.l.b16 %v2362
        %v2546 = vunpack.c.h.b16 %v2362
        %v2547 = vunpack.c.l.b16 %v2363
        %v2548 = vunpack.c.h.b16 %v2363
        %v2549 = vunpack.c.l.b16 %v2364
        %v2550 = vunpack.c.h.b16 %v2364
        %v2551 = vunpack.c.l.b16 %v2365
        %v2552 = vunpack.c.h.b16 %v2365
        %v2553 = vunpack.c.l.b16 %v2366
        %v2554 = vunpack.c.h.b16 %v2366
        %v2555 = vunpack.c.l.b16 %v2367
        %v2556 = vunpack.c.h.b16 %v2367
        %v2557 = vunpack.c.l.b16 %v2368
        %v2558 = vunpack.c.h.b16 %v2368
        %v2559 = vunpack.c.l.b16 %v2369
        %v2560 = vunpack.c.h.b16 %v2369
        %v2561 = vunpack.c.l.b16 %v2370
        %v2562 = vunpack.c.h.b16 %v2370
        %v2563 = vunpack.c.l.b16 %v2371
        %v2564 = vunpack.c.h.b16 %v2371
        %v2565 = vunpack.c.l.b16 %v2372
        %v2566 = vunpack.c.h.b16 %v2372
        %v2567 = vunpack.c.l.b16 %v2373
        %v2568 = vunpack.c.h.b16 %v2373
        %v2569 = vunpack.c.l.b16 %v2374
        %v2570 = vunpack.c.h.b16 %v2374
        %v2571 = vunpack.c.l.b16 %v2375
        %v2572 = vunpack.c.h.b16 %v2375
        %v2573 = vunpack.c.l.b16 %v2376
        %v2574 = vunpack.c.h.b16 %v2376
        %v2575 = vunpack.c.l.b16 %v2377
        %v2576 = vunpack.c.h.b16 %v2377
        %v2577 = vunpack.c.l.b16 %v2378
        %v2578 = vunpack.c.h.b16 %v2378
        %v2579 = vunpack.c.l.b16 %v2379
        %v2580 = vunpack.c.h.b16 %v2379
        %v2581 = vunpack.c.l.b16 %v2380
        %v2582 = vunpack.c.h.b16 %v2380
        %v2583 = vunpack.c.l.b16 %v2381
        %v2584 = vunpack.c.h.b16 %v2381
        %v2585 = vunpack.c.l.b16 %v2382
        %v2586 = vunpack.c.h.b16 %v2382
        %v2587 = vunpack.c.l.b16 %v2383
        %v2588 = vunpack.c.h.b16 %v2383
        %v2589 = vunpack.c.l.b16 %v2384
        %v2590 = vunpack.c.h.b16 %v2384
        %v2591 = vunpack.c.l.b16 %v2385
        %v2592 = vunpack.c.h.b16 %v2385
        %v2593 = vunpack.c.l.b16 %v2386
        %v2594 = vunpack.c.h.b16 %v2386
        %v2595 = vpack.c.b16 %v2469, %v2467
        %v2596 = vpack.c.b16 %v2470, %v2468
        %v2597 = vpack.c.b16 %v2473, %v2471
        %v2598 = vpack.c.b16 %v2474, %v2472
        %v2599 = vpack.c.b16 %v2477, %v2475
        %v2600 = vpack.c.b16 %v2478, %v2476
        %v2601 = vpack.c.b16 %v2481, %v2479
        %v2602 = vpack.c.b16 %v2482, %v2480
        %v2603 = vpack.c.b16 %v2485, %v2483
        %v2604 = vpack.c.b16 %v2486, %v2484
        %v2605 = vpack.c.b16 %v2489, %v2487
        %v2606 = vpack.c.b16 %v2490, %v2488
        %v2607 = vpack.c.b16 %v2493, %v2491
        %v2608 = vpack.c.b16 %v2494, %v2492
        %v2609 = vpack.c.b16 %v2497, %v2495
        %v2610 = vpack.c.b16 %v2498, %v2496
        %v2611 = vpack.c.b16 %v2501, %v2499
        %v2612 = vpack.c.b16 %v2502, %v2500
        %v2613 = vpack.c.b16 %v2505, %v2503
        %v2614 = vpack.c.b16 %v2506, %v2504
        %v2615 = vpack.c.b16 %v2509, %v2507
        %v2616 = vpack.c.b16 %v2510, %v2508
        %v2617 = vpack.c.b16 %v2513, %v2511
        %v2618 = vpack.c.b16 %v2514, %v2512
        %v2619 = vpack.c.b16 %v2517, %v2515
        %v2620 = vpack.c.b16 %v2518, %v2516
        %v2621 = vpack.c.b16 %v2521, %v2519
        %v2622 = vpack.c.b16 %v2522, %v2520
        %v2623 = vpack.c.b16 %v2525, %v2523
        %v2624 = vpack.c.b16 %v2526, %v2524
        %v2625 = vpack.c.b16 %v2529, %v2527
        %v2626 = vpack.c.b16 %v2530, %v2528
        %v2627 = vpack.c.b16 %v2533, %v2531
        %v2628 = vpack.c.b16 %v2534, %v2532
        %v2629 = vpack.c.b16 %v2537, %v2535
        %v2630 = vpack.c.b16 %v2538, %v2536
        %v2631 = vpack.c.b16 %v2541, %v2539
        %v2632 = vpack.c.b16 %v2542, %v2540
        %v2633 = vpack.c.b16 %v2545, %v2543
        %v2634 = vpack.c.b16 %v2546, %v2544
        %v2635 = vpack.c.b16 %v2549, %v2547
        %v2636 = vpack.c.b16 %v2550, %v2548
        %v2637 = vpack.c.b16 %v2553, %v2551
        %v2638 = vpack.c.b16 %v2554, %v2552
        %v2639 = vpack.c.b16 %v2557, %v2555
        %v2640 = vpack.c.b16 %v2558, %v2556
        %v2641 = vpack.c.b16 %v2561, %v2559
        %v2642 = vpack.c.b16 %v2562, %v2560
        %v2643 = vpack.c.b16 %v2565, %v2563
        %v2644 = vpack.c.b16 %v2566, %v2564
        %v2645 = vpack.c.b16 %v2569, %v2567
        %v2646 = vpack.c.b16 %v2570, %v2568
        %v2647 = vpack.c.b16 %v2573, %v2571
        %v2648 = vpack.c.b16 %v2574, %v2572
        %v2649 = vpack.c.b16 %v2577, %v2575
        %v2650 = vpack.c.b16 %v2578, %v2576
        %v2651 = vpack.c.b16 %v2581, %v2579
        %v2652 = vpack.c.b16 %v2582, %v2580
        %v2653 = vpack.c.b16 %v2585, %v2583
        %v2654 = vpack.c.b16 %v2586, %v2584
        %v2655 = vpack.c.b16 %v2589, %v2587
        %v2656 = vpack.c.b16 %v2590, %v2588
        %v2657 = vpack.c.b16 %v2593, %v2591
        %v2658 = vpack.c.b16 %v2594, %v2592
        %2723 = vmatprep.subr.bf16.mxu0 %v2596
        %2724 = vmatpush1.bf16.msra.mxu0 %v2595
        %2725 = vmatprep.subr.bf16.mxu0 %v2598
        %2726 = vmatpush1.bf16.msra.mxu0 %v2597
        %2727 = vmatprep.subr.bf16.mxu0 %v2600
        %2728 = vmatpush1.bf16.msra.mxu0 %v2599
        %2729 = vmatprep.subr.bf16.mxu0 %v2602
        %2730 = vmatpush1.bf16.msra.mxu0 %v2601
        %2731 = vmatprep.subr.bf16.mxu0 %v2604
        %2732 = vmatpush1.bf16.msra.mxu0 %v2603
        %2733 = vmatprep.subr.bf16.mxu0 %v2606
        %2734 = vmatpush1.bf16.msra.mxu0 %v2605
        %2735 = vmatprep.subr.bf16.mxu0 %v2608
        %2736 = vmatpush1.bf16.msra.mxu0 %v2607
        %2737 = vmatprep.subr.bf16.mxu0 %v2610
        %2738 = vmatpush1.bf16.msra.mxu0 %v2609
        %2739 = vmatprep.subr.bf16.mxu0 %v2612
        %2740 = vmatpush1.bf16.msra.mxu0 %v2611
        %2741 = vmatprep.subr.bf16.mxu0 %v2614
        %2742 = vmatpush1.bf16.msra.mxu0 %v2613
        %2743 = vmatprep.subr.bf16.mxu0 %v2616
        %2744 = vmatpush1.bf16.msra.mxu0 %v2615
        %2745 = vmatprep.subr.bf16.mxu0 %v2618
        %2746 = vmatpush1.bf16.msra.mxu0 %v2617
        %2747 = vmatprep.subr.bf16.mxu0 %v2620
        %2748 = vmatpush1.bf16.msra.mxu0 %v2619
        %2749 = vmatprep.subr.bf16.mxu0 %v2622
        %2750 = vmatpush1.bf16.msra.mxu0 %v2621
        %2751 = vmatprep.subr.bf16.mxu0 %v2624
        %2752 = vmatpush1.bf16.msra.mxu0 %v2623
        %2753 = vmatprep.subr.bf16.mxu0 %v2626
        %2754 = vmatpush1.bf16.msra.mxu0 %v2625
        %2755 = vmatprep.mubr.bf16.mxu0 %v2389
        %2756 = vmatmul.mubr.bf16.gmra.mrb[0].mxu0 %v2388
        %v2757 = vpop.f32.mrb[0].mxu0
        %v2758 = vadd.f32 %v2396, %v2757
        %v2759 = vpop.f32.mrb[0].mxu0
        %v2760 = vadd.f32 %v2400, %v2759
        %v2761 = vpop.f32.mrb[0].mxu0
        %v2762 = vpop.f32.mrb[0].mxu0
        %2763 = vdwg.mxu0
        %2764 = vmatprep.subr.bf16.mxu0 %v2628
        %2765 = vmatpush1.bf16.msra.mxu0 %v2627
        %2766 = vmatprep.subr.bf16.mxu0 %v2630
        %2767 = vmatpush1.bf16.msra.mxu0 %v2629
        %2768 = vmatprep.subr.bf16.mxu0 %v2632
        %2769 = vmatpush1.bf16.msra.mxu0 %v2631
        %2770 = vmatprep.subr.bf16.mxu0 %v2634
        %2771 = vmatpush1.bf16.msra.mxu0 %v2633
        %2772 = vmatprep.subr.bf16.mxu0 %v2636
        %2773 = vmatpush1.bf16.msra.mxu0 %v2635
        %2774 = vmatprep.subr.bf16.mxu0 %v2638
        %2775 = vmatpush1.bf16.msra.mxu0 %v2637
        %2776 = vmatprep.subr.bf16.mxu0 %v2640
        %2777 = vmatpush1.bf16.msra.mxu0 %v2639
        %2778 = vmatprep.subr.bf16.mxu0 %v2642
        %2779 = vmatpush1.bf16.msra.mxu0 %v2641
        %2780 = vmatprep.subr.bf16.mxu0 %v2644
        %2781 = vmatpush1.bf16.msra.mxu0 %v2643
        %2782 = vmatprep.subr.bf16.mxu0 %v2646
        %2783 = vmatpush1.bf16.msra.mxu0 %v2645
        %2784 = vmatprep.subr.bf16.mxu0 %v2648
        %2785 = vmatpush1.bf16.msra.mxu0 %v2647
        %2786 = vmatprep.subr.bf16.mxu0 %v2650
        %2787 = vmatpush1.bf16.msra.mxu0 %v2649
        %2788 = vmatprep.subr.bf16.mxu0 %v2652
        %2789 = vmatpush1.bf16.msra.mxu0 %v2651
        %2790 = vmatprep.subr.bf16.mxu0 %v2654
        %2791 = vmatpush1.bf16.msra.mxu0 %v2653
        %2792 = vmatprep.subr.bf16.mxu0 %v2656
        %2793 = vmatpush1.bf16.msra.mxu0 %v2655
        %2794 = vmatprep.subr.bf16.mxu0 %v2658
        %2795 = vmatpush1.bf16.msra.mxu0 %v2657
        %2796 = vmatprep.mubr.bf16.mxu0 %v2391
        %2797 = vmatmul.mubr.bf16.gmra.mrb[0].mxu0 %v2390
        %v2798 = vpop.f32.mrb[0].mxu0
        %v2799 = vadd.f32 %v2758, %v2798
        %v2800 = vpop.f32.mrb[0].mxu0
        %v2801 = vadd.f32 %v2760, %v2800
        %v2802 = vpop.f32.mrb[0].mxu0
        %v2803 = vpop.f32.mrb[0].mxu0
        %2804 = vdwg.mxu0
        %vm2805 = vcmp.gt.f32.partialorder %v2799, 20.0
        %vm2806 = vcmp.gt.f32.partialorder %v2801, 20.0
        %v2807 = vmul.f32 %v2799, 1.442695
        %v2808 = vpow.pop %v2807
        %v2809 = vmul.f32 %v2801, 1.442695
        %v2810 = vpow.pop %v2809
        %v2811 = vadd.f32 %v2808, 1.0
        %v2812 = vlog2.pop %v2811
        %v2813 = vmul.f32 %v2812, 0.6931472
        %v2814 = vmul.f32 -0.5, %v2808
        %v2815 = vadd.f32 %v2814, 1.0
        %v2816 = vmul.f32 %v2815, %v2808
        %v2817 = vand.u32 2147483647, %v2808
        %vm2818 = vcmp.lt.f32.partialorder %v2817, 0.0004427343
        %v2819 = vsel %vm2818, %v2816, %v2813
        %v2820 = vadd.f32 %v2810, 1.0
        %v2821 = vlog2.pop %v2820
        %v2822 = vmul.f32 %v2821, 0.6931472
        %v2823 = vmul.f32 -0.5, %v2810
        %v2824 = vadd.f32 %v2823, 1.0
        %v2825 = vmul.f32 %v2824, %v2810
        %v2826 = vand.u32 2147483647, %v2810
        %vm2827 = vcmp.lt.f32.partialorder %v2826, 0.0004427343
        %v2828 = vsel %vm2827, %v2825, %v2822
        %v2829 = vsel %vm2805, %v2799, %v2819
        %v2830 = vsel %vm2806, %v2801, %v2828
        %v2831 = vld [vmem:[%s5] sm:$0xf]
        %v2832 = vld [vmem:[%s5 + $0x4] sm:$0xf]
        %v2833 = vld [vmem:[%s5 + $0x8] sm:$0xf]
        %v2834 = vld [vmem:[%s5 + $0xc] sm:$0xf]
        %v2835 = vld [vmem:[%s5 + $0x10] sm:$0xf]
        %v2836 = vld [vmem:[%s5 + $0x14] sm:$0xf]
        %v2837 = vld [vmem:[%s5 + $0x18] sm:$0xf]
        %v2838 = vld [vmem:[%s5 + $0x1c] sm:$0xf]
        %v2839 = vld [vmem:[%s5 + $0x20] sm:$0xf]
        %v2840 = vld [vmem:[%s5 + $0x24] sm:$0xf]
        %v2841 = vld [vmem:[%s5 + $0x28] sm:$0xf]
        %v2842 = vld [vmem:[%s5 + $0x2c] sm:$0xf]
        %v2843 = vld [vmem:[%s5 + $0x30] sm:$0xf]
        %v2844 = vld [vmem:[%s5 + $0x34] sm:$0xf]
        %v2845 = vld [vmem:[%s5 + $0x38] sm:$0xf]
        %v2846 = vld [vmem:[%s5 + $0x3c] sm:$0xf]
        %v2847 = vld [vmem:[%s5 + $0x40] sm:$0xf]
        %v2848 = vld [vmem:[%s5 + $0x44] sm:$0xf]
        %v2849 = vld [vmem:[%s5 + $0x48] sm:$0xf]
        %v2850 = vld [vmem:[%s5 + $0x4c] sm:$0xf]
        %v2851 = vld [vmem:[%s5 + $0x50] sm:$0xf]
        %v2852 = vld [vmem:[%s5 + $0x54] sm:$0xf]
        %v2853 = vld [vmem:[%s5 + $0x58] sm:$0xf]
        %v2854 = vld [vmem:[%s5 + $0x5c] sm:$0xf]
        %v2855 = vld [vmem:[%s5 + $0x60] sm:$0xf]
        %v2856 = vld [vmem:[%s5 + $0x64] sm:$0xf]
        %v2857 = vld [vmem:[%s5 + $0x68] sm:$0xf]
        %v2858 = vld [vmem:[%s5 + $0x6c] sm:$0xf]
        %v2859 = vld [vmem:[%s5 + $0x70] sm:$0xf]
        %v2860 = vld [vmem:[%s5 + $0x74] sm:$0xf]
        %v2861 = vld [vmem:[%s5 + $0x78] sm:$0xf]
        %v2862 = vld [vmem:[%s5 + $0x7c] sm:$0xf]
        %v2863 = vld [vmem:[%s6] sm:$0x1]
        %v2864 = vpack.c.bf16 %v2829, %v2829
        %v2865 = vpack.c.bf16 %v2830, %v2830
        %v2867 = vlaneseq
        %v2868 = vshrl.u32 %v2867, 7
        %v2869 = vsub.s32 0, %v2868
        %v2870 = vrot.slane %v2863, %v2869
        %v2904 = vunpack.c.l.b16 %v2831
        %v2905 = vunpack.c.l.b16 %v2832
        %v2906 = vunpack.c.l.b16 %v2833
        %v2907 = vunpack.c.l.b16 %v2834
        %v2908 = vunpack.c.l.b16 %v2835
        %v2909 = vunpack.c.l.b16 %v2836
        %v2910 = vunpack.c.l.b16 %v2837
        %v2911 = vunpack.c.l.b16 %v2838
        %v2912 = vunpack.c.l.b16 %v2839
        %v2913 = vunpack.c.l.b16 %v2840
        %v2914 = vunpack.c.l.b16 %v2841
        %v2915 = vunpack.c.l.b16 %v2842
        %v2916 = vunpack.c.l.b16 %v2843
        %v2917 = vunpack.c.l.b16 %v2844
        %v2918 = vunpack.c.l.b16 %v2845
        %v2919 = vunpack.c.l.b16 %v2846
        %v2920 = vunpack.c.l.b16 %v2847
        %v2921 = vunpack.c.l.b16 %v2848
        %v2922 = vunpack.c.l.b16 %v2849
        %v2923 = vunpack.c.l.b16 %v2850
        %v2924 = vunpack.c.l.b16 %v2851
        %v2925 = vunpack.c.l.b16 %v2852
        %v2926 = vunpack.c.l.b16 %v2853
        %v2927 = vunpack.c.l.b16 %v2854
        %v2928 = vunpack.c.l.b16 %v2855
        %v2929 = vunpack.c.l.b16 %v2856
        %v2930 = vunpack.c.l.b16 %v2857
        %v2931 = vunpack.c.l.b16 %v2858
        %v2932 = vunpack.c.l.b16 %v2859
        %v2933 = vunpack.c.l.b16 %v2860
        %v2934 = vunpack.c.l.b16 %v2861
        %v2935 = vunpack.c.l.b16 %v2862
        %v2936 = vpack.c.b16 %v2905, %v2904
        %v2937 = vpack.c.b16 %v2907, %v2906
        %v2938 = vpack.c.b16 %v2909, %v2908
        %v2939 = vpack.c.b16 %v2911, %v2910
        %v2940 = vpack.c.b16 %v2913, %v2912
        %v2941 = vpack.c.b16 %v2915, %v2914
        %v2942 = vpack.c.b16 %v2917, %v2916
        %v2943 = vpack.c.b16 %v2919, %v2918
        %v2944 = vpack.c.b16 %v2921, %v2920
        %v2945 = vpack.c.b16 %v2923, %v2922
        %v2946 = vpack.c.b16 %v2925, %v2924
        %v2947 = vpack.c.b16 %v2927, %v2926
        %v2948 = vpack.c.b16 %v2929, %v2928
        %v2949 = vpack.c.b16 %v2931, %v2930
        %v2950 = vpack.c.b16 %v2933, %v2932
        %v2951 = vpack.c.b16 %v2935, %v2934
        %2968 = vmatprep.subr.bf16.mxu0 0
        %2969 = vmatpush1.bf16.msra.mxu0 %v2936
        %2970 = vmatprep.subr.bf16.mxu0 0
        %2971 = vmatpush1.bf16.msra.mxu0 %v2937
        %2972 = vmatprep.subr.bf16.mxu0 0
        %2973 = vmatpush1.bf16.msra.mxu0 %v2938
        %2974 = vmatprep.subr.bf16.mxu0 0
        %2975 = vmatpush1.bf16.msra.mxu0 %v2939
        %2976 = vmatprep.subr.bf16.mxu0 0
        %2977 = vmatpush1.bf16.msra.mxu0 %v2940
        %2978 = vmatprep.subr.bf16.mxu0 0
        %2979 = vmatpush1.bf16.msra.mxu0 %v2941
        %2980 = vmatprep.subr.bf16.mxu0 0
        %2981 = vmatpush1.bf16.msra.mxu0 %v2942
        %2982 = vmatprep.subr.bf16.mxu0 0
        %2983 = vmatpush1.bf16.msra.mxu0 %v2943
        %2984 = vmatprep.subr.bf16.mxu0 0
        %2985 = vmatpush1.bf16.msra.mxu0 %v2944
        %2986 = vmatprep.subr.bf16.mxu0 0
        %2987 = vmatpush1.bf16.msra.mxu0 %v2945
        %2988 = vmatprep.subr.bf16.mxu0 0
        %2989 = vmatpush1.bf16.msra.mxu0 %v2946
        %2990 = vmatprep.subr.bf16.mxu0 0
        %2991 = vmatpush1.bf16.msra.mxu0 %v2947
        %2992 = vmatprep.subr.bf16.mxu0 0
        %2993 = vmatpush1.bf16.msra.mxu0 %v2948
        %2994 = vmatprep.subr.bf16.mxu0 0
        %2995 = vmatpush1.bf16.msra.mxu0 %v2949
        %2996 = vmatprep.subr.bf16.mxu0 0
        %2997 = vmatpush1.bf16.msra.mxu0 %v2950
        %2998 = vmatprep.subr.bf16.mxu0 0
        %2999 = vmatpush1.bf16.msra.mxu0 %v2951
        %3000 = vmatprep.mubr.bf16.mxu0 %v2865
        %3001 = vmatmul.mubr.bf16.gmra.mrb[0].mxu0 %v2864
        %v3002 = vpop.f32.mrb[0].mxu0
        %v3003 = vadd.f32 %v2870, %v3002
        %v3004 = vpop.f32.mrb[0].mxu0
        %v3005 = vpop.f32.mrb[0].mxu0
        %v3006 = vpop.f32.mrb[0].mxu0
        %3007 = vdwg.mxu0
        %vm3008 = vcmp.gt.f32.partialorder %v3003, 20.0
        %v3009 = vmul.f32 %v3003, 1.442695
        %v3010 = vpow.pop %v3009
        %v3011 = vadd.f32 %v3010, 1.0
        %v3012 = vlog2.pop %v3011
        %v3013 = vmul.f32 %v3012, 0.6931472
        %v3014 = vmul.f32 -0.5, %v3010
        %v3015 = vadd.f32 %v3014, 1.0
        %v3016 = vmul.f32 %v3015, %v3010
        %v3017 = vand.u32 2147483647, %v3010
        %vm3018 = vcmp.lt.f32.partialorder %v3017, 0.0004427343
        %v3019 = vsel %vm3018, %v3016, %v3013
        %v3020 = vsel %vm3008, %v3003, %v3019
        %v3021 = vld [vmem:[%s7] sm:$0xf]
        %v3022 = vld [vmem:[%s7 + $0x4] sm:$0xf]
        %v3023 = vld [vmem:[%s7 + $0x8] sm:$0xf]
        %v3024 = vld [vmem:[%s7 + $0xc] sm:$0xf]
        %v3025 = vld [vmem:[%s7 + $0x10] sm:$0xf]
        %v3026 = vld [vmem:[%s7 + $0x14] sm:$0xf]
        %v3027 = vld [vmem:[%s7 + $0x18] sm:$0xf]
        %v3028 = vld [vmem:[%s7 + $0x1c] sm:$0xf]
        %v3029 = vld [vmem:[%s7 + $0x20] sm:$0xf]
        %v3030 = vld [vmem:[%s7 + $0x24] sm:$0xf]
        %v3031 = vld [vmem:[%s7 + $0x28] sm:$0xf]
        %v3032 = vld [vmem:[%s7 + $0x2c] sm:$0xf]
        %v3033 = vld [vmem:[%s7 + $0x30] sm:$0xf]
        %v3034 = vld [vmem:[%s7 + $0x34] sm:$0xf]
        %v3035 = vld [vmem:[%s7 + $0x38] sm:$0xf]
        %v3036 = vld [vmem:[%s7 + $0x3c] sm:$0xf]
        %v3037 = vld [vmem:[%s8] sm:$0x1]
        %v3038 = vpack.c.bf16 %v3020, %v3020
        %v3040 = vlaneseq
        %v3041 = vshrl.u32 %v3040, 7
        %v3042 = vsub.s32 0, %v3041
        %v3043 = vrot.slane %v3037, %v3042
        %v3061 = vunpack.c.l.b16 %v3021
        %v3062 = vunpack.c.l.b16 %v3022
        %v3063 = vunpack.c.l.b16 %v3023
        %v3064 = vunpack.c.l.b16 %v3024
        %v3065 = vunpack.c.l.b16 %v3025
        %v3066 = vunpack.c.l.b16 %v3026
        %v3067 = vunpack.c.l.b16 %v3027
        %v3068 = vunpack.c.l.b16 %v3028
        %v3069 = vunpack.c.l.b16 %v3029
        %v3070 = vunpack.c.l.b16 %v3030
        %v3071 = vunpack.c.l.b16 %v3031
        %v3072 = vunpack.c.l.b16 %v3032
        %v3073 = vunpack.c.l.b16 %v3033
        %v3074 = vunpack.c.l.b16 %v3034
        %v3075 = vunpack.c.l.b16 %v3035
        %v3076 = vunpack.c.l.b16 %v3036
        %v3077 = vpack.c.b16 %v3062, %v3061
        %v3078 = vpack.c.b16 %v3064, %v3063
        %v3079 = vpack.c.b16 %v3066, %v3065
        %v3080 = vpack.c.b16 %v3068, %v3067
        %v3081 = vpack.c.b16 %v3070, %v3069
        %v3082 = vpack.c.b16 %v3072, %v3071
        %v3083 = vpack.c.b16 %v3074, %v3073
        %v3084 = vpack.c.b16 %v3076, %v3075
        %3093 = vmatprep.subr.bf16.mxu0 0
        %3094 = vmatpush1.bf16.msra.mxu0 %v3077
        %3095 = vmatprep.subr.bf16.mxu0 0
        %3096 = vmatpush1.bf16.msra.mxu0 %v3078
        %3097 = vmatprep.subr.bf16.mxu0 0
        %3098 = vmatpush1.bf16.msra.mxu0 %v3079
        %3099 = vmatprep.subr.bf16.mxu0 0
        %3100 = vmatpush1.bf16.msra.mxu0 %v3080
        %3101 = vmatprep.subr.bf16.mxu0 0
        %3102 = vmatpush1.bf16.msra.mxu0 %v3081
        %3103 = vmatprep.subr.bf16.mxu0 0
        %3104 = vmatpush1.bf16.msra.mxu0 %v3082
        %3105 = vmatprep.subr.bf16.mxu0 0
        %3106 = vmatpush1.bf16.msra.mxu0 %v3083
        %3107 = vmatprep.subr.bf16.mxu0 0
        %3108 = vmatpush1.bf16.msra.mxu0 %v3084
        %3109 = vmatprep.subr.bf16.mxu0 0
        %3110 = vmatpush1.bf16.msra.mxu0 0
        %3111 = vmatprep.subr.bf16.mxu0 0
        %3112 = vmatpush1.bf16.msra.mxu0 0
        %3113 = vmatprep.subr.bf16.mxu0 0
        %3114 = vmatpush1.bf16.msra.mxu0 0
        %3115 = vmatprep.subr.bf16.mxu0 0
        %3116 = vmatpush1.bf16.msra.mxu0 0
        %3117 = vmatprep.subr.bf16.mxu0 0
        %3118 = vmatpush1.bf16.msra.mxu0 0
        %3119 = vmatprep.subr.bf16.mxu0 0
        %3120 = vmatpush1.bf16.msra.mxu0 0
        %3121 = vmatprep.subr.bf16.mxu0 0
        %3122 = vmatpush1.bf16.msra.mxu0 0
        %3123 = vmatprep.subr.bf16.mxu0 0
        %3124 = vmatpush1.bf16.msra.mxu0 0
        %3125 = vmatprep.mubr.bf16.mxu0 0
        %3126 = vmatmul.mubr.bf16.gmra.mrb[0].mxu0 %v3038
        %v3127 = vpop.f32.mrb[0].mxu0
        %v3128 = vadd.f32 %v3043, %v3127
        %v3129 = vpop.f32.mrb[0].mxu0
        %v3130 = vpop.f32.mrb[0].mxu0
        %v3131 = vpop.f32.mrb[0].mxu0
        %3132 = vdwg.mxu0
        %vm3133 = vcmp.gt.f32.partialorder %v3128, 20.0
        %v3134 = vmul.f32 %v3128, 1.442695
        %v3135 = vpow.pop %v3134
        %v3136 = vadd.f32 %v3135, 1.0
        %v3137 = vlog2.pop %v3136
        %v3138 = vmul.f32 %v3137, 0.6931472
        %v3139 = vmul.f32 -0.5, %v3135
        %v3140 = vadd.f32 %v3139, 1.0
        %v3141 = vmul.f32 %v3140, %v3135
        %v3142 = vand.u32 2147483647, %v3135
        %vm3143 = vcmp.lt.f32.partialorder %v3142, 0.0004427343
        %v3144 = vsel %vm3143, %v3141, %v3138
        %v3145 = vsel %vm3133, %v3128, %v3144
        %v3146 = vld [vmem:[%s9] sm:$0xf]
        %v3147 = vld [vmem:[%s9 + $0x4] sm:$0xf]
        %v3148 = vld [vmem:[%s9 + $0x8] sm:$0xf]
        %v3149 = vld [vmem:[%s9 + $0xc] sm:$0xf]
        %v3150 = vld [vmem:[%s10] sm:$0x1]
        %v3151 = vpack.c.bf16 %v3145, %v3145
        %v3153 = vlaneseq
        %v3154 = vshrl.u32 %v3153, 7
        %v3155 = vsub.s32 0, %v3154
        %v3156 = vrot.slane %v3150, %v3155
        %v3162 = vunpack.c.l.b16 %v3146
        %v3163 = vunpack.c.l.b16 %v3147
        %v3164 = vunpack.c.l.b16 %v3148
        %v3165 = vunpack.c.l.b16 %v3149
        %v3166 = vpack.c.b16 %v3163, %v3162
        %v3167 = vpack.c.b16 %v3165, %v3164
        %vm3170 = vcmask 261120
        %v3172 = vsel %vm3170, %v3151, 0
        %3174 = vmatprep.subr.bf16.mxu0 0
        %3175 = vmatpush1.bf16.msra.mxu0 %v3166
        %3176 = vmatprep.subr.bf16.mxu0 0
        %3177 = vmatpush1.bf16.msra.mxu0 %v3167
        %3178 = vmatprep.subr.bf16.mxu0 0
        %3179 = vmatpush1.bf16.msra.mxu0 0
        %3180 = vmatprep.subr.bf16.mxu0 0
        %3181 = vmatpush1.bf16.msra.mxu0 0
        %3182 = vmatprep.subr.bf16.mxu0 0
        %3183 = vmatpush1.bf16.msra.mxu0 0
        %3184 = vmatprep.subr.bf16.mxu0 0
        %3185 = vmatpush1.bf16.msra.mxu0 0
        %3186 = vmatprep.subr.bf16.mxu0 0
        %3187 = vmatpush1.bf16.msra.mxu0 0
        %3188 = vmatprep.subr.bf16.mxu0 0
        %3189 = vmatpush1.bf16.msra.mxu0 0
        %3190 = vmatprep.subr.bf16.mxu0 0
        %3191 = vmatpush1.bf16.msra.mxu0 0
        %3192 = vmatprep.subr.bf16.mxu0 0
        %3193 = vmatpush1.bf16.msra.mxu0 0
        %3194 = vmatprep.subr.bf16.mxu0 0
        %3195 = vmatpush1.bf16.msra.mxu0 0
        %3196 = vmatprep.subr.bf16.mxu0 0
        %3197 = vmatpush1.bf16.msra.mxu0 0
        %3198 = vmatprep.subr.bf16.mxu0 0
        %3199 = vmatpush1.bf16.msra.mxu0 0
        %3200 = vmatprep.subr.bf16.mxu0 0
        %3201 = vmatpush1.bf16.msra.mxu0 0
        %3202 = vmatprep.subr.bf16.mxu0 0
        %3203 = vmatpush1.bf16.msra.mxu0 0
        %3204 = vmatprep.subr.bf16.mxu0 0
        %3205 = vmatpush1.bf16.msra.mxu0 0
        %3206 = vmatprep.mubr.bf16.mxu0 0
        %3207 = vmatmul.mubr.bf16.gmra.mrb[0].mxu0 %v3172
        %v3208 = vpop.f32.mrb[0].mxu0
        %v3209 = vadd.f32 %v3156, %v3208
        %v3210 = vpop.f32.mrb[0].mxu0
        %v3211 = vpop.f32.mrb[0].mxu0
        %v3212 = vpop.f32.mrb[0].mxu0
        %3213 = vdwg.mxu0
        %vm3214 = vcmp.gt.f32.partialorder %v3209, 20.0
        %v3215 = vmul.f32 %v3209, 1.442695
        %v3216 = vpow.pop %v3215
        %v3217 = vadd.f32 %v3216, 1.0
        %v3218 = vlog2.pop %v3217
        %v3219 = vmul.f32 %v3218, 0.6931472
        %v3220 = vmul.f32 -0.5, %v3216
        %v3221 = vadd.f32 %v3220, 1.0
        %v3222 = vmul.f32 %v3221, %v3216
        %v3223 = vand.u32 2147483647, %v3216
        %vm3224 = vcmp.lt.f32.partialorder %v3223, 0.0004427343
        %v3225 = vsel %vm3224, %v3222, %v3219
        %v3226 = vsel %vm3214, %v3209, %v3225
        %v3227 = vld [vmem:[%s11] sm:$0xff]
        %v3228 = vld [vmem:[%s11 + $0x8] sm:$0xff]
        %v3229 = vld [vmem:[%s11 + $0x10] sm:$0xff]
        %v3230 = vld [vmem:[%s11 + $0x18] sm:$0xff]
        %v3231 = vld [vmem:[%s11 + $0x20] sm:$0xff]
        %v3232 = vld [vmem:[%s11 + $0x28] sm:$0xff]
        %v3233 = vld [vmem:[%s11 + $0x30] sm:$0xff]
        %v3234 = vld [vmem:[%s11 + $0x38] sm:$0xff]
        %v3235 = vld [vmem:[%s11 + $0x40] sm:$0xff]
        %v3236 = vld [vmem:[%s11 + $0x48] sm:$0xff]
        %v3237 = vld [vmem:[%s11 + $0x50] sm:$0xff]
        %v3238 = vld [vmem:[%s11 + $0x58] sm:$0xff]
        %v3239 = vld [vmem:[%s11 + $0x60] sm:$0xff]
        %v3240 = vld [vmem:[%s11 + $0x68] sm:$0xff]
        %v3241 = vld [vmem:[%s11 + $0x70] sm:$0xff]
        %v3242 = vld [vmem:[%s11 + $0x78] sm:$0xff]
        %v3243 = vld [vmem:[%s12] sm:$0x3]
        %v3244 = vpack.c.bf16 %v3226, %v3226
        %v3246 = vlaneseq
        %v3247 = vshrl.u32 %v3246, 7
        %v3248 = vsub.s32 0, %v3247
        %v3249 = vrot.slane %v3243, %v3248
        %v3250 = vlaneseq
        %v3251 = vshrl.u32 %v3250, 7
        %v3252 = vsub.s32 1, %v3251
        %v3253 = vrot.slane %v3243, %v3252
        %v3272 = vunpack.c.l.b16 %v3227
        %v3273 = vunpack.c.h.b16 %v3227
        %v3274 = vunpack.c.l.b16 %v3228
        %v3275 = vunpack.c.h.b16 %v3228
        %v3276 = vunpack.c.l.b16 %v3229
        %v3277 = vunpack.c.h.b16 %v3229
        %v3278 = vunpack.c.l.b16 %v3230
        %v3279 = vunpack.c.h.b16 %v3230
        %v3280 = vunpack.c.l.b16 %v3231
        %v3281 = vunpack.c.h.b16 %v3231
        %v3282 = vunpack.c.l.b16 %v3232
        %v3283 = vunpack.c.h.b16 %v3232
        %v3284 = vunpack.c.l.b16 %v3233
        %v3285 = vunpack.c.h.b16 %v3233
        %v3286 = vunpack.c.l.b16 %v3234
        %v3287 = vunpack.c.h.b16 %v3234
        %v3288 = vunpack.c.l.b16 %v3235
        %v3289 = vunpack.c.h.b16 %v3235
        %v3290 = vunpack.c.l.b16 %v3236
        %v3291 = vunpack.c.h.b16 %v3236
        %v3292 = vunpack.c.l.b16 %v3237
        %v3293 = vunpack.c.h.b16 %v3237
        %v3294 = vunpack.c.l.b16 %v3238
        %v3295 = vunpack.c.h.b16 %v3238
        %v3296 = vunpack.c.l.b16 %v3239
        %v3297 = vunpack.c.h.b16 %v3239
        %v3298 = vunpack.c.l.b16 %v3240
        %v3299 = vunpack.c.h.b16 %v3240
        %v3300 = vunpack.c.l.b16 %v3241
        %v3301 = vunpack.c.h.b16 %v3241
        %v3302 = vunpack.c.l.b16 %v3242
        %v3303 = vunpack.c.h.b16 %v3242
        %v3304 = vpack.c.b16 %v3274, %v3272
        %v3305 = vpack.c.b16 %v3275, %v3273
        %v3306 = vpack.c.b16 %v3278, %v3276
        %v3307 = vpack.c.b16 %v3279, %v3277
        %v3308 = vpack.c.b16 %v3282, %v3280
        %v3309 = vpack.c.b16 %v3283, %v3281
        %v3310 = vpack.c.b16 %v3286, %v3284
        %v3311 = vpack.c.b16 %v3287, %v3285
        %v3312 = vpack.c.b16 %v3290, %v3288
        %v3313 = vpack.c.b16 %v3291, %v3289
        %v3314 = vpack.c.b16 %v3294, %v3292
        %v3315 = vpack.c.b16 %v3295, %v3293
        %v3316 = vpack.c.b16 %v3298, %v3296
        %v3317 = vpack.c.b16 %v3299, %v3297
        %v3318 = vpack.c.b16 %v3302, %v3300
        %v3319 = vpack.c.b16 %v3303, %v3301
        %3336 = vmatprep.subr.bf16.mxu0 %v3305
        %3337 = vmatpush1.bf16.msra.mxu0 %v3304
        %3338 = vmatprep.subr.bf16.mxu0 %v3307
        %3339 = vmatpush1.bf16.msra.mxu0 %v3306
        %3340 = vmatprep.subr.bf16.mxu0 %v3309
        %3341 = vmatpush1.bf16.msra.mxu0 %v3308
        %3342 = vmatprep.subr.bf16.mxu0 %v3311
        %3343 = vmatpush1.bf16.msra.mxu0 %v3310
        %3344 = vmatprep.subr.bf16.mxu0 %v3313
        %3345 = vmatpush1.bf16.msra.mxu0 %v3312
        %3346 = vmatprep.subr.bf16.mxu0 %v3315
        %3347 = vmatpush1.bf16.msra.mxu0 %v3314
        %3348 = vmatprep.subr.bf16.mxu0 %v3317
        %3349 = vmatpush1.bf16.msra.mxu0 %v3316
        %3350 = vmatprep.subr.bf16.mxu0 %v3319
        %3351 = vmatpush1.bf16.msra.mxu0 %v3318
        %3352 = vmatprep.subr.bf16.mxu0 0
        %3353 = vmatpush1.bf16.msra.mxu0 0
        %3354 = vmatprep.subr.bf16.mxu0 0
        %3355 = vmatpush1.bf16.msra.mxu0 0
        %3356 = vmatprep.subr.bf16.mxu0 0
        %3357 = vmatpush1.bf16.msra.mxu0 0
        %3358 = vmatprep.subr.bf16.mxu0 0
        %3359 = vmatpush1.bf16.msra.mxu0 0
        %3360 = vmatprep.subr.bf16.mxu0 0
        %3361 = vmatpush1.bf16.msra.mxu0 0
        %3362 = vmatprep.subr.bf16.mxu0 0
        %3363 = vmatpush1.bf16.msra.mxu0 0
        %3364 = vmatprep.subr.bf16.mxu0 0
        %3365 = vmatpush1.bf16.msra.mxu0 0
        %3366 = vmatprep.subr.bf16.mxu0 0
        %3367 = vmatpush1.bf16.msra.mxu0 0
        %3368 = vmatprep.mubr.bf16.mxu0 0
        %3369 = vmatmul.mubr.bf16.gmra.mrb[0].mxu0 %v3244
        %v3370 = vpop.f32.mrb[0].mxu0
        %v3371 = vadd.f32 %v3249, %v3370
        %v3372 = vpop.f32.mrb[0].mxu0
        %v3373 = vadd.f32 %v3253, %v3372
        %v3374 = vpop.f32.mrb[0].mxu0
        %v3375 = vpop.f32.mrb[0].mxu0
        %3376 = vdwg.mxu0
        %vm3377 = vcmp.gt.f32.partialorder %v3371, 20.0
        %vm3378 = vcmp.gt.f32.partialorder %v3373, 20.0
        %v3379 = vmul.f32 %v3371, 1.442695
        %v3380 = vpow.pop %v3379
        %v3381 = vmul.f32 %v3373, 1.442695
        %v3382 = vpow.pop %v3381
        %v3383 = vadd.f32 %v3380, 1.0
        %v3384 = vlog2.pop %v3383
        %v3385 = vmul.f32 %v3384, 0.6931472
        %v3386 = vmul.f32 -0.5, %v3380
        %v3387 = vadd.f32 %v3386, 1.0
        %v3388 = vmul.f32 %v3387, %v3380
        %v3389 = vand.u32 2147483647, %v3380
        %vm3390 = vcmp.lt.f32.partialorder %v3389, 0.0004427343
        %v3391 = vsel %vm3390, %v3388, %v3385
        %v3392 = vadd.f32 %v3382, 1.0
        %v3393 = vlog2.pop %v3392
        %v3394 = vmul.f32 %v3393, 0.6931472
        %v3395 = vmul.f32 -0.5, %v3382
        %v3396 = vadd.f32 %v3395, 1.0
        %v3397 = vmul.f32 %v3396, %v3382
        %v3398 = vand.u32 2147483647, %v3382
        %vm3399 = vcmp.lt.f32.partialorder %v3398, 0.0004427343
        %v3400 = vsel %vm3399, %v3397, %v3394
        %v3401 = vsel %vm3377, %v3371, %v3391
        %v3402 = vsel %vm3378, %v3373, %v3400
        %v3403 = vld [vmem:[%s13] sm:$0xff]
        %v3404 = vld [vmem:[%s13 + $0x8] sm:$0xff]
        %v3405 = vld [vmem:[%s13 + $0x10] sm:$0xff]
        %v3406 = vld [vmem:[%s13 + $0x18] sm:$0xff]
        %v3407 = vld [vmem:[%s13 + $0x20] sm:$0xff]
        %v3408 = vld [vmem:[%s13 + $0x28] sm:$0xff]
        %v3409 = vld [vmem:[%s13 + $0x30] sm:$0xff]
        %v3410 = vld [vmem:[%s13 + $0x38] sm:$0xff]
        %v3411 = vld [vmem:[%s13 + $0x40] sm:$0xff]
        %v3412 = vld [vmem:[%s13 + $0x48] sm:$0xff]
        %v3413 = vld [vmem:[%s13 + $0x50] sm:$0xff]
        %v3414 = vld [vmem:[%s13 + $0x58] sm:$0xff]
        %v3415 = vld [vmem:[%s13 + $0x60] sm:$0xff]
        %v3416 = vld [vmem:[%s13 + $0x68] sm:$0xff]
        %v3417 = vld [vmem:[%s13 + $0x70] sm:$0xff]
        %v3418 = vld [vmem:[%s13 + $0x78] sm:$0xff]
        %v3419 = vld [vmem:[%s13 + $0x80] sm:$0xff]
        %v3420 = vld [vmem:[%s13 + $0x88] sm:$0xff]
        %v3421 = vld [vmem:[%s13 + $0x90] sm:$0xff]
        %v3422 = vld [vmem:[%s13 + $0x98] sm:$0xff]
        %v3423 = vld [vmem:[%s13 + $0xa0] sm:$0xff]
        %v3424 = vld [vmem:[%s13 + $0xa8] sm:$0xff]
        %v3425 = vld [vmem:[%s13 + $0xb0] sm:$0xff]
        %v3426 = vld [vmem:[%s13 + $0xb8] sm:$0xff]
        %v3427 = vld [vmem:[%s13 + $0xc0] sm:$0xff]
        %v3428 = vld [vmem:[%s13 + $0xc8] sm:$0xff]
        %v3429 = vld [vmem:[%s13 + $0xd0] sm:$0xff]
        %v3430 = vld [vmem:[%s13 + $0xd8] sm:$0xff]
        %v3431 = vld [vmem:[%s13 + $0xe0] sm:$0xff]
        %v3432 = vld [vmem:[%s13 + $0xe8] sm:$0xff]
        %v3433 = vld [vmem:[%s13 + $0xf0] sm:$0xff]
        %v3434 = vld [vmem:[%s13 + $0xf8] sm:$0xff]
        %v3435 = vld [vmem:[%s13 + $0x100] sm:$0xff]
        %v3436 = vld [vmem:[%s13 + $0x108] sm:$0xff]
        %v3437 = vld [vmem:[%s13 + $0x110] sm:$0xff]
        %v3438 = vld [vmem:[%s13 + $0x118] sm:$0xff]
        %v3439 = vld [vmem:[%s13 + $0x120] sm:$0xff]
        %v3440 = vld [vmem:[%s13 + $0x128] sm:$0xff]
        %v3441 = vld [vmem:[%s13 + $0x130] sm:$0xff]
        %v3442 = vld [vmem:[%s13 + $0x138] sm:$0xff]
        %v3443 = vld [vmem:[%s13 + $0x140] sm:$0xff]
        %v3444 = vld [vmem:[%s13 + $0x148] sm:$0xff]
        %v3445 = vld [vmem:[%s13 + $0x150] sm:$0xff]
        %v3446 = vld [vmem:[%s13 + $0x158] sm:$0xff]
        %v3447 = vld [vmem:[%s13 + $0x160] sm:$0xff]
        %v3448 = vld [vmem:[%s13 + $0x168] sm:$0xff]
        %v3449 = vld [vmem:[%s13 + $0x170] sm:$0xff]
        %v3450 = vld [vmem:[%s13 + $0x178] sm:$0xff]
        %v3451 = vld [vmem:[%s13 + $0x180] sm:$0xff]
        %v3452 = vld [vmem:[%s13 + $0x188] sm:$0xff]
        %v3453 = vld [vmem:[%s13 + $0x190] sm:$0xff]
        %v3454 = vld [vmem:[%s13 + $0x198] sm:$0xff]
        %v3455 = vld [vmem:[%s13 + $0x1a0] sm:$0xff]
        %v3456 = vld [vmem:[%s13 + $0x1a8] sm:$0xff]
        %v3457 = vld [vmem:[%s13 + $0x1b0] sm:$0xff]
        %v3458 = vld [vmem:[%s13 + $0x1b8] sm:$0xff]
        %v3459 = vld [vmem:[%s13 + $0x1c0] sm:$0xff]
        %v3460 = vld [vmem:[%s13 + $0x1c8] sm:$0xff]
        %v3461 = vld [vmem:[%s13 + $0x1d0] sm:$0xff]
        %v3462 = vld [vmem:[%s13 + $0x1d8] sm:$0xff]
        %v3463 = vld [vmem:[%s13 + $0x1e0] sm:$0xff]
        %v3464 = vld [vmem:[%s13 + $0x1e8] sm:$0xff]
        %v3465 = vld [vmem:[%s13 + $0x1f0] sm:$0xff]
        %v3466 = vld [vmem:[%s13 + $0x1f8] sm:$0xff]
        %v3467 = vld [vmem:[%s14] sm:$0xf]
        %v3468 = vpack.c.bf16 %v3401, %v3401
        %v3469 = vpack.c.bf16 %v3402, %v3402
        %v3471 = vlaneseq
        %v3472 = vshrl.u32 %v3471, 7
        %v3473 = vsub.s32 0, %v3472
        %v3474 = vrot.slane %v3467, %v3473
        %v3475 = vlaneseq
        %v3476 = vshrl.u32 %v3475, 7
        %v3477 = vsub.s32 1, %v3476
        %v3478 = vrot.slane %v3467, %v3477
        %v3479 = vlaneseq
        %v3480 = vshrl.u32 %v3479, 7
        %v3481 = vsub.s32 2, %v3480
        %v3482 = vrot.slane %v3467, %v3481
        %v3483 = vlaneseq
        %v3484 = vshrl.u32 %v3483, 7
        %v3485 = vsub.s32 3, %v3484
        %v3486 = vrot.slane %v3467, %v3485
        %v3555 = vunpack.c.l.b16 %v3403
        %v3556 = vunpack.c.h.b16 %v3403
        %v3557 = vunpack.c.l.b16 %v3404
        %v3558 = vunpack.c.h.b16 %v3404
        %v3559 = vunpack.c.l.b16 %v3405
        %v3560 = vunpack.c.h.b16 %v3405
        %v3561 = vunpack.c.l.b16 %v3406
        %v3562 = vunpack.c.h.b16 %v3406
        %v3563 = vunpack.c.l.b16 %v3407
        %v3564 = vunpack.c.h.b16 %v3407
        %v3565 = vunpack.c.l.b16 %v3408
        %v3566 = vunpack.c.h.b16 %v3408
        %v3567 = vunpack.c.l.b16 %v3409
        %v3568 = vunpack.c.h.b16 %v3409
        %v3569 = vunpack.c.l.b16 %v3410
        %v3570 = vunpack.c.h.b16 %v3410
        %v3571 = vunpack.c.l.b16 %v3411
        %v3572 = vunpack.c.h.b16 %v3411
        %v3573 = vunpack.c.l.b16 %v3412
        %v3574 = vunpack.c.h.b16 %v3412
        %v3575 = vunpack.c.l.b16 %v3413
        %v3576 = vunpack.c.h.b16 %v3413
        %v3577 = vunpack.c.l.b16 %v3414
        %v3578 = vunpack.c.h.b16 %v3414
        %v3579 = vunpack.c.l.b16 %v3415
        %v3580 = vunpack.c.h.b16 %v3415
        %v3581 = vunpack.c.l.b16 %v3416
        %v3582 = vunpack.c.h.b16 %v3416
        %v3583 = vunpack.c.l.b16 %v3417
        %v3584 = vunpack.c.h.b16 %v3417
        %v3585 = vunpack.c.l.b16 %v3418
        %v3586 = vunpack.c.h.b16 %v3418
        %v3587 = vunpack.c.l.b16 %v3419
        %v3588 = vunpack.c.h.b16 %v3419
        %v3589 = vunpack.c.l.b16 %v3420
        %v3590 = vunpack.c.h.b16 %v3420
        %v3591 = vunpack.c.l.b16 %v3421
        %v3592 = vunpack.c.h.b16 %v3421
        %v3593 = vunpack.c.l.b16 %v3422
        %v3594 = vunpack.c.h.b16 %v3422
        %v3595 = vunpack.c.l.b16 %v3423
        %v3596 = vunpack.c.h.b16 %v3423
        %v3597 = vunpack.c.l.b16 %v3424
        %v3598 = vunpack.c.h.b16 %v3424
        %v3599 = vunpack.c.l.b16 %v3425
        %v3600 = vunpack.c.h.b16 %v3425
        %v3601 = vunpack.c.l.b16 %v3426
        %v3602 = vunpack.c.h.b16 %v3426
        %v3603 = vunpack.c.l.b16 %v3427
        %v3604 = vunpack.c.h.b16 %v3427
        %v3605 = vunpack.c.l.b16 %v3428
        %v3606 = vunpack.c.h.b16 %v3428
        %v3607 = vunpack.c.l.b16 %v3429
        %v3608 = vunpack.c.h.b16 %v3429
        %v3609 = vunpack.c.l.b16 %v3430
        %v3610 = vunpack.c.h.b16 %v3430
        %v3611 = vunpack.c.l.b16 %v3431
        %v3612 = vunpack.c.h.b16 %v3431
        %v3613 = vunpack.c.l.b16 %v3432
        %v3614 = vunpack.c.h.b16 %v3432
        %v3615 = vunpack.c.l.b16 %v3433
        %v3616 = vunpack.c.h.b16 %v3433
        %v3617 = vunpack.c.l.b16 %v3434
        %v3618 = vunpack.c.h.b16 %v3434
        %v3619 = vunpack.c.l.b16 %v3435
        %v3620 = vunpack.c.h.b16 %v3435
        %v3621 = vunpack.c.l.b16 %v3436
        %v3622 = vunpack.c.h.b16 %v3436
        %v3623 = vunpack.c.l.b16 %v3437
        %v3624 = vunpack.c.h.b16 %v3437
        %v3625 = vunpack.c.l.b16 %v3438
        %v3626 = vunpack.c.h.b16 %v3438
        %v3627 = vunpack.c.l.b16 %v3439
        %v3628 = vunpack.c.h.b16 %v3439
        %v3629 = vunpack.c.l.b16 %v3440
        %v3630 = vunpack.c.h.b16 %v3440
        %v3631 = vunpack.c.l.b16 %v3441
        %v3632 = vunpack.c.h.b16 %v3441
        %v3633 = vunpack.c.l.b16 %v3442
        %v3634 = vunpack.c.h.b16 %v3442
        %v3635 = vunpack.c.l.b16 %v3443
        %v3636 = vunpack.c.h.b16 %v3443
        %v3637 = vunpack.c.l.b16 %v3444
        %v3638 = vunpack.c.h.b16 %v3444
        %v3639 = vunpack.c.l.b16 %v3445
        %v3640 = vunpack.c.h.b16 %v3445
        %v3641 = vunpack.c.l.b16 %v3446
        %v3642 = vunpack.c.h.b16 %v3446
        %v3643 = vunpack.c.l.b16 %v3447
        %v3644 = vunpack.c.h.b16 %v3447
        %v3645 = vunpack.c.l.b16 %v3448
        %v3646 = vunpack.c.h.b16 %v3448
        %v3647 = vunpack.c.l.b16 %v3449
        %v3648 = vunpack.c.h.b16 %v3449
        %v3649 = vunpack.c.l.b16 %v3450
        %v3650 = vunpack.c.h.b16 %v3450
        %v3651 = vunpack.c.l.b16 %v3451
        %v3652 = vunpack.c.h.b16 %v3451
        %v3653 = vunpack.c.l.b16 %v3452
        %v3654 = vunpack.c.h.b16 %v3452
        %v3655 = vunpack.c.l.b16 %v3453
        %v3656 = vunpack.c.h.b16 %v3453
        %v3657 = vunpack.c.l.b16 %v3454
        %v3658 = vunpack.c.h.b16 %v3454
        %v3659 = vunpack.c.l.b16 %v3455
        %v3660 = vunpack.c.h.b16 %v3455
        %v3661 = vunpack.c.l.b16 %v3456
        %v3662 = vunpack.c.h.b16 %v3456
        %v3663 = vunpack.c.l.b16 %v3457
        %v3664 = vunpack.c.h.b16 %v3457
        %v3665 = vunpack.c.l.b16 %v3458
        %v3666 = vunpack.c.h.b16 %v3458
        %v3667 = vunpack.c.l.b16 %v3459
        %v3668 = vunpack.c.h.b16 %v3459
        %v3669 = vunpack.c.l.b16 %v3460
        %v3670 = vunpack.c.h.b16 %v3460
        %v3671 = vunpack.c.l.b16 %v3461
        %v3672 = vunpack.c.h.b16 %v3461
        %v3673 = vunpack.c.l.b16 %v3462
        %v3674 = vunpack.c.h.b16 %v3462
        %v3675 = vunpack.c.l.b16 %v3463
        %v3676 = vunpack.c.h.b16 %v3463
        %v3677 = vunpack.c.l.b16 %v3464
        %v3678 = vunpack.c.h.b16 %v3464
        %v3679 = vunpack.c.l.b16 %v3465
        %v3680 = vunpack.c.h.b16 %v3465
        %v3681 = vunpack.c.l.b16 %v3466
        %v3682 = vunpack.c.h.b16 %v3466
        %v3683 = vpack.c.b16 %v3559, %v3555
        %v3684 = vpack.c.b16 %v3560, %v3556
        %v3685 = vpack.c.b16 %v3561, %v3557
        %v3686 = vpack.c.b16 %v3562, %v3558
        %v3687 = vpack.c.b16 %v3567, %v3563
        %v3688 = vpack.c.b16 %v3568, %v3564
        %v3689 = vpack.c.b16 %v3569, %v3565
        %v3690 = vpack.c.b16 %v3570, %v3566
        %v3691 = vpack.c.b16 %v3575, %v3571
        %v3692 = vpack.c.b16 %v3576, %v3572
        %v3693 = vpack.c.b16 %v3577, %v3573
        %v3694 = vpack.c.b16 %v3578, %v3574
        %v3695 = vpack.c.b16 %v3583, %v3579
        %v3696 = vpack.c.b16 %v3584, %v3580
        %v3697 = vpack.c.b16 %v3585, %v3581
        %v3698 = vpack.c.b16 %v3586, %v3582
        %v3699 = vpack.c.b16 %v3591, %v3587
        %v3700 = vpack.c.b16 %v3592, %v3588
        %v3701 = vpack.c.b16 %v3593, %v3589
        %v3702 = vpack.c.b16 %v3594, %v3590
        %v3703 = vpack.c.b16 %v3599, %v3595
        %v3704 = vpack.c.b16 %v3600, %v3596
        %v3705 = vpack.c.b16 %v3601, %v3597
        %v3706 = vpack.c.b16 %v3602, %v3598
        %v3707 = vpack.c.b16 %v3607, %v3603
        %v3708 = vpack.c.b16 %v3608, %v3604
        %v3709 = vpack.c.b16 %v3609, %v3605
        %v3710 = vpack.c.b16 %v3610, %v3606
        %v3711 = vpack.c.b16 %v3615, %v3611
        %v3712 = vpack.c.b16 %v3616, %v3612
        %v3713 = vpack.c.b16 %v3617, %v3613
        %v3714 = vpack.c.b16 %v3618, %v3614
        %v3715 = vpack.c.b16 %v3623, %v3619
        %v3716 = vpack.c.b16 %v3624, %v3620
        %v3717 = vpack.c.b16 %v3625, %v3621
        %v3718 = vpack.c.b16 %v3626, %v3622
        %v3719 = vpack.c.b16 %v3631, %v3627
        %v3720 = vpack.c.b16 %v3632, %v3628
        %v3721 = vpack.c.b16 %v3633, %v3629
        %v3722 = vpack.c.b16 %v3634, %v3630
        %v3723 = vpack.c.b16 %v3639, %v3635
        %v3724 = vpack.c.b16 %v3640, %v3636
        %v3725 = vpack.c.b16 %v3641, %v3637
        %v3726 = vpack.c.b16 %v3642, %v3638
        %v3727 = vpack.c.b16 %v3647, %v3643
        %v3728 = vpack.c.b16 %v3648, %v3644
        %v3729 = vpack.c.b16 %v3649, %v3645
        %v3730 = vpack.c.b16 %v3650, %v3646
        %v3731 = vpack.c.b16 %v3655, %v3651
        %v3732 = vpack.c.b16 %v3656, %v3652
        %v3733 = vpack.c.b16 %v3657, %v3653
        %v3734 = vpack.c.b16 %v3658, %v3654
        %v3735 = vpack.c.b16 %v3663, %v3659
        %v3736 = vpack.c.b16 %v3664, %v3660
        %v3737 = vpack.c.b16 %v3665, %v3661
        %v3738 = vpack.c.b16 %v3666, %v3662
        %v3739 = vpack.c.b16 %v3671, %v3667
        %v3740 = vpack.c.b16 %v3672, %v3668
        %v3741 = vpack.c.b16 %v3673, %v3669
        %v3742 = vpack.c.b16 %v3674, %v3670
        %v3743 = vpack.c.b16 %v3679, %v3675
        %v3744 = vpack.c.b16 %v3680, %v3676
        %v3745 = vpack.c.b16 %v3681, %v3677
        %v3746 = vpack.c.b16 %v3682, %v3678
        %3811 = vmatprep.subr.bf16.mxu0 %v3684
        %3812 = vmatpush1.bf16.msra.mxu0 %v3683
        %3813 = vmatprep.subr.bf16.mxu0 %v3688
        %3814 = vmatpush1.bf16.msra.mxu0 %v3687
        %3815 = vmatprep.subr.bf16.mxu0 %v3692
        %3816 = vmatpush1.bf16.msra.mxu0 %v3691
        %3817 = vmatprep.subr.bf16.mxu0 %v3696
        %3818 = vmatpush1.bf16.msra.mxu0 %v3695
        %3819 = vmatprep.subr.bf16.mxu0 %v3700
        %3820 = vmatpush1.bf16.msra.mxu0 %v3699
        %3821 = vmatprep.subr.bf16.mxu0 %v3704
        %3822 = vmatpush1.bf16.msra.mxu0 %v3703
        %3823 = vmatprep.subr.bf16.mxu0 %v3708
        %3824 = vmatpush1.bf16.msra.mxu0 %v3707
        %3825 = vmatprep.subr.bf16.mxu0 %v3712
        %3826 = vmatpush1.bf16.msra.mxu0 %v3711
        %3827 = vmatprep.subr.bf16.mxu0 %v3716
        %3828 = vmatpush1.bf16.msra.mxu0 %v3715
        %3829 = vmatprep.subr.bf16.mxu0 %v3720
        %3830 = vmatpush1.bf16.msra.mxu0 %v3719
        %3831 = vmatprep.subr.bf16.mxu0 %v3724
        %3832 = vmatpush1.bf16.msra.mxu0 %v3723
        %3833 = vmatprep.subr.bf16.mxu0 %v3728
        %3834 = vmatpush1.bf16.msra.mxu0 %v3727
        %3835 = vmatprep.subr.bf16.mxu0 %v3732
        %3836 = vmatpush1.bf16.msra.mxu0 %v3731
        %3837 = vmatprep.subr.bf16.mxu0 %v3736
        %3838 = vmatpush1.bf16.msra.mxu0 %v3735
        %3839 = vmatprep.subr.bf16.mxu0 %v3740
        %3840 = vmatpush1.bf16.msra.mxu0 %v3739
        %3841 = vmatprep.subr.bf16.mxu0 %v3744
        %3842 = vmatpush1.bf16.msra.mxu0 %v3743
        %3843 = vmatprep.mubr.bf16.mxu0 %v3469
        %3844 = vmatmul.mubr.bf16.gmra.mrb[0].mxu0 %v3468
        %v3845 = vpop.f32.mrb[0].mxu0
        %v3846 = vadd.f32 %v3474, %v3845
        %v3847 = vpop.f32.mrb[0].mxu0
        %v3848 = vadd.f32 %v3478, %v3847
        %v3849 = vpop.f32.mrb[0].mxu0
        %v3850 = vpop.f32.mrb[0].mxu0
        %3851 = vdwg.mxu0
        %3852 = vmatprep.subr.bf16.mxu0 %v3686
        %3853 = vmatpush1.bf16.msra.mxu0 %v3685
        %3854 = vmatprep.subr.bf16.mxu0 %v3690
        %3855 = vmatpush1.bf16.msra.mxu0 %v3689
        %3856 = vmatprep.subr.bf16.mxu0 %v3694
        %3857 = vmatpush1.bf16.msra.mxu0 %v3693
        %3858 = vmatprep.subr.bf16.mxu0 %v3698
        %3859 = vmatpush1.bf16.msra.mxu0 %v3697
        %3860 = vmatprep.subr.bf16.mxu0 %v3702
        %3861 = vmatpush1.bf16.msra.mxu0 %v3701
        %3862 = vmatprep.subr.bf16.mxu0 %v3706
        %3863 = vmatpush1.bf16.msra.mxu0 %v3705
        %3864 = vmatprep.subr.bf16.mxu0 %v3710
        %3865 = vmatpush1.bf16.msra.mxu0 %v3709
        %3866 = vmatprep.subr.bf16.mxu0 %v3714
        %3867 = vmatpush1.bf16.msra.mxu0 %v3713
        %3868 = vmatprep.subr.bf16.mxu0 %v3718
        %3869 = vmatpush1.bf16.msra.mxu0 %v3717
        %3870 = vmatprep.subr.bf16.mxu0 %v3722
        %3871 = vmatpush1.bf16.msra.mxu0 %v3721
        %3872 = vmatprep.subr.bf16.mxu0 %v3726
        %3873 = vmatpush1.bf16.msra.mxu0 %v3725
        %3874 = vmatprep.subr.bf16.mxu0 %v3730
        %3875 = vmatpush1.bf16.msra.mxu0 %v3729
        %3876 = vmatprep.subr.bf16.mxu0 %v3734
        %3877 = vmatpush1.bf16.msra.mxu0 %v3733
        %3878 = vmatprep.subr.bf16.mxu0 %v3738
        %3879 = vmatpush1.bf16.msra.mxu0 %v3737
        %3880 = vmatprep.subr.bf16.mxu0 %v3742
        %3881 = vmatpush1.bf16.msra.mxu0 %v3741
        %3882 = vmatprep.subr.bf16.mxu0 %v3746
        %3883 = vmatpush1.bf16.msra.mxu0 %v3745
        %3884 = vmatprep.mubr.bf16.mxu0 %v3469
        %3885 = vmatmul.mubr.bf16.gmra.mrb[0].mxu0 %v3468
        %v3886 = vpop.f32.mrb[0].mxu0
        %v3887 = vadd.f32 %v3482, %v3886
        %v3888 = vpop.f32.mrb[0].mxu0
        %v3889 = vadd.f32 %v3486, %v3888
        %v3890 = vpop.f32.mrb[0].mxu0
        %v3891 = vpop.f32.mrb[0].mxu0
        %3892 = vdwg.mxu0
        %vm3893 = vcmp.gt.f32.partialorder %v3846, 20.0
        %vm3894 = vcmp.gt.f32.partialorder %v3848, 20.0
        %vm3895 = vcmp.gt.f32.partialorder %v3887, 20.0
        %vm3896 = vcmp.gt.f32.partialorder %v3889, 20.0
        %v3897 = vmul.f32 %v3846, 1.442695
        %v3898 = vpow.pop %v3897
        %v3899 = vmul.f32 %v3848, 1.442695
        %v3900 = vpow.pop %v3899
        %v3901 = vmul.f32 %v3887, 1.442695
        %v3902 = vpow.pop %v3901
        %v3903 = vmul.f32 %v3889, 1.442695
        %v3904 = vpow.pop %v3903
        %v3905 = vadd.f32 %v3898, 1.0
        %v3906 = vlog2.pop %v3905
        %v3907 = vmul.f32 %v3906, 0.6931472
        %v3908 = vmul.f32 -0.5, %v3898
        %v3909 = vadd.f32 %v3908, 1.0
        %v3910 = vmul.f32 %v3909, %v3898
        %v3911 = vand.u32 2147483647, %v3898
        %vm3912 = vcmp.lt.f32.partialorder %v3911, 0.0004427343
        %v3913 = vsel %vm3912, %v3910, %v3907
        %v3914 = vadd.f32 %v3900, 1.0
        %v3915 = vlog2.pop %v3914
        %v3916 = vmul.f32 %v3915, 0.6931472
        %v3917 = vmul.f32 -0.5, %v3900
        %v3918 = vadd.f32 %v3917, 1.0
        %v3919 = vmul.f32 %v3918, %v3900
        %v3920 = vand.u32 2147483647, %v3900
        %vm3921 = vcmp.lt.f32.partialorder %v3920, 0.0004427343
        %v3922 = vsel %vm3921, %v3919, %v3916
        %v3923 = vadd.f32 %v3902, 1.0
        %v3924 = vlog2.pop %v3923
        %v3925 = vmul.f32 %v3924, 0.6931472
        %v3926 = vmul.f32 -0.5, %v3902
        %v3927 = vadd.f32 %v3926, 1.0
        %v3928 = vmul.f32 %v3927, %v3902
        %v3929 = vand.u32 2147483647, %v3902
        %vm3930 = vcmp.lt.f32.partialorder %v3929, 0.0004427343
        %v3931 = vsel %vm3930, %v3928, %v3925
        %v3932 = vadd.f32 %v3904, 1.0
        %v3933 = vlog2.pop %v3932
        %v3934 = vmul.f32 %v3933, 0.6931472
        %v3935 = vmul.f32 -0.5, %v3904
        %v3936 = vadd.f32 %v3935, 1.0
        %v3937 = vmul.f32 %v3936, %v3904
        %v3938 = vand.u32 2147483647, %v3904
        %vm3939 = vcmp.lt.f32.partialorder %v3938, 0.0004427343
        %v3940 = vsel %vm3939, %v3937, %v3934
        %v3941 = vsel %vm3893, %v3846, %v3913
        %v3942 = vsel %vm3894, %v3848, %v3922
        %v3943 = vsel %vm3895, %v3887, %v3931
        %v3944 = vsel %vm3896, %v3889, %v3940
        %v3945 = vld [vmem:[%s15] sm:$0xff]
        %v3946 = vld [vmem:[%s15 + $0x8] sm:$0xff]
        %v3947 = vld [vmem:[%s15 + $0x10] sm:$0xff]
        %v3948 = vld [vmem:[%s15 + $0x18] sm:$0xf]
        %v3949 = vld [vmem:[%s15 + $0x1c] sm:$0xff]
        %v3950 = vld [vmem:[%s15 + $0x24] sm:$0xff]
        %v3951 = vld [vmem:[%s15 + $0x2c] sm:$0xff]
        %v3952 = vld [vmem:[%s15 + $0x34] sm:$0xf]
        %v3953 = vld [vmem:[%s15 + $0x38] sm:$0xff]
        %v3954 = vld [vmem:[%s15 + $0x40] sm:$0xff]
        %v3955 = vld [vmem:[%s15 + $0x48] sm:$0xff]
        %v3956 = vld [vmem:[%s15 + $0x50] sm:$0xf]
        %v3957 = vld [vmem:[%s15 + $0x54] sm:$0xff]
        %v3958 = vld [vmem:[%s15 + $0x5c] sm:$0xff]
        %v3959 = vld [vmem:[%s15 + $0x64] sm:$0xff]
        %v3960 = vld [vmem:[%s15 + $0x6c] sm:$0xf]
        %v3961 = vld [vmem:[%s15 + $0x70] sm:$0xff]
        %v3962 = vld [vmem:[%s15 + $0x78] sm:$0xff]
        %v3963 = vld [vmem:[%s15 + $0x80] sm:$0xff]
        %v3964 = vld [vmem:[%s15 + $0x88] sm:$0xf]
        %v3965 = vld [vmem:[%s15 + $0x8c] sm:$0xff]
        %v3966 = vld [vmem:[%s15 + $0x94] sm:$0xff]
        %v3967 = vld [vmem:[%s15 + $0x9c] sm:$0xff]
        %v3968 = vld [vmem:[%s15 + $0xa4] sm:$0xf]
        %v3969 = vld [vmem:[%s15 + $0xa8] sm:$0xff]
        %v3970 = vld [vmem:[%s15 + $0xb0] sm:$0xff]
        %v3971 = vld [vmem:[%s15 + $0xb8] sm:$0xff]
        %v3972 = vld [vmem:[%s15 + $0xc0] sm:$0xf]
        %v3973 = vld [vmem:[%s15 + $0xc4] sm:$0xff]
        %v3974 = vld [vmem:[%s15 + $0xcc] sm:$0xff]
        %v3975 = vld [vmem:[%s15 + $0xd4] sm:$0xff]
        %v3976 = vld [vmem:[%s15 + $0xdc] sm:$0xf]
        %v3977 = vld [vmem:[%s15 + $0xe0] sm:$0xff]
        %v3978 = vld [vmem:[%s15 + $0xe8] sm:$0xff]
        %v3979 = vld [vmem:[%s15 + $0xf0] sm:$0xff]
        %v3980 = vld [vmem:[%s15 + $0xf8] sm:$0xf]
        %v3981 = vld [vmem:[%s15 + $0xfc] sm:$0xff]
        %v3982 = vld [vmem:[%s15 + $0x104] sm:$0xff]
        %v3983 = vld [vmem:[%s15 + $0x10c] sm:$0xff]
        %v3984 = vld [vmem:[%s15 + $0x114] sm:$0xf]
        %v3985 = vld [vmem:[%s15 + $0x118] sm:$0xff]
        %v3986 = vld [vmem:[%s15 + $0x120] sm:$0xff]
        %v3987 = vld [vmem:[%s15 + $0x128] sm:$0xff]
        %v3988 = vld [vmem:[%s15 + $0x130] sm:$0xf]
        %v3989 = vld [vmem:[%s15 + $0x134] sm:$0xff]
        %v3990 = vld [vmem:[%s15 + $0x13c] sm:$0xff]
        %v3991 = vld [vmem:[%s15 + $0x144] sm:$0xff]
        %v3992 = vld [vmem:[%s15 + $0x14c] sm:$0xf]
        %v3993 = vld [vmem:[%s15 + $0x150] sm:$0xff]
        %v3994 = vld [vmem:[%s15 + $0x158] sm:$0xff]
        %v3995 = vld [vmem:[%s15 + $0x160] sm:$0xff]
        %v3996 = vld [vmem:[%s15 + $0x168] sm:$0xf]
        %v3997 = vld [vmem:[%s15 + $0x16c] sm:$0xff]
        %v3998 = vld [vmem:[%s15 + $0x174] sm:$0xff]
        %v3999 = vld [vmem:[%s15 + $0x17c] sm:$0xff]
        %v4000 = vld [vmem:[%s15 + $0x184] sm:$0xf]
        %v4001 = vld [vmem:[%s15 + $0x188] sm:$0xff]
        %v4002 = vld [vmem:[%s15 + $0x190] sm:$0xff]
        %v4003 = vld [vmem:[%s15 + $0x198] sm:$0xff]
        %v4004 = vld [vmem:[%s15 + $0x1a0] sm:$0xf]
        %v4005 = vld [vmem:[%s15 + $0x1a4] sm:$0xff]
        %v4006 = vld [vmem:[%s15 + $0x1ac] sm:$0xff]
        %v4007 = vld [vmem:[%s15 + $0x1b4] sm:$0xff]
        %v4008 = vld [vmem:[%s15 + $0x1bc] sm:$0xf]
        %v4009 = vld [vmem:[%s15 + $0x1c0] sm:$0xff]
        %v4010 = vld [vmem:[%s15 + $0x1c8] sm:$0xff]
        %v4011 = vld [vmem:[%s15 + $0x1d0] sm:$0xff]
        %v4012 = vld [vmem:[%s15 + $0x1d8] sm:$0xf]
        %v4013 = vld [vmem:[%s15 + $0x1dc] sm:$0xff]
        %v4014 = vld [vmem:[%s15 + $0x1e4] sm:$0xff]
        %v4015 = vld [vmem:[%s15 + $0x1ec] sm:$0xff]
        %v4016 = vld [vmem:[%s15 + $0x1f4] sm:$0xf]
        %v4017 = vld [vmem:[%s15 + $0x1f8] sm:$0xff]
        %v4018 = vld [vmem:[%s15 + $0x200] sm:$0xff]
        %v4019 = vld [vmem:[%s15 + $0x208] sm:$0xff]
        %v4020 = vld [vmem:[%s15 + $0x210] sm:$0xf]
        %v4021 = vld [vmem:[%s15 + $0x214] sm:$0xff]
        %v4022 = vld [vmem:[%s15 + $0x21c] sm:$0xff]
        %v4023 = vld [vmem:[%s15 + $0x224] sm:$0xff]
        %v4024 = vld [vmem:[%s15 + $0x22c] sm:$0xf]
        %v4025 = vld [vmem:[%s15 + $0x230] sm:$0xff]
        %v4026 = vld [vmem:[%s15 + $0x238] sm:$0xff]
        %v4027 = vld [vmem:[%s15 + $0x240] sm:$0xff]
        %v4028 = vld [vmem:[%s15 + $0x248] sm:$0xf]
        %v4029 = vld [vmem:[%s15 + $0x24c] sm:$0xff]
        %v4030 = vld [vmem:[%s15 + $0x254] sm:$0xff]
        %v4031 = vld [vmem:[%s15 + $0x25c] sm:$0xff]
        %v4032 = vld [vmem:[%s15 + $0x264] sm:$0xf]
        %v4033 = vld [vmem:[%s15 + $0x268] sm:$0xff]
        %v4034 = vld [vmem:[%s15 + $0x270] sm:$0xff]
        %v4035 = vld [vmem:[%s15 + $0x278] sm:$0xff]
        %v4036 = vld [vmem:[%s15 + $0x280] sm:$0xf]
        %v4037 = vld [vmem:[%s15 + $0x284] sm:$0xff]
        %v4038 = vld [vmem:[%s15 + $0x28c] sm:$0xff]
        %v4039 = vld [vmem:[%s15 + $0x294] sm:$0xff]
        %v4040 = vld [vmem:[%s15 + $0x29c] sm:$0xf]
        %v4041 = vld [vmem:[%s15 + $0x2a0] sm:$0xff]
        %v4042 = vld [vmem:[%s15 + $0x2a8] sm:$0xff]
        %v4043 = vld [vmem:[%s15 + $0x2b0] sm:$0xff]
        %v4044 = vld [vmem:[%s15 + $0x2b8] sm:$0xf]
        %v4045 = vld [vmem:[%s15 + $0x2bc] sm:$0xff]
        %v4046 = vld [vmem:[%s15 + $0x2c4] sm:$0xff]
        %v4047 = vld [vmem:[%s15 + $0x2cc] sm:$0xff]
        %v4048 = vld [vmem:[%s15 + $0x2d4] sm:$0xf]
        %v4049 = vld [vmem:[%s15 + $0x2d8] sm:$0xff]
        %v4050 = vld [vmem:[%s15 + $0x2e0] sm:$0xff]
        %v4051 = vld [vmem:[%s15 + $0x2e8] sm:$0xff]
        %v4052 = vld [vmem:[%s15 + $0x2f0] sm:$0xf]
        %v4053 = vld [vmem:[%s15 + $0x2f4] sm:$0xff]
        %v4054 = vld [vmem:[%s15 + $0x2fc] sm:$0xff]
        %v4055 = vld [vmem:[%s15 + $0x304] sm:$0xff]
        %v4056 = vld [vmem:[%s15 + $0x30c] sm:$0xf]
        %v4057 = vld [vmem:[%s15 + $0x310] sm:$0xff]
        %v4058 = vld [vmem:[%s15 + $0x318] sm:$0xff]
        %v4059 = vld [vmem:[%s15 + $0x320] sm:$0xff]
        %v4060 = vld [vmem:[%s15 + $0x328] sm:$0xf]
        %v4061 = vld [vmem:[%s15 + $0x32c] sm:$0xff]
        %v4062 = vld [vmem:[%s15 + $0x334] sm:$0xff]
        %v4063 = vld [vmem:[%s15 + $0x33c] sm:$0xff]
        %v4064 = vld [vmem:[%s15 + $0x344] sm:$0xf]
        %v4065 = vld [vmem:[%s15 + $0x348] sm:$0xff]
        %v4066 = vld [vmem:[%s15 + $0x350] sm:$0xff]
        %v4067 = vld [vmem:[%s15 + $0x358] sm:$0xff]
        %v4068 = vld [vmem:[%s15 + $0x360] sm:$0xf]
        %v4069 = vld [vmem:[%s15 + $0x364] sm:$0xff]
        %v4070 = vld [vmem:[%s15 + $0x36c] sm:$0xff]
        %v4071 = vld [vmem:[%s15 + $0x374] sm:$0xff]
        %v4072 = vld [vmem:[%s15 + $0x37c] sm:$0xf]
        %v4073 = vld [vmem:[%s15 + $0x380] sm:$0xff]
        %v4074 = vld [vmem:[%s15 + $0x388] sm:$0xff]
        %v4075 = vld [vmem:[%s15 + $0x390] sm:$0xff]
        %v4076 = vld [vmem:[%s15 + $0x398] sm:$0xf]
        %v4077 = vld [vmem:[%s15 + $0x39c] sm:$0xff]
        %v4078 = vld [vmem:[%s15 + $0x3a4] sm:$0xff]
        %v4079 = vld [vmem:[%s15 + $0x3ac] sm:$0xff]
        %v4080 = vld [vmem:[%s15 + $0x3b4] sm:$0xf]
        %v4081 = vld [vmem:[%s15 + $0x3b8] sm:$0xff]
        %v4082 = vld [vmem:[%s15 + $0x3c0] sm:$0xff]
        %v4083 = vld [vmem:[%s15 + $0x3c8] sm:$0xff]
        %v4084 = vld [vmem:[%s15 + $0x3d0] sm:$0xf]
        %v4085 = vld [vmem:[%s15 + $0x3d4] sm:$0xff]
        %v4086 = vld [vmem:[%s15 + $0x3dc] sm:$0xff]
        %v4087 = vld [vmem:[%s15 + $0x3e4] sm:$0xff]
        %v4088 = vld [vmem:[%s15 + $0x3ec] sm:$0xf]
        %v4089 = vld [vmem:[%s15 + $0x3f0] sm:$0xff]
        %v4090 = vld [vmem:[%s15 + $0x3f8] sm:$0xff]
        %v4091 = vld [vmem:[%s15 + $0x400] sm:$0xff]
        %v4092 = vld [vmem:[%s15 + $0x408] sm:$0xf]
        %v4093 = vld [vmem:[%s15 + $0x40c] sm:$0xff]
        %v4094 = vld [vmem:[%s15 + $0x414] sm:$0xff]
        %v4095 = vld [vmem:[%s15 + $0x41c] sm:$0xff]
        %v4096 = vld [vmem:[%s15 + $0x424] sm:$0xf]
        %v4097 = vld [vmem:[%s15 + $0x428] sm:$0xff]
        %v4098 = vld [vmem:[%s15 + $0x430] sm:$0xff]
        %v4099 = vld [vmem:[%s15 + $0x438] sm:$0xff]
        %v4100 = vld [vmem:[%s15 + $0x440] sm:$0xf]
        %v4101 = vld [vmem:[%s15 + $0x444] sm:$0xff]
        %v4102 = vld [vmem:[%s15 + $0x44c] sm:$0xff]
        %v4103 = vld [vmem:[%s15 + $0x454] sm:$0xff]
        %v4104 = vld [vmem:[%s15 + $0x45c] sm:$0xf]
        %v4105 = vld [vmem:[%s15 + $0x460] sm:$0xff]
        %v4106 = vld [vmem:[%s15 + $0x468] sm:$0xff]
        %v4107 = vld [vmem:[%s15 + $0x470] sm:$0xff]
        %v4108 = vld [vmem:[%s15 + $0x478] sm:$0xf]
        %v4109 = vld [vmem:[%s15 + $0x47c] sm:$0xff]
        %v4110 = vld [vmem:[%s15 + $0x484] sm:$0xff]
        %v4111 = vld [vmem:[%s15 + $0x48c] sm:$0xff]
        %v4112 = vld [vmem:[%s15 + $0x494] sm:$0xf]
        %v4113 = vld [vmem:[%s15 + $0x498] sm:$0xff]
        %v4114 = vld [vmem:[%s15 + $0x4a0] sm:$0xff]
        %v4115 = vld [vmem:[%s15 + $0x4a8] sm:$0xff]
        %v4116 = vld [vmem:[%s15 + $0x4b0] sm:$0xf]
        %v4117 = vld [vmem:[%s15 + $0x4b4] sm:$0xff]
        %v4118 = vld [vmem:[%s15 + $0x4bc] sm:$0xff]
        %v4119 = vld [vmem:[%s15 + $0x4c4] sm:$0xff]
        %v4120 = vld [vmem:[%s15 + $0x4cc] sm:$0xf]
        %v4121 = vld [vmem:[%s15 + $0x4d0] sm:$0xff]
        %v4122 = vld [vmem:[%s15 + $0x4d8] sm:$0xff]
        %v4123 = vld [vmem:[%s15 + $0x4e0] sm:$0xff]
        %v4124 = vld [vmem:[%s15 + $0x4e8] sm:$0xf]
        %v4125 = vld [vmem:[%s15 + $0x4ec] sm:$0xff]
        %v4126 = vld [vmem:[%s15 + $0x4f4] sm:$0xff]
        %v4127 = vld [vmem:[%s15 + $0x4fc] sm:$0xff]
        %v4128 = vld [vmem:[%s15 + $0x504] sm:$0xf]
        %v4129 = vld [vmem:[%s15 + $0x508] sm:$0xff]
        %v4130 = vld [vmem:[%s15 + $0x510] sm:$0xff]
        %v4131 = vld [vmem:[%s15 + $0x518] sm:$0xff]
        %v4132 = vld [vmem:[%s15 + $0x520] sm:$0xf]
        %v4133 = vld [vmem:[%s15 + $0x524] sm:$0xff]
        %v4134 = vld [vmem:[%s15 + $0x52c] sm:$0xff]
        %v4135 = vld [vmem:[%s15 + $0x534] sm:$0xff]
        %v4136 = vld [vmem:[%s15 + $0x53c] sm:$0xf]
        %v4137 = vld [vmem:[%s15 + $0x540] sm:$0xff]
        %v4138 = vld [vmem:[%s15 + $0x548] sm:$0xff]
        %v4139 = vld [vmem:[%s15 + $0x550] sm:$0xff]
        %v4140 = vld [vmem:[%s15 + $0x558] sm:$0xf]
        %v4141 = vld [vmem:[%s15 + $0x55c] sm:$0xff]
        %v4142 = vld [vmem:[%s15 + $0x564] sm:$0xff]
        %v4143 = vld [vmem:[%s15 + $0x56c] sm:$0xff]
        %v4144 = vld [vmem:[%s15 + $0x574] sm:$0xf]
        %v4145 = vld [vmem:[%s15 + $0x578] sm:$0xff]
        %v4146 = vld [vmem:[%s15 + $0x580] sm:$0xff]
        %v4147 = vld [vmem:[%s15 + $0x588] sm:$0xff]
        %v4148 = vld [vmem:[%s15 + $0x590] sm:$0xf]
        %v4149 = vld [vmem:[%s15 + $0x594] sm:$0xff]
        %v4150 = vld [vmem:[%s15 + $0x59c] sm:$0xff]
        %v4151 = vld [vmem:[%s15 + $0x5a4] sm:$0xff]
        %v4152 = vld [vmem:[%s15 + $0x5ac] sm:$0xf]
        %v4153 = vld [vmem:[%s15 + $0x5b0] sm:$0xff]
        %v4154 = vld [vmem:[%s15 + $0x5b8] sm:$0xff]
        %v4155 = vld [vmem:[%s15 + $0x5c0] sm:$0xff]
        %v4156 = vld [vmem:[%s15 + $0x5c8] sm:$0xf]
        %v4157 = vld [vmem:[%s15 + $0x5cc] sm:$0xff]
        %v4158 = vld [vmem:[%s15 + $0x5d4] sm:$0xff]
        %v4159 = vld [vmem:[%s15 + $0x5dc] sm:$0xff]
        %v4160 = vld [vmem:[%s15 + $0x5e4] sm:$0xf]
        %v4161 = vld [vmem:[%s15 + $0x5e8] sm:$0xff]
        %v4162 = vld [vmem:[%s15 + $0x5f0] sm:$0xff]
        %v4163 = vld [vmem:[%s15 + $0x5f8] sm:$0xff]
        %v4164 = vld [vmem:[%s15 + $0x600] sm:$0xf]
        %v4165 = vld [vmem:[%s15 + $0x604] sm:$0xff]
        %v4166 = vld [vmem:[%s15 + $0x60c] sm:$0xff]
        %v4167 = vld [vmem:[%s15 + $0x614] sm:$0xff]
        %v4168 = vld [vmem:[%s15 + $0x61c] sm:$0xf]
        %v4169 = vld [vmem:[%s15 + $0x620] sm:$0xff]
        %v4170 = vld [vmem:[%s15 + $0x628] sm:$0xff]
        %v4171 = vld [vmem:[%s15 + $0x630] sm:$0xff]
        %v4172 = vld [vmem:[%s15 + $0x638] sm:$0xf]
        %v4173 = vld [vmem:[%s15 + $0x63c] sm:$0xff]
        %v4174 = vld [vmem:[%s15 + $0x644] sm:$0xff]
        %v4175 = vld [vmem:[%s15 + $0x64c] sm:$0xff]
        %v4176 = vld [vmem:[%s15 + $0x654] sm:$0xf]
        %v4177 = vld [vmem:[%s15 + $0x658] sm:$0xff]
        %v4178 = vld [vmem:[%s15 + $0x660] sm:$0xff]
        %v4179 = vld [vmem:[%s15 + $0x668] sm:$0xff]
        %v4180 = vld [vmem:[%s15 + $0x670] sm:$0xf]
        %v4181 = vld [vmem:[%s15 + $0x674] sm:$0xff]
        %v4182 = vld [vmem:[%s15 + $0x67c] sm:$0xff]
        %v4183 = vld [vmem:[%s15 + $0x684] sm:$0xff]
        %v4184 = vld [vmem:[%s15 + $0x68c] sm:$0xf]
        %v4185 = vld [vmem:[%s15 + $0x690] sm:$0xff]
        %v4186 = vld [vmem:[%s15 + $0x698] sm:$0xff]
        %v4187 = vld [vmem:[%s15 + $0x6a0] sm:$0xff]
        %v4188 = vld [vmem:[%s15 + $0x6a8] sm:$0xf]
        %v4189 = vld [vmem:[%s15 + $0x6ac] sm:$0xff]
        %v4190 = vld [vmem:[%s15 + $0x6b4] sm:$0xff]
        %v4191 = vld [vmem:[%s15 + $0x6bc] sm:$0xff]
        %v4192 = vld [vmem:[%s15 + $0x6c4] sm:$0xf]
        %v4193 = vld [vmem:[%s15 + $0x6c8] sm:$0xff]
        %v4194 = vld [vmem:[%s15 + $0x6d0] sm:$0xff]
        %v4195 = vld [vmem:[%s15 + $0x6d8] sm:$0xff]
        %v4196 = vld [vmem:[%s15 + $0x6e0] sm:$0xf]
        %v4197 = vld [vmem:[%s15 + $0x6e4] sm:$0xff]
        %v4198 = vld [vmem:[%s15 + $0x6ec] sm:$0xff]
        %v4199 = vld [vmem:[%s15 + $0x6f4] sm:$0xff]
        %v4200 = vld [vmem:[%s15 + $0x6fc] sm:$0xf]
        %v4201 = vld [vmem:[%s16] sm:$0xff]
        %v4202 = vpack.c.bf16 %v3941, %v3941
        %v4203 = vpack.c.bf16 %v3942, %v3942
        %v4204 = vpack.c.bf16 %v3943, %v3943
        %v4205 = vpack.c.bf16 %v3944, %v3944
        %v4207 = vlaneseq
        %v4208 = vshrl.u32 %v4207, 7
        %v4209 = vsub.s32 0, %v4208
        %v4210 = vrot.slane %v4201, %v4209
        %v4211 = vlaneseq
        %v4212 = vshrl.u32 %v4211, 7
        %v4213 = vsub.s32 1, %v4212
        %v4214 = vrot.slane %v4201, %v4213
        %v4215 = vlaneseq
        %v4216 = vshrl.u32 %v4215, 7
        %v4217 = vsub.s32 2, %v4216
        %v4218 = vrot.slane %v4201, %v4217
        %v4219 = vlaneseq
        %v4220 = vshrl.u32 %v4219, 7
        %v4221 = vsub.s32 3, %v4220
        %v4222 = vrot.slane %v4201, %v4221
        %v4223 = vlaneseq
        %v4224 = vshrl.u32 %v4223, 7
        %v4225 = vsub.s32 4, %v4224
        %v4226 = vrot.slane %v4201, %v4225
        %v4227 = vlaneseq
        %v4228 = vshrl.u32 %v4227, 7
        %v4229 = vsub.s32 5, %v4228
        %v4230 = vrot.slane %v4201, %v4229
        %v4231 = vlaneseq
        %v4232 = vshrl.u32 %v4231, 7
        %v4233 = vsub.s32 6, %v4232
        %v4234 = vrot.slane %v4201, %v4233
        %v4498 = vunpack.c.l.b16 %v3945
        %v4499 = vunpack.c.h.b16 %v3945
        %v4500 = vunpack.c.l.b16 %v3946
        %v4501 = vunpack.c.h.b16 %v3946
        %v4502 = vunpack.c.l.b16 %v3947
        %v4503 = vunpack.c.h.b16 %v3947
        %v4504 = vunpack.c.l.b16 %v3948
        %v4505 = vunpack.c.l.b16 %v3949
        %v4506 = vunpack.c.h.b16 %v3949
        %v4507 = vunpack.c.l.b16 %v3950
        %v4508 = vunpack.c.h.b16 %v3950
        %v4509 = vunpack.c.l.b16 %v3951
        %v4510 = vunpack.c.h.b16 %v3951
        %v4511 = vunpack.c.l.b16 %v3952
        %v4512 = vunpack.c.l.b16 %v3953
        %v4513 = vunpack.c.h.b16 %v3953
        %v4514 = vunpack.c.l.b16 %v3954
        %v4515 = vunpack.c.h.b16 %v3954
        %v4516 = vunpack.c.l.b16 %v3955
        %v4517 = vunpack.c.h.b16 %v3955
        %v4518 = vunpack.c.l.b16 %v3956
        %v4519 = vunpack.c.l.b16 %v3957
        %v4520 = vunpack.c.h.b16 %v3957
        %v4521 = vunpack.c.l.b16 %v3958
        %v4522 = vunpack.c.h.b16 %v3958
        %v4523 = vunpack.c.l.b16 %v3959
        %v4524 = vunpack.c.h.b16 %v3959
        %v4525 = vunpack.c.l.b16 %v3960
        %v4526 = vunpack.c.l.b16 %v3961
        %v4527 = vunpack.c.h.b16 %v3961
        %v4528 = vunpack.c.l.b16 %v3962
        %v4529 = vunpack.c.h.b16 %v3962
        %v4530 = vunpack.c.l.b16 %v3963
        %v4531 = vunpack.c.h.b16 %v3963
        %v4532 = vunpack.c.l.b16 %v3964
        %v4533 = vunpack.c.l.b16 %v3965
        %v4534 = vunpack.c.h.b16 %v3965
        %v4535 = vunpack.c.l.b16 %v3966
        %v4536 = vunpack.c.h.b16 %v3966
        %v4537 = vunpack.c.l.b16 %v3967
        %v4538 = vunpack.c.h.b16 %v3967
        %v4539 = vunpack.c.l.b16 %v3968
        %v4540 = vunpack.c.l.b16 %v3969
        %v4541 = vunpack.c.h.b16 %v3969
        %v4542 = vunpack.c.l.b16 %v3970
        %v4543 = vunpack.c.h.b16 %v3970
        %v4544 = vunpack.c.l.b16 %v3971
        %v4545 = vunpack.c.h.b16 %v3971
        %v4546 = vunpack.c.l.b16 %v3972
        %v4547 = vunpack.c.l.b16 %v3973
        %v4548 = vunpack.c.h.b16 %v3973
        %v4549 = vunpack.c.l.b16 %v3974
        %v4550 = vunpack.c.h.b16 %v3974
        %v4551 = vunpack.c.l.b16 %v3975
        %v4552 = vunpack.c.h.b16 %v3975
        %v4553 = vunpack.c.l.b16 %v3976
        %v4554 = vunpack.c.l.b16 %v3977
        %v4555 = vunpack.c.h.b16 %v3977
        %v4556 = vunpack.c.l.b16 %v3978
        %v4557 = vunpack.c.h.b16 %v3978
        %v4558 = vunpack.c.l.b16 %v3979
        %v4559 = vunpack.c.h.b16 %v3979
        %v4560 = vunpack.c.l.b16 %v3980
        %v4561 = vunpack.c.l.b16 %v3981
        %v4562 = vunpack.c.h.b16 %v3981
        %v4563 = vunpack.c.l.b16 %v3982
        %v4564 = vunpack.c.h.b16 %v3982
        %v4565 = vunpack.c.l.b16 %v3983
        %v4566 = vunpack.c.h.b16 %v3983
        %v4567 = vunpack.c.l.b16 %v3984
        %v4568 = vunpack.c.l.b16 %v3985
        %v4569 = vunpack.c.h.b16 %v3985
        %v4570 = vunpack.c.l.b16 %v3986
        %v4571 = vunpack.c.h.b16 %v3986
        %v4572 = vunpack.c.l.b16 %v3987
        %v4573 = vunpack.c.h.b16 %v3987
        %v4574 = vunpack.c.l.b16 %v3988
        %v4575 = vunpack.c.l.b16 %v3989
        %v4576 = vunpack.c.h.b16 %v3989
        %v4577 = vunpack.c.l.b16 %v3990
        %v4578 = vunpack.c.h.b16 %v3990
        %v4579 = vunpack.c.l.b16 %v3991
        %v4580 = vunpack.c.h.b16 %v3991
        %v4581 = vunpack.c.l.b16 %v3992
        %v4582 = vunpack.c.l.b16 %v3993
        %v4583 = vunpack.c.h.b16 %v3993
        %v4584 = vunpack.c.l.b16 %v3994
        %v4585 = vunpack.c.h.b16 %v3994
        %v4586 = vunpack.c.l.b16 %v3995
        %v4587 = vunpack.c.h.b16 %v3995
        %v4588 = vunpack.c.l.b16 %v3996
        %v4589 = vunpack.c.l.b16 %v3997
        %v4590 = vunpack.c.h.b16 %v3997
        %v4591 = vunpack.c.l.b16 %v3998
        %v4592 = vunpack.c.h.b16 %v3998
        %v4593 = vunpack.c.l.b16 %v3999
        %v4594 = vunpack.c.h.b16 %v3999
        %v4595 = vunpack.c.l.b16 %v4000
        %v4596 = vunpack.c.l.b16 %v4001
        %v4597 = vunpack.c.h.b16 %v4001
        %v4598 = vunpack.c.l.b16 %v4002
        %v4599 = vunpack.c.h.b16 %v4002
        %v4600 = vunpack.c.l.b16 %v4003
        %v4601 = vunpack.c.h.b16 %v4003
        %v4602 = vunpack.c.l.b16 %v4004
        %v4603 = vunpack.c.l.b16 %v4005
        %v4604 = vunpack.c.h.b16 %v4005
        %v4605 = vunpack.c.l.b16 %v4006
        %v4606 = vunpack.c.h.b16 %v4006
        %v4607 = vunpack.c.l.b16 %v4007
        %v4608 = vunpack.c.h.b16 %v4007
        %v4609 = vunpack.c.l.b16 %v4008
        %v4610 = vunpack.c.l.b16 %v4009
        %v4611 = vunpack.c.h.b16 %v4009
        %v4612 = vunpack.c.l.b16 %v4010
        %v4613 = vunpack.c.h.b16 %v4010
        %v4614 = vunpack.c.l.b16 %v4011
        %v4615 = vunpack.c.h.b16 %v4011
        %v4616 = vunpack.c.l.b16 %v4012
        %v4617 = vunpack.c.l.b16 %v4013
        %v4618 = vunpack.c.h.b16 %v4013
        %v4619 = vunpack.c.l.b16 %v4014
        %v4620 = vunpack.c.h.b16 %v4014
        %v4621 = vunpack.c.l.b16 %v4015
        %v4622 = vunpack.c.h.b16 %v4015
        %v4623 = vunpack.c.l.b16 %v4016
        %v4624 = vunpack.c.l.b16 %v4017
        %v4625 = vunpack.c.h.b16 %v4017
        %v4626 = vunpack.c.l.b16 %v4018
        %v4627 = vunpack.c.h.b16 %v4018
        %v4628 = vunpack.c.l.b16 %v4019
        %v4629 = vunpack.c.h.b16 %v4019
        %v4630 = vunpack.c.l.b16 %v4020
        %v4631 = vunpack.c.l.b16 %v4021
        %v4632 = vunpack.c.h.b16 %v4021
        %v4633 = vunpack.c.l.b16 %v4022
        %v4634 = vunpack.c.h.b16 %v4022
        %v4635 = vunpack.c.l.b16 %v4023
        %v4636 = vunpack.c.h.b16 %v4023
        %v4637 = vunpack.c.l.b16 %v4024
        %v4638 = vunpack.c.l.b16 %v4025
        %v4639 = vunpack.c.h.b16 %v4025
        %v4640 = vunpack.c.l.b16 %v4026
        %v4641 = vunpack.c.h.b16 %v4026
        %v4642 = vunpack.c.l.b16 %v4027
        %v4643 = vunpack.c.h.b16 %v4027
        %v4644 = vunpack.c.l.b16 %v4028
        %v4645 = vunpack.c.l.b16 %v4029
        %v4646 = vunpack.c.h.b16 %v4029
        %v4647 = vunpack.c.l.b16 %v4030
        %v4648 = vunpack.c.h.b16 %v4030
        %v4649 = vunpack.c.l.b16 %v4031
        %v4650 = vunpack.c.h.b16 %v4031
        %v4651 = vunpack.c.l.b16 %v4032
        %v4652 = vunpack.c.l.b16 %v4033
        %v4653 = vunpack.c.h.b16 %v4033
        %v4654 = vunpack.c.l.b16 %v4034
        %v4655 = vunpack.c.h.b16 %v4034
        %v4656 = vunpack.c.l.b16 %v4035
        %v4657 = vunpack.c.h.b16 %v4035
        %v4658 = vunpack.c.l.b16 %v4036
        %v4659 = vunpack.c.l.b16 %v4037
        %v4660 = vunpack.c.h.b16 %v4037
        %v4661 = vunpack.c.l.b16 %v4038
        %v4662 = vunpack.c.h.b16 %v4038
        %v4663 = vunpack.c.l.b16 %v4039
        %v4664 = vunpack.c.h.b16 %v4039
        %v4665 = vunpack.c.l.b16 %v4040
        %v4666 = vunpack.c.l.b16 %v4041
        %v4667 = vunpack.c.h.b16 %v4041
        %v4668 = vunpack.c.l.b16 %v4042
        %v4669 = vunpack.c.h.b16 %v4042
        %v4670 = vunpack.c.l.b16 %v4043
        %v4671 = vunpack.c.h.b16 %v4043
        %v4672 = vunpack.c.l.b16 %v4044
        %v4673 = vunpack.c.l.b16 %v4045
        %v4674 = vunpack.c.h.b16 %v4045
        %v4675 = vunpack.c.l.b16 %v4046
        %v4676 = vunpack.c.h.b16 %v4046
        %v4677 = vunpack.c.l.b16 %v4047
        %v4678 = vunpack.c.h.b16 %v4047
        %v4679 = vunpack.c.l.b16 %v4048
        %v4680 = vunpack.c.l.b16 %v4049
        %v4681 = vunpack.c.h.b16 %v4049
        %v4682 = vunpack.c.l.b16 %v4050
        %v4683 = vunpack.c.h.b16 %v4050
        %v4684 = vunpack.c.l.b16 %v4051
        %v4685 = vunpack.c.h.b16 %v4051
        %v4686 = vunpack.c.l.b16 %v4052
        %v4687 = vunpack.c.l.b16 %v4053
        %v4688 = vunpack.c.h.b16 %v4053
        %v4689 = vunpack.c.l.b16 %v4054
        %v4690 = vunpack.c.h.b16 %v4054
        %v4691 = vunpack.c.l.b16 %v4055
        %v4692 = vunpack.c.h.b16 %v4055
        %v4693 = vunpack.c.l.b16 %v4056
        %v4694 = vunpack.c.l.b16 %v4057
        %v4695 = vunpack.c.h.b16 %v4057
        %v4696 = vunpack.c.l.b16 %v4058
        %v4697 = vunpack.c.h.b16 %v4058
        %v4698 = vunpack.c.l.b16 %v4059
        %v4699 = vunpack.c.h.b16 %v4059
        %v4700 = vunpack.c.l.b16 %v4060
        %v4701 = vunpack.c.l.b16 %v4061
        %v4702 = vunpack.c.h.b16 %v4061
        %v4703 = vunpack.c.l.b16 %v4062
        %v4704 = vunpack.c.h.b16 %v4062
        %v4705 = vunpack.c.l.b16 %v4063
        %v4706 = vunpack.c.h.b16 %v4063
        %v4707 = vunpack.c.l.b16 %v4064
        %v4708 = vunpack.c.l.b16 %v4065
        %v4709 = vunpack.c.h.b16 %v4065
        %v4710 = vunpack.c.l.b16 %v4066
        %v4711 = vunpack.c.h.b16 %v4066
        %v4712 = vunpack.c.l.b16 %v4067
        %v4713 = vunpack.c.h.b16 %v4067
        %v4714 = vunpack.c.l.b16 %v4068
        %v4715 = vunpack.c.l.b16 %v4069
        %v4716 = vunpack.c.h.b16 %v4069
        %v4717 = vunpack.c.l.b16 %v4070
        %v4718 = vunpack.c.h.b16 %v4070
        %v4719 = vunpack.c.l.b16 %v4071
        %v4720 = vunpack.c.h.b16 %v4071
        %v4721 = vunpack.c.l.b16 %v4072
        %v4722 = vunpack.c.l.b16 %v4073
        %v4723 = vunpack.c.h.b16 %v4073
        %v4724 = vunpack.c.l.b16 %v4074
        %v4725 = vunpack.c.h.b16 %v4074
        %v4726 = vunpack.c.l.b16 %v4075
        %v4727 = vunpack.c.h.b16 %v4075
        %v4728 = vunpack.c.l.b16 %v4076
        %v4729 = vunpack.c.l.b16 %v4077
        %v4730 = vunpack.c.h.b16 %v4077
        %v4731 = vunpack.c.l.b16 %v4078
        %v4732 = vunpack.c.h.b16 %v4078
        %v4733 = vunpack.c.l.b16 %v4079
        %v4734 = vunpack.c.h.b16 %v4079
        %v4735 = vunpack.c.l.b16 %v4080
        %v4736 = vunpack.c.l.b16 %v4081
        %v4737 = vunpack.c.h.b16 %v4081
        %v4738 = vunpack.c.l.b16 %v4082
        %v4739 = vunpack.c.h.b16 %v4082
        %v4740 = vunpack.c.l.b16 %v4083
        %v4741 = vunpack.c.h.b16 %v4083
        %v4742 = vunpack.c.l.b16 %v4084
        %v4743 = vunpack.c.l.b16 %v4085
        %v4744 = vunpack.c.h.b16 %v4085
        %v4745 = vunpack.c.l.b16 %v4086
        %v4746 = vunpack.c.h.b16 %v4086
        %v4747 = vunpack.c.l.b16 %v4087
        %v4748 = vunpack.c.h.b16 %v4087
        %v4749 = vunpack.c.l.b16 %v4088
        %v4750 = vunpack.c.l.b16 %v4089
        %v4751 = vunpack.c.h.b16 %v4089
        %v4752 = vunpack.c.l.b16 %v4090
        %v4753 = vunpack.c.h.b16 %v4090
        %v4754 = vunpack.c.l.b16 %v4091
        %v4755 = vunpack.c.h.b16 %v4091
        %v4756 = vunpack.c.l.b16 %v4092
        %v4757 = vunpack.c.l.b16 %v4093
        %v4758 = vunpack.c.h.b16 %v4093
        %v4759 = vunpack.c.l.b16 %v4094
        %v4760 = vunpack.c.h.b16 %v4094
        %v4761 = vunpack.c.l.b16 %v4095
        %v4762 = vunpack.c.h.b16 %v4095
        %v4763 = vunpack.c.l.b16 %v4096
        %v4764 = vunpack.c.l.b16 %v4097
        %v4765 = vunpack.c.h.b16 %v4097
        %v4766 = vunpack.c.l.b16 %v4098
        %v4767 = vunpack.c.h.b16 %v4098
        %v4768 = vunpack.c.l.b16 %v4099
        %v4769 = vunpack.c.h.b16 %v4099
        %v4770 = vunpack.c.l.b16 %v4100
        %v4771 = vunpack.c.l.b16 %v4101
        %v4772 = vunpack.c.h.b16 %v4101
        %v4773 = vunpack.c.l.b16 %v4102
        %v4774 = vunpack.c.h.b16 %v4102
        %v4775 = vunpack.c.l.b16 %v4103
        %v4776 = vunpack.c.h.b16 %v4103
        %v4777 = vunpack.c.l.b16 %v4104
        %v4778 = vunpack.c.l.b16 %v4105
        %v4779 = vunpack.c.h.b16 %v4105
        %v4780 = vunpack.c.l.b16 %v4106
        %v4781 = vunpack.c.h.b16 %v4106
        %v4782 = vunpack.c.l.b16 %v4107
        %v4783 = vunpack.c.h.b16 %v4107
        %v4784 = vunpack.c.l.b16 %v4108
        %v4785 = vunpack.c.l.b16 %v4109
        %v4786 = vunpack.c.h.b16 %v4109
        %v4787 = vunpack.c.l.b16 %v4110
        %v4788 = vunpack.c.h.b16 %v4110
        %v4789 = vunpack.c.l.b16 %v4111
        %v4790 = vunpack.c.h.b16 %v4111
        %v4791 = vunpack.c.l.b16 %v4112
        %v4792 = vunpack.c.l.b16 %v4113
        %v4793 = vunpack.c.h.b16 %v4113
        %v4794 = vunpack.c.l.b16 %v4114
        %v4795 = vunpack.c.h.b16 %v4114
        %v4796 = vunpack.c.l.b16 %v4115
        %v4797 = vunpack.c.h.b16 %v4115
        %v4798 = vunpack.c.l.b16 %v4116
        %v4799 = vunpack.c.l.b16 %v4117
        %v4800 = vunpack.c.h.b16 %v4117
        %v4801 = vunpack.c.l.b16 %v4118
        %v4802 = vunpack.c.h.b16 %v4118
        %v4803 = vunpack.c.l.b16 %v4119
        %v4804 = vunpack.c.h.b16 %v4119
        %v4805 = vunpack.c.l.b16 %v4120
        %v4806 = vunpack.c.l.b16 %v4121
        %v4807 = vunpack.c.h.b16 %v4121
        %v4808 = vunpack.c.l.b16 %v4122
        %v4809 = vunpack.c.h.b16 %v4122
        %v4810 = vunpack.c.l.b16 %v4123
        %v4811 = vunpack.c.h.b16 %v4123
        %v4812 = vunpack.c.l.b16 %v4124
        %v4813 = vunpack.c.l.b16 %v4125
        %v4814 = vunpack.c.h.b16 %v4125
        %v4815 = vunpack.c.l.b16 %v4126
        %v4816 = vunpack.c.h.b16 %v4126
        %v4817 = vunpack.c.l.b16 %v4127
        %v4818 = vunpack.c.h.b16 %v4127
        %v4819 = vunpack.c.l.b16 %v4128
        %v4820 = vunpack.c.l.b16 %v4129
        %v4821 = vunpack.c.h.b16 %v4129
        %v4822 = vunpack.c.l.b16 %v4130
        %v4823 = vunpack.c.h.b16 %v4130
        %v4824 = vunpack.c.l.b16 %v4131
        %v4825 = vunpack.c.h.b16 %v4131
        %v4826 = vunpack.c.l.b16 %v4132
        %v4827 = vunpack.c.l.b16 %v4133
        %v4828 = vunpack.c.h.b16 %v4133
        %v4829 = vunpack.c.l.b16 %v4134
        %v4830 = vunpack.c.h.b16 %v4134
        %v4831 = vunpack.c.l.b16 %v4135
        %v4832 = vunpack.c.h.b16 %v4135
        %v4833 = vunpack.c.l.b16 %v4136
        %v4834 = vunpack.c.l.b16 %v4137
        %v4835 = vunpack.c.h.b16 %v4137
        %v4836 = vunpack.c.l.b16 %v4138
        %v4837 = vunpack.c.h.b16 %v4138
        %v4838 = vunpack.c.l.b16 %v4139
        %v4839 = vunpack.c.h.b16 %v4139
        %v4840 = vunpack.c.l.b16 %v4140
        %v4841 = vunpack.c.l.b16 %v4141
        %v4842 = vunpack.c.h.b16 %v4141
        %v4843 = vunpack.c.l.b16 %v4142
        %v4844 = vunpack.c.h.b16 %v4142
        %v4845 = vunpack.c.l.b16 %v4143
        %v4846 = vunpack.c.h.b16 %v4143
        %v4847 = vunpack.c.l.b16 %v4144
        %v4848 = vunpack.c.l.b16 %v4145
        %v4849 = vunpack.c.h.b16 %v4145
        %v4850 = vunpack.c.l.b16 %v4146
        %v4851 = vunpack.c.h.b16 %v4146
        %v4852 = vunpack.c.l.b16 %v4147
        %v4853 = vunpack.c.h.b16 %v4147
        %v4854 = vunpack.c.l.b16 %v4148
        %v4855 = vunpack.c.l.b16 %v4149
        %v4856 = vunpack.c.h.b16 %v4149
        %v4857 = vunpack.c.l.b16 %v4150
        %v4858 = vunpack.c.h.b16 %v4150
        %v4859 = vunpack.c.l.b16 %v4151
        %v4860 = vunpack.c.h.b16 %v4151
        %v4861 = vunpack.c.l.b16 %v4152
        %v4862 = vunpack.c.l.b16 %v4153
        %v4863 = vunpack.c.h.b16 %v4153
        %v4864 = vunpack.c.l.b16 %v4154
        %v4865 = vunpack.c.h.b16 %v4154
        %v4866 = vunpack.c.l.b16 %v4155
        %v4867 = vunpack.c.h.b16 %v4155
        %v4868 = vunpack.c.l.b16 %v4156
        %v4869 = vunpack.c.l.b16 %v4157
        %v4870 = vunpack.c.h.b16 %v4157
        %v4871 = vunpack.c.l.b16 %v4158
        %v4872 = vunpack.c.h.b16 %v4158
        %v4873 = vunpack.c.l.b16 %v4159
        %v4874 = vunpack.c.h.b16 %v4159
        %v4875 = vunpack.c.l.b16 %v4160
        %v4876 = vunpack.c.l.b16 %v4161
        %v4877 = vunpack.c.h.b16 %v4161
        %v4878 = vunpack.c.l.b16 %v4162
        %v4879 = vunpack.c.h.b16 %v4162
        %v4880 = vunpack.c.l.b16 %v4163
        %v4881 = vunpack.c.h.b16 %v4163
        %v4882 = vunpack.c.l.b16 %v4164
        %v4883 = vunpack.c.l.b16 %v4165
        %v4884 = vunpack.c.h.b16 %v4165
        %v4885 = vunpack.c.l.b16 %v4166
        %v4886 = vunpack.c.h.b16 %v4166
        %v4887 = vunpack.c.l.b16 %v4167
        %v4888 = vunpack.c.h.b16 %v4167
        %v4889 = vunpack.c.l.b16 %v4168
        %v4890 = vunpack.c.l.b16 %v4169
        %v4891 = vunpack.c.h.b16 %v4169
        %v4892 = vunpack.c.l.b16 %v4170
        %v4893 = vunpack.c.h.b16 %v4170
        %v4894 = vunpack.c.l.b16 %v4171
        %v4895 = vunpack.c.h.b16 %v4171
        %v4896 = vunpack.c.l.b16 %v4172
        %v4897 = vunpack.c.l.b16 %v4173
        %v4898 = vunpack.c.h.b16 %v4173
        %v4899 = vunpack.c.l.b16 %v4174
        %v4900 = vunpack.c.h.b16 %v4174
        %v4901 = vunpack.c.l.b16 %v4175
        %v4902 = vunpack.c.h.b16 %v4175
        %v4903 = vunpack.c.l.b16 %v4176
        %v4904 = vunpack.c.l.b16 %v4177
        %v4905 = vunpack.c.h.b16 %v4177
        %v4906 = vunpack.c.l.b16 %v4178
        %v4907 = vunpack.c.h.b16 %v4178
        %v4908 = vunpack.c.l.b16 %v4179
        %v4909 = vunpack.c.h.b16 %v4179
        %v4910 = vunpack.c.l.b16 %v4180
        %v4911 = vunpack.c.l.b16 %v4181
        %v4912 = vunpack.c.h.b16 %v4181
        %v4913 = vunpack.c.l.b16 %v4182
        %v4914 = vunpack.c.h.b16 %v4182
        %v4915 = vunpack.c.l.b16 %v4183
        %v4916 = vunpack.c.h.b16 %v4183
        %v4917 = vunpack.c.l.b16 %v4184
        %v4918 = vunpack.c.l.b16 %v4185
        %v4919 = vunpack.c.h.b16 %v4185
        %v4920 = vunpack.c.l.b16 %v4186
        %v4921 = vunpack.c.h.b16 %v4186
        %v4922 = vunpack.c.l.b16 %v4187
        %v4923 = vunpack.c.h.b16 %v4187
        %v4924 = vunpack.c.l.b16 %v4188
        %v4925 = vunpack.c.l.b16 %v4189
        %v4926 = vunpack.c.h.b16 %v4189
        %v4927 = vunpack.c.l.b16 %v4190
        %v4928 = vunpack.c.h.b16 %v4190
        %v4929 = vunpack.c.l.b16 %v4191
        %v4930 = vunpack.c.h.b16 %v4191
        %v4931 = vunpack.c.l.b16 %v4192
        %v4932 = vunpack.c.l.b16 %v4193
        %v4933 = vunpack.c.h.b16 %v4193
        %v4934 = vunpack.c.l.b16 %v4194
        %v4935 = vunpack.c.h.b16 %v4194
        %v4936 = vunpack.c.l.b16 %v4195
        %v4937 = vunpack.c.h.b16 %v4195
        %v4938 = vunpack.c.l.b16 %v4196
        %v4939 = vunpack.c.l.b16 %v4197
        %v4940 = vunpack.c.h.b16 %v4197
        %v4941 = vunpack.c.l.b16 %v4198
        %v4942 = vunpack.c.h.b16 %v4198
        %v4943 = vunpack.c.l.b16 %v4199
        %v4944 = vunpack.c.h.b16 %v4199
        %v4945 = vunpack.c.l.b16 %v4200
        %v4946 = vpack.c.b16 %v4505, %v4498
        %v4947 = vpack.c.b16 %v4506, %v4499
        %v4948 = vpack.c.b16 %v4507, %v4500
        %v4949 = vpack.c.b16 %v4508, %v4501
        %v4950 = vpack.c.b16 %v4509, %v4502
        %v4951 = vpack.c.b16 %v4510, %v4503
        %v4952 = vpack.c.b16 %v4511, %v4504
        %v4953 = vpack.c.b16 %v4519, %v4512
        %v4954 = vpack.c.b16 %v4520, %v4513
        %v4955 = vpack.c.b16 %v4521, %v4514
        %v4956 = vpack.c.b16 %v4522, %v4515
        %v4957 = vpack.c.b16 %v4523, %v4516
        %v4958 = vpack.c.b16 %v4524, %v4517
        %v4959 = vpack.c.b16 %v4525, %v4518
        %v4960 = vpack.c.b16 %v4533, %v4526
        %v4961 = vpack.c.b16 %v4534, %v4527
        %v4962 = vpack.c.b16 %v4535, %v4528
        %v4963 = vpack.c.b16 %v4536, %v4529
        %v4964 = vpack.c.b16 %v4537, %v4530
        %v4965 = vpack.c.b16 %v4538, %v4531
        %v4966 = vpack.c.b16 %v4539, %v4532
        %v4967 = vpack.c.b16 %v4547, %v4540
        %v4968 = vpack.c.b16 %v4548, %v4541
        %v4969 = vpack.c.b16 %v4549, %v4542
        %v4970 = vpack.c.b16 %v4550, %v4543
        %v4971 = vpack.c.b16 %v4551, %v4544
        %v4972 = vpack.c.b16 %v4552, %v4545
        %v4973 = vpack.c.b16 %v4553, %v4546
        %v4974 = vpack.c.b16 %v4561, %v4554
        %v4975 = vpack.c.b16 %v4562, %v4555
        %v4976 = vpack.c.b16 %v4563, %v4556
        %v4977 = vpack.c.b16 %v4564, %v4557
        %v4978 = vpack.c.b16 %v4565, %v4558
        %v4979 = vpack.c.b16 %v4566, %v4559
        %v4980 = vpack.c.b16 %v4567, %v4560
        %v4981 = vpack.c.b16 %v4575, %v4568
        %v4982 = vpack.c.b16 %v4576, %v4569
        %v4983 = vpack.c.b16 %v4577, %v4570
        %v4984 = vpack.c.b16 %v4578, %v4571
        %v4985 = vpack.c.b16 %v4579, %v4572
        %v4986 = vpack.c.b16 %v4580, %v4573
        %v4987 = vpack.c.b16 %v4581, %v4574
        %v4988 = vpack.c.b16 %v4589, %v4582
        %v4989 = vpack.c.b16 %v4590, %v4583
        %v4990 = vpack.c.b16 %v4591, %v4584
        %v4991 = vpack.c.b16 %v4592, %v4585
        %v4992 = vpack.c.b16 %v4593, %v4586
        %v4993 = vpack.c.b16 %v4594, %v4587
        %v4994 = vpack.c.b16 %v4595, %v4588
        %v4995 = vpack.c.b16 %v4603, %v4596
        %v4996 = vpack.c.b16 %v4604, %v4597
        %v4997 = vpack.c.b16 %v4605, %v4598
        %v4998 = vpack.c.b16 %v4606, %v4599
        %v4999 = vpack.c.b16 %v4607, %v4600
        %v5000 = vpack.c.b16 %v4608, %v4601
        %v5001 = vpack.c.b16 %v4609, %v4602
        %v5002 = vpack.c.b16 %v4617, %v4610
        %v5003 = vpack.c.b16 %v4618, %v4611
        %v5004 = vpack.c.b16 %v4619, %v4612
        %v5005 = vpack.c.b16 %v4620, %v4613
        %v5006 = vpack.c.b16 %v4621, %v4614
        %v5007 = vpack.c.b16 %v4622, %v4615
        %v5008 = vpack.c.b16 %v4623, %v4616
        %v5009 = vpack.c.b16 %v4631, %v4624
        %v5010 = vpack.c.b16 %v4632, %v4625
        %v5011 = vpack.c.b16 %v4633, %v4626
        %v5012 = vpack.c.b16 %v4634, %v4627
        %v5013 = vpack.c.b16 %v4635, %v4628
        %v5014 = vpack.c.b16 %v4636, %v4629
        %v5015 = vpack.c.b16 %v4637, %v4630
        %v5016 = vpack.c.b16 %v4645, %v4638
        %v5017 = vpack.c.b16 %v4646, %v4639
        %v5018 = vpack.c.b16 %v4647, %v4640
        %v5019 = vpack.c.b16 %v4648, %v4641
        %v5020 = vpack.c.b16 %v4649, %v4642
        %v5021 = vpack.c.b16 %v4650, %v4643
        %v5022 = vpack.c.b16 %v4651, %v4644
        %v5023 = vpack.c.b16 %v4659, %v4652
        %v5024 = vpack.c.b16 %v4660, %v4653
        %v5025 = vpack.c.b16 %v4661, %v4654
        %v5026 = vpack.c.b16 %v4662, %v4655
        %v5027 = vpack.c.b16 %v4663, %v4656
        %v5028 = vpack.c.b16 %v4664, %v4657
        %v5029 = vpack.c.b16 %v4665, %v4658
        %v5030 = vpack.c.b16 %v4673, %v4666
        %v5031 = vpack.c.b16 %v4674, %v4667
        %v5032 = vpack.c.b16 %v4675, %v4668
        %v5033 = vpack.c.b16 %v4676, %v4669
        %v5034 = vpack.c.b16 %v4677, %v4670
        %v5035 = vpack.c.b16 %v4678, %v4671
        %v5036 = vpack.c.b16 %v4679, %v4672
        %v5037 = vpack.c.b16 %v4687, %v4680
        %v5038 = vpack.c.b16 %v4688, %v4681
        %v5039 = vpack.c.b16 %v4689, %v4682
        %v5040 = vpack.c.b16 %v4690, %v4683
        %v5041 = vpack.c.b16 %v4691, %v4684
        %v5042 = vpack.c.b16 %v4692, %v4685
        %v5043 = vpack.c.b16 %v4693, %v4686
        %v5044 = vpack.c.b16 %v4701, %v4694
        %v5045 = vpack.c.b16 %v4702, %v4695
        %v5046 = vpack.c.b16 %v4703, %v4696
        %v5047 = vpack.c.b16 %v4704, %v4697
        %v5048 = vpack.c.b16 %v4705, %v4698
        %v5049 = vpack.c.b16 %v4706, %v4699
        %v5050 = vpack.c.b16 %v4707, %v4700
        %v5051 = vpack.c.b16 %v4715, %v4708
        %v5052 = vpack.c.b16 %v4716, %v4709
        %v5053 = vpack.c.b16 %v4717, %v4710
        %v5054 = vpack.c.b16 %v4718, %v4711
        %v5055 = vpack.c.b16 %v4719, %v4712
        %v5056 = vpack.c.b16 %v4720, %v4713
        %v5057 = vpack.c.b16 %v4721, %v4714
        %v5058 = vpack.c.b16 %v4729, %v4722
        %v5059 = vpack.c.b16 %v4730, %v4723
        %v5060 = vpack.c.b16 %v4731, %v4724
        %v5061 = vpack.c.b16 %v4732, %v4725
        %v5062 = vpack.c.b16 %v4733, %v4726
        %v5063 = vpack.c.b16 %v4734, %v4727
        %v5064 = vpack.c.b16 %v4735, %v4728
        %v5065 = vpack.c.b16 %v4743, %v4736
        %v5066 = vpack.c.b16 %v4744, %v4737
        %v5067 = vpack.c.b16 %v4745, %v4738
        %v5068 = vpack.c.b16 %v4746, %v4739
        %v5069 = vpack.c.b16 %v4747, %v4740
        %v5070 = vpack.c.b16 %v4748, %v4741
        %v5071 = vpack.c.b16 %v4749, %v4742
        %v5072 = vpack.c.b16 %v4757, %v4750
        %v5073 = vpack.c.b16 %v4758, %v4751
        %v5074 = vpack.c.b16 %v4759, %v4752
        %v5075 = vpack.c.b16 %v4760, %v4753
        %v5076 = vpack.c.b16 %v4761, %v4754
        %v5077 = vpack.c.b16 %v4762, %v4755
        %v5078 = vpack.c.b16 %v4763, %v4756
        %v5079 = vpack.c.b16 %v4771, %v4764
        %v5080 = vpack.c.b16 %v4772, %v4765
        %v5081 = vpack.c.b16 %v4773, %v4766
        %v5082 = vpack.c.b16 %v4774, %v4767
        %v5083 = vpack.c.b16 %v4775, %v4768
        %v5084 = vpack.c.b16 %v4776, %v4769
        %v5085 = vpack.c.b16 %v4777, %v4770
        %v5086 = vpack.c.b16 %v4785, %v4778
        %v5087 = vpack.c.b16 %v4786, %v4779
        %v5088 = vpack.c.b16 %v4787, %v4780
        %v5089 = vpack.c.b16 %v4788, %v4781
        %v5090 = vpack.c.b16 %v4789, %v4782
        %v5091 = vpack.c.b16 %v4790, %v4783
        %v5092 = vpack.c.b16 %v4791, %v4784
        %v5093 = vpack.c.b16 %v4799, %v4792
        %v5094 = vpack.c.b16 %v4800, %v4793
        %v5095 = vpack.c.b16 %v4801, %v4794
        %v5096 = vpack.c.b16 %v4802, %v4795
        %v5097 = vpack.c.b16 %v4803, %v4796
        %v5098 = vpack.c.b16 %v4804, %v4797
        %v5099 = vpack.c.b16 %v4805, %v4798
        %v5100 = vpack.c.b16 %v4813, %v4806
        %v5101 = vpack.c.b16 %v4814, %v4807
        %v5102 = vpack.c.b16 %v4815, %v4808
        %v5103 = vpack.c.b16 %v4816, %v4809
        %v5104 = vpack.c.b16 %v4817, %v4810
        %v5105 = vpack.c.b16 %v4818, %v4811
        %v5106 = vpack.c.b16 %v4819, %v4812
        %v5107 = vpack.c.b16 %v4827, %v4820
        %v5108 = vpack.c.b16 %v4828, %v4821
        %v5109 = vpack.c.b16 %v4829, %v4822
        %v5110 = vpack.c.b16 %v4830, %v4823
        %v5111 = vpack.c.b16 %v4831, %v4824
        %v5112 = vpack.c.b16 %v4832, %v4825
        %v5113 = vpack.c.b16 %v4833, %v4826
        %v5114 = vpack.c.b16 %v4841, %v4834
        %v5115 = vpack.c.b16 %v4842, %v4835
        %v5116 = vpack.c.b16 %v4843, %v4836
        %v5117 = vpack.c.b16 %v4844, %v4837
        %v5118 = vpack.c.b16 %v4845, %v4838
        %v5119 = vpack.c.b16 %v4846, %v4839
        %v5120 = vpack.c.b16 %v4847, %v4840
        %v5121 = vpack.c.b16 %v4855, %v4848
        %v5122 = vpack.c.b16 %v4856, %v4849
        %v5123 = vpack.c.b16 %v4857, %v4850
        %v5124 = vpack.c.b16 %v4858, %v4851
        %v5125 = vpack.c.b16 %v4859, %v4852
        %v5126 = vpack.c.b16 %v4860, %v4853
        %v5127 = vpack.c.b16 %v4861, %v4854
        %v5128 = vpack.c.b16 %v4869, %v4862
        %v5129 = vpack.c.b16 %v4870, %v4863
        %v5130 = vpack.c.b16 %v4871, %v4864
        %v5131 = vpack.c.b16 %v4872, %v4865
        %v5132 = vpack.c.b16 %v4873, %v4866
        %v5133 = vpack.c.b16 %v4874, %v4867
        %v5134 = vpack.c.b16 %v4875, %v4868
        %v5135 = vpack.c.b16 %v4883, %v4876
        %v5136 = vpack.c.b16 %v4884, %v4877
        %v5137 = vpack.c.b16 %v4885, %v4878
        %v5138 = vpack.c.b16 %v4886, %v4879
        %v5139 = vpack.c.b16 %v4887, %v4880
        %v5140 = vpack.c.b16 %v4888, %v4881
        %v5141 = vpack.c.b16 %v4889, %v4882
        %v5142 = vpack.c.b16 %v4897, %v4890
        %v5143 = vpack.c.b16 %v4898, %v4891
        %v5144 = vpack.c.b16 %v4899, %v4892
        %v5145 = vpack.c.b16 %v4900, %v4893
        %v5146 = vpack.c.b16 %v4901, %v4894
        %v5147 = vpack.c.b16 %v4902, %v4895
        %v5148 = vpack.c.b16 %v4903, %v4896
        %v5149 = vpack.c.b16 %v4911, %v4904
        %v5150 = vpack.c.b16 %v4912, %v4905
        %v5151 = vpack.c.b16 %v4913, %v4906
        %v5152 = vpack.c.b16 %v4914, %v4907
        %v5153 = vpack.c.b16 %v4915, %v4908
        %v5154 = vpack.c.b16 %v4916, %v4909
        %v5155 = vpack.c.b16 %v4917, %v4910
        %v5156 = vpack.c.b16 %v4925, %v4918
        %v5157 = vpack.c.b16 %v4926, %v4919
        %v5158 = vpack.c.b16 %v4927, %v4920
        %v5159 = vpack.c.b16 %v4928, %v4921
        %v5160 = vpack.c.b16 %v4929, %v4922
        %v5161 = vpack.c.b16 %v4930, %v4923
        %v5162 = vpack.c.b16 %v4931, %v4924
        %v5163 = vpack.c.b16 %v4939, %v4932
        %v5164 = vpack.c.b16 %v4940, %v4933
        %v5165 = vpack.c.b16 %v4941, %v4934
        %v5166 = vpack.c.b16 %v4942, %v4935
        %v5167 = vpack.c.b16 %v4943, %v4936
        %v5168 = vpack.c.b16 %v4944, %v4937
        %v5169 = vpack.c.b16 %v4945, %v4938
        %5394 = vmatprep.subr.bf16.mxu0 %v4947
        %5395 = vmatpush1.bf16.msra.mxu0 %v4946
        %5396 = vmatprep.subr.bf16.mxu0 %v4954
        %5397 = vmatpush1.bf16.msra.mxu0 %v4953
        %5398 = vmatprep.subr.bf16.mxu0 %v4961
        %5399 = vmatpush1.bf16.msra.mxu0 %v4960
        %5400 = vmatprep.subr.bf16.mxu0 %v4968
        %5401 = vmatpush1.bf16.msra.mxu0 %v4967
        %5402 = vmatprep.subr.bf16.mxu0 %v4975
        %5403 = vmatpush1.bf16.msra.mxu0 %v4974
        %5404 = vmatprep.subr.bf16.mxu0 %v4982
        %5405 = vmatpush1.bf16.msra.mxu0 %v4981
        %5406 = vmatprep.subr.bf16.mxu0 %v4989
        %5407 = vmatpush1.bf16.msra.mxu0 %v4988
        %5408 = vmatprep.subr.bf16.mxu0 %v4996
        %5409 = vmatpush1.bf16.msra.mxu0 %v4995
        %5410 = vmatprep.subr.bf16.mxu0 %v5003
        %5411 = vmatpush1.bf16.msra.mxu0 %v5002
        %5412 = vmatprep.subr.bf16.mxu0 %v5010
        %5413 = vmatpush1.bf16.msra.mxu0 %v5009
        %5414 = vmatprep.subr.bf16.mxu0 %v5017
        %5415 = vmatpush1.bf16.msra.mxu0 %v5016
        %5416 = vmatprep.subr.bf16.mxu0 %v5024
        %5417 = vmatpush1.bf16.msra.mxu0 %v5023
        %5418 = vmatprep.subr.bf16.mxu0 %v5031
        %5419 = vmatpush1.bf16.msra.mxu0 %v5030
        %5420 = vmatprep.subr.bf16.mxu0 %v5038
        %5421 = vmatpush1.bf16.msra.mxu0 %v5037
        %5422 = vmatprep.subr.bf16.mxu0 %v5045
        %5423 = vmatpush1.bf16.msra.mxu0 %v5044
        %5424 = vmatprep.subr.bf16.mxu0 %v5052
        %5425 = vmatpush1.bf16.msra.mxu0 %v5051
        %5426 = vmatprep.mubr.bf16.mxu0 %v4203
        %5427 = vmatmul.mubr.bf16.gmra.mrb[0].mxu0 %v4202
        %v5428 = vpop.f32.mrb[0].mxu0
        %v5429 = vadd.f32 %v4210, %v5428
        %v5430 = vpop.f32.mrb[0].mxu0
        %v5431 = vadd.f32 %v4214, %v5430
        %v5432 = vpop.f32.mrb[0].mxu0
        %v5433 = vpop.f32.mrb[0].mxu0
        %5434 = vdwg.mxu0
        %5435 = vmatprep.subr.bf16.mxu0 %v5059
        %5436 = vmatpush1.bf16.msra.mxu0 %v5058
        %5437 = vmatprep.subr.bf16.mxu0 %v5066
        %5438 = vmatpush1.bf16.msra.mxu0 %v5065
        %5439 = vmatprep.subr.bf16.mxu0 %v5073
        %5440 = vmatpush1.bf16.msra.mxu0 %v5072
        %5441 = vmatprep.subr.bf16.mxu0 %v5080
        %5442 = vmatpush1.bf16.msra.mxu0 %v5079
        %5443 = vmatprep.subr.bf16.mxu0 %v5087
        %5444 = vmatpush1.bf16.msra.mxu0 %v5086
        %5445 = vmatprep.subr.bf16.mxu0 %v5094
        %5446 = vmatpush1.bf16.msra.mxu0 %v5093
        %5447 = vmatprep.subr.bf16.mxu0 %v5101
        %5448 = vmatpush1.bf16.msra.mxu0 %v5100
        %5449 = vmatprep.subr.bf16.mxu0 %v5108
        %5450 = vmatpush1.bf16.msra.mxu0 %v5107
        %5451 = vmatprep.subr.bf16.mxu0 %v5115
        %5452 = vmatpush1.bf16.msra.mxu0 %v5114
        %5453 = vmatprep.subr.bf16.mxu0 %v5122
        %5454 = vmatpush1.bf16.msra.mxu0 %v5121
        %5455 = vmatprep.subr.bf16.mxu0 %v5129
        %5456 = vmatpush1.bf16.msra.mxu0 %v5128
        %5457 = vmatprep.subr.bf16.mxu0 %v5136
        %5458 = vmatpush1.bf16.msra.mxu0 %v5135
        %5459 = vmatprep.subr.bf16.mxu0 %v5143
        %5460 = vmatpush1.bf16.msra.mxu0 %v5142
        %5461 = vmatprep.subr.bf16.mxu0 %v5150
        %5462 = vmatpush1.bf16.msra.mxu0 %v5149
        %5463 = vmatprep.subr.bf16.mxu0 %v5157
        %5464 = vmatpush1.bf16.msra.mxu0 %v5156
        %5465 = vmatprep.subr.bf16.mxu0 %v5164
        %5466 = vmatpush1.bf16.msra.mxu0 %v5163
        %5467 = vmatprep.mubr.bf16.mxu0 %v4205
        %5468 = vmatmul.mubr.bf16.gmra.mrb[0].mxu0 %v4204
        %v5469 = vpop.f32.mrb[0].mxu0
        %v5470 = vadd.f32 %v5429, %v5469
        %v5471 = vpop.f32.mrb[0].mxu0
        %v5472 = vadd.f32 %v5431, %v5471
        %v5473 = vpop.f32.mrb[0].mxu0
        %v5474 = vpop.f32.mrb[0].mxu0
        %5475 = vdwg.mxu0
        %5476 = vmatprep.subr.bf16.mxu0 %v4949
        %5477 = vmatpush1.bf16.msra.mxu0 %v4948
        %5478 = vmatprep.subr.bf16.mxu0 %v4956
        %5479 = vmatpush1.bf16.msra.mxu0 %v4955
        %5480 = vmatprep.subr.bf16.mxu0 %v4963
        %5481 = vmatpush1.bf16.msra.mxu0 %v4962
        %5482 = vmatprep.subr.bf16.mxu0 %v4970
        %5483 = vmatpush1.bf16.msra.mxu0 %v4969
        %5484 = vmatprep.subr.bf16.mxu0 %v4977
        %5485 = vmatpush1.bf16.msra.mxu0 %v4976
        %5486 = vmatprep.subr.bf16.mxu0 %v4984
        %5487 = vmatpush1.bf16.msra.mxu0 %v4983
        %5488 = vmatprep.subr.bf16.mxu0 %v4991
        %5489 = vmatpush1.bf16.msra.mxu0 %v4990
        %5490 = vmatprep.subr.bf16.mxu0 %v4998
        %5491 = vmatpush1.bf16.msra.mxu0 %v4997
        %5492 = vmatprep.subr.bf16.mxu0 %v5005
        %5493 = vmatpush1.bf16.msra.mxu0 %v5004
        %5494 = vmatprep.subr.bf16.mxu0 %v5012
        %5495 = vmatpush1.bf16.msra.mxu0 %v5011
        %5496 = vmatprep.subr.bf16.mxu0 %v5019
        %5497 = vmatpush1.bf16.msra.mxu0 %v5018
        %5498 = vmatprep.subr.bf16.mxu0 %v5026
        %5499 = vmatpush1.bf16.msra.mxu0 %v5025
        %5500 = vmatprep.subr.bf16.mxu0 %v5033
        %5501 = vmatpush1.bf16.msra.mxu0 %v5032
        %5502 = vmatprep.subr.bf16.mxu0 %v5040
        %5503 = vmatpush1.bf16.msra.mxu0 %v5039
        %5504 = vmatprep.subr.bf16.mxu0 %v5047
        %5505 = vmatpush1.bf16.msra.mxu0 %v5046
        %5506 = vmatprep.subr.bf16.mxu0 %v5054
        %5507 = vmatpush1.bf16.msra.mxu0 %v5053
        %5508 = vmatprep.mubr.bf16.mxu0 %v4203
        %5509 = vmatmul.mubr.bf16.gmra.mrb[0].mxu0 %v4202
        %v5510 = vpop.f32.mrb[0].mxu0
        %v5511 = vadd.f32 %v4218, %v5510
        %v5512 = vpop.f32.mrb[0].mxu0
        %v5513 = vadd.f32 %v4222, %v5512
        %v5514 = vpop.f32.mrb[0].mxu0
        %v5515 = vpop.f32.mrb[0].mxu0
        %5516 = vdwg.mxu0
        %5517 = vmatprep.subr.bf16.mxu0 %v5061
        %5518 = vmatpush1.bf16.msra.mxu0 %v5060
        %5519 = vmatprep.subr.bf16.mxu0 %v5068
        %5520 = vmatpush1.bf16.msra.mxu0 %v5067
        %5521 = vmatprep.subr.bf16.mxu0 %v5075
        %5522 = vmatpush1.bf16.msra.mxu0 %v5074
        %5523 = vmatprep.subr.bf16.mxu0 %v5082
        %5524 = vmatpush1.bf16.msra.mxu0 %v5081
        %5525 = vmatprep.subr.bf16.mxu0 %v5089
        %5526 = vmatpush1.bf16.msra.mxu0 %v5088
        %5527 = vmatprep.subr.bf16.mxu0 %v5096
        %5528 = vmatpush1.bf16.msra.mxu0 %v5095
        %5529 = vmatprep.subr.bf16.mxu0 %v5103
        %5530 = vmatpush1.bf16.msra.mxu0 %v5102
        %5531 = vmatprep.subr.bf16.mxu0 %v5110
        %5532 = vmatpush1.bf16.msra.mxu0 %v5109
        %5533 = vmatprep.subr.bf16.mxu0 %v5117
        %5534 = vmatpush1.bf16.msra.mxu0 %v5116
        %5535 = vmatprep.subr.bf16.mxu0 %v5124
        %5536 = vmatpush1.bf16.msra.mxu0 %v5123
        %5537 = vmatprep.subr.bf16.mxu0 %v5131
        %5538 = vmatpush1.bf16.msra.mxu0 %v5130
        %5539 = vmatprep.subr.bf16.mxu0 %v5138
        %5540 = vmatpush1.bf16.msra.mxu0 %v5137
        %5541 = vmatprep.subr.bf16.mxu0 %v5145
        %5542 = vmatpush1.bf16.msra.mxu0 %v5144
        %5543 = vmatprep.subr.bf16.mxu0 %v5152
        %5544 = vmatpush1.bf16.msra.mxu0 %v5151
        %5545 = vmatprep.subr.bf16.mxu0 %v5159
        %5546 = vmatpush1.bf16.msra.mxu0 %v5158
        %5547 = vmatprep.subr.bf16.mxu0 %v5166
        %5548 = vmatpush1.bf16.msra.mxu0 %v5165
        %5549 = vmatprep.mubr.bf16.mxu0 %v4205
        %5550 = vmatmul.mubr.bf16.gmra.mrb[0].mxu0 %v4204
        %v5551 = vpop.f32.mrb[0].mxu0
        %v5552 = vadd.f32 %v5511, %v5551
        %v5553 = vpop.f32.mrb[0].mxu0
        %v5554 = vadd.f32 %v5513, %v5553
        %v5555 = vpop.f32.mrb[0].mxu0
        %v5556 = vpop.f32.mrb[0].mxu0
        %5557 = vdwg.mxu0
        %5558 = vmatprep.subr.bf16.mxu0 %v4951
        %5559 = vmatpush1.bf16.msra.mxu0 %v4950
        %5560 = vmatprep.subr.bf16.mxu0 %v4958
        %5561 = vmatpush1.bf16.msra.mxu0 %v4957
        %5562 = vmatprep.subr.bf16.mxu0 %v4965
        %5563 = vmatpush1.bf16.msra.mxu0 %v4964
        %5564 = vmatprep.subr.bf16.mxu0 %v4972
        %5565 = vmatpush1.bf16.msra.mxu0 %v4971
        %5566 = vmatprep.subr.bf16.mxu0 %v4979
        %5567 = vmatpush1.bf16.msra.mxu0 %v4978
        %5568 = vmatprep.subr.bf16.mxu0 %v4986
        %5569 = vmatpush1.bf16.msra.mxu0 %v4985
        %5570 = vmatprep.subr.bf16.mxu0 %v4993
        %5571 = vmatpush1.bf16.msra.mxu0 %v4992
        %5572 = vmatprep.subr.bf16.mxu0 %v5000
        %5573 = vmatpush1.bf16.msra.mxu0 %v4999
        %5574 = vmatprep.subr.bf16.mxu0 %v5007
        %5575 = vmatpush1.bf16.msra.mxu0 %v5006
        %5576 = vmatprep.subr.bf16.mxu0 %v5014
        %5577 = vmatpush1.bf16.msra.mxu0 %v5013
        %5578 = vmatprep.subr.bf16.mxu0 %v5021
        %5579 = vmatpush1.bf16.msra.mxu0 %v5020
        %5580 = vmatprep.subr.bf16.mxu0 %v5028
        %5581 = vmatpush1.bf16.msra.mxu0 %v5027
        %5582 = vmatprep.subr.bf16.mxu0 %v5035
        %5583 = vmatpush1.bf16.msra.mxu0 %v5034
        %5584 = vmatprep.subr.bf16.mxu0 %v5042
        %5585 = vmatpush1.bf16.msra.mxu0 %v5041
        %5586 = vmatprep.subr.bf16.mxu0 %v5049
        %5587 = vmatpush1.bf16.msra.mxu0 %v5048
        %5588 = vmatprep.subr.bf16.mxu0 %v5056
        %5589 = vmatpush1.bf16.msra.mxu0 %v5055
        %5590 = vmatprep.mubr.bf16.mxu0 %v4203
        %5591 = vmatmul.mubr.bf16.gmra.mrb[0].mxu0 %v4202
        %v5592 = vpop.f32.mrb[0].mxu0
        %v5593 = vadd.f32 %v4226, %v5592
        %v5594 = vpop.f32.mrb[0].mxu0
        %v5595 = vadd.f32 %v4230, %v5594
        %v5596 = vpop.f32.mrb[0].mxu0
        %v5597 = vpop.f32.mrb[0].mxu0
        %5598 = vdwg.mxu0
        %5599 = vmatprep.subr.bf16.mxu0 %v5063
        %5600 = vmatpush1.bf16.msra.mxu0 %v5062
        %5601 = vmatprep.subr.bf16.mxu0 %v5070
        %5602 = vmatpush1.bf16.msra.mxu0 %v5069
        %5603 = vmatprep.subr.bf16.mxu0 %v5077
        %5604 = vmatpush1.bf16.msra.mxu0 %v5076
        %5605 = vmatprep.subr.bf16.mxu0 %v5084
        %5606 = vmatpush1.bf16.msra.mxu0 %v5083
        %5607 = vmatprep.subr.bf16.mxu0 %v5091
        %5608 = vmatpush1.bf16.msra.mxu0 %v5090
        %5609 = vmatprep.subr.bf16.mxu0 %v5098
        %5610 = vmatpush1.bf16.msra.mxu0 %v5097
        %5611 = vmatprep.subr.bf16.mxu0 %v5105
        %5612 = vmatpush1.bf16.msra.mxu0 %v5104
        %5613 = vmatprep.subr.bf16.mxu0 %v5112
        %5614 = vmatpush1.bf16.msra.mxu0 %v5111
        %5615 = vmatprep.subr.bf16.mxu0 %v5119
        %5616 = vmatpush1.bf16.msra.mxu0 %v5118
        %5617 = vmatprep.subr.bf16.mxu0 %v5126
        %5618 = vmatpush1.bf16.msra.mxu0 %v5125
        %5619 = vmatprep.subr.bf16.mxu0 %v5133
        %5620 = vmatpush1.bf16.msra.mxu0 %v5132
        %5621 = vmatprep.subr.bf16.mxu0 %v5140
        %5622 = vmatpush1.bf16.msra.mxu0 %v5139
        %5623 = vmatprep.subr.bf16.mxu0 %v5147
        %5624 = vmatpush1.bf16.msra.mxu0 %v5146
        %5625 = vmatprep.subr.bf16.mxu0 %v5154
        %5626 = vmatpush1.bf16.msra.mxu0 %v5153
        %5627 = vmatprep.subr.bf16.mxu0 %v5161
        %5628 = vmatpush1.bf16.msra.mxu0 %v5160
        %5629 = vmatprep.subr.bf16.mxu0 %v5168
        %5630 = vmatpush1.bf16.msra.mxu0 %v5167
        %5631 = vmatprep.mubr.bf16.mxu0 %v4205
        %5632 = vmatmul.mubr.bf16.gmra.mrb[0].mxu0 %v4204
        %v5633 = vpop.f32.mrb[0].mxu0
        %v5634 = vadd.f32 %v5593, %v5633
        %v5635 = vpop.f32.mrb[0].mxu0
        %v5636 = vadd.f32 %v5595, %v5635
        %v5637 = vpop.f32.mrb[0].mxu0
        %v5638 = vpop.f32.mrb[0].mxu0
        %5639 = vdwg.mxu0
        %5640 = vmatprep.subr.bf16.mxu0 0
        %5641 = vmatpush1.bf16.msra.mxu0 %v4952
        %5642 = vmatprep.subr.bf16.mxu0 0
        %5643 = vmatpush1.bf16.msra.mxu0 %v4959
        %5644 = vmatprep.subr.bf16.mxu0 0
        %5645 = vmatpush1.bf16.msra.mxu0 %v4966
        %5646 = vmatprep.subr.bf16.mxu0 0
        %5647 = vmatpush1.bf16.msra.mxu0 %v4973
        %5648 = vmatprep.subr.bf16.mxu0 0
        %5649 = vmatpush1.bf16.msra.mxu0 %v4980
        %5650 = vmatprep.subr.bf16.mxu0 0
        %5651 = vmatpush1.bf16.msra.mxu0 %v4987
        %5652 = vmatprep.subr.bf16.mxu0 0
        %5653 = vmatpush1.bf16.msra.mxu0 %v4994
        %5654 = vmatprep.subr.bf16.mxu0 0
        %5655 = vmatpush1.bf16.msra.mxu0 %v5001
        %5656 = vmatprep.subr.bf16.mxu0 0
        %5657 = vmatpush1.bf16.msra.mxu0 %v5008
        %5658 = vmatprep.subr.bf16.mxu0 0
        %5659 = vmatpush1.bf16.msra.mxu0 %v5015
        %5660 = vmatprep.subr.bf16.mxu0 0
        %5661 = vmatpush1.bf16.msra.mxu0 %v5022
        %5662 = vmatprep.subr.bf16.mxu0 0
        %5663 = vmatpush1.bf16.msra.mxu0 %v5029
        %5664 = vmatprep.subr.bf16.mxu0 0
        %5665 = vmatpush1.bf16.msra.mxu0 %v5036
        %5666 = vmatprep.subr.bf16.mxu0 0
        %5667 = vmatpush1.bf16.msra.mxu0 %v5043
        %5668 = vmatprep.subr.bf16.mxu0 0
        %5669 = vmatpush1.bf16.msra.mxu0 %v5050
        %5670 = vmatprep.subr.bf16.mxu0 0
        %5671 = vmatpush1.bf16.msra.mxu0 %v5057
        %5672 = vmatprep.mubr.bf16.mxu0 %v4203
        %5673 = vmatmul.mubr.bf16.gmra.mrb[0].mxu0 %v4202
        %v5674 = vpop.f32.mrb[0].mxu0
        %v5675 = vadd.f32 %v4234, %v5674
        %v5676 = vpop.f32.mrb[0].mxu0
        %v5677 = vpop.f32.mrb[0].mxu0
        %v5678 = vpop.f32.mrb[0].mxu0
        %5679 = vdwg.mxu0
        %5680 = vmatprep.subr.bf16.mxu0 0
        %5681 = vmatpush1.bf16.msra.mxu0 %v5064
        %5682 = vmatprep.subr.bf16.mxu0 0
        %5683 = vmatpush1.bf16.msra.mxu0 %v5071
        %5684 = vmatprep.subr.bf16.mxu0 0
        %5685 = vmatpush1.bf16.msra.mxu0 %v5078
        %5686 = vmatprep.subr.bf16.mxu0 0
        %5687 = vmatpush1.bf16.msra.mxu0 %v5085
        %5688 = vmatprep.subr.bf16.mxu0 0
        %5689 = vmatpush1.bf16.msra.mxu0 %v5092
        %5690 = vmatprep.subr.bf16.mxu0 0
        %5691 = vmatpush1.bf16.msra.mxu0 %v5099
        %5692 = vmatprep.subr.bf16.mxu0 0
        %5693 = vmatpush1.bf16.msra.mxu0 %v5106
        %5694 = vmatprep.subr.bf16.mxu0 0
        %5695 = vmatpush1.bf16.msra.mxu0 %v5113
        %5696 = vmatprep.subr.bf16.mxu0 0
        %5697 = vmatpush1.bf16.msra.mxu0 %v5120
        %5698 = vmatprep.subr.bf16.mxu0 0
        %5699 = vmatpush1.bf16.msra.mxu0 %v5127
        %5700 = vmatprep.subr.bf16.mxu0 0
        %5701 = vmatpush1.bf16.msra.mxu0 %v5134
        %5702 = vmatprep.subr.bf16.mxu0 0
        %5703 = vmatpush1.bf16.msra.mxu0 %v5141
        %5704 = vmatprep.subr.bf16.mxu0 0
        %5705 = vmatpush1.bf16.msra.mxu0 %v5148
        %5706 = vmatprep.subr.bf16.mxu0 0
        %5707 = vmatpush1.bf16.msra.mxu0 %v5155
        %5708 = vmatprep.subr.bf16.mxu0 0
        %5709 = vmatpush1.bf16.msra.mxu0 %v5162
        %5710 = vmatprep.subr.bf16.mxu0 0
        %5711 = vmatpush1.bf16.msra.mxu0 %v5169
        %5712 = vmatprep.mubr.bf16.mxu0 %v4205
        %5713 = vmatmul.mubr.bf16.gmra.mrb[0].mxu0 %v4204
        %v5714 = vpop.f32.mrb[0].mxu0
        %v5715 = vadd.f32 %v5675, %v5714
        %v5716 = vpop.f32.mrb[0].mxu0
        %v5717 = vpop.f32.mrb[0].mxu0
        %v5718 = vpop.f32.mrb[0].mxu0
        %5719 = vdwg.mxu0
        %v5720 = vxor.u32 %v5470, 2147483648
        %v5721 = vxor.u32 %v5472, 2147483648
        %v5722 = vxor.u32 %v5552, 2147483648
        %v5723 = vxor.u32 %v5554, 2147483648
        %v5724 = vxor.u32 %v5634, 2147483648
        %v5725 = vxor.u32 %v5636, 2147483648
        %v5726 = vxor.u32 %v5715, 2147483648
        %v5727 = vmul.f32 %v5720, 1.442695
        %v5728 = vpow.pop %v5727
        %v5729 = vmul.f32 %v5721, 1.442695
        %v5730 = vpow.pop %v5729
        %v5731 = vmul.f32 %v5722, 1.442695
        %v5732 = vpow.pop %v5731
        %v5733 = vmul.f32 %v5723, 1.442695
        %v5734 = vpow.pop %v5733
        %v5735 = vmul.f32 %v5724, 1.442695
        %v5736 = vpow.pop %v5735
        %v5737 = vmul.f32 %v5725, 1.442695
        %v5738 = vpow.pop %v5737
        %v5739 = vmul.f32 %v5726, 1.442695
        %v5740 = vpow.pop %v5739
        %v5741 = vadd.f32 %v5728, 1.0
        %v5742 = vadd.f32 %v5730, 1.0
        %v5743 = vadd.f32 %v5732, 1.0
        %v5744 = vadd.f32 %v5734, 1.0
        %v5745 = vadd.f32 %v5736, 1.0
        %v5746 = vadd.f32 %v5738, 1.0
        %v5747 = vadd.f32 %v5740, 1.0
        %v5748 = vrcp.pop %v5741
        %v5749 = vmul.f32 1.0, %v5748
        %v5750 = vrcp.pop %v5742
        %v5751 = vmul.f32 1.0, %v5750
        %v5752 = vrcp.pop %v5743
        %v5753 = vmul.f32 1.0, %v5752
        %v5754 = vrcp.pop %v5744
        %v5755 = vmul.f32 1.0, %v5754
        %v5756 = vrcp.pop %v5745
        %v5757 = vmul.f32 1.0, %v5756
        %v5758 = vrcp.pop %v5746
        %v5759 = vmul.f32 1.0, %v5758
        %v5760 = vrcp.pop %v5747
        %v5761 = vmul.f32 1.0, %v5760
        %5762 = vst [vmem:[%s541] sm:$0xff] %v5749
        %5763 = vst [vmem:[%s541 + $0x8] sm:$0xff] %v5751
        %5764 = vst [vmem:[%s541 + $0x10] sm:$0xff] %v5753
        %5765 = vst [vmem:[%s541 + $0x18] sm:$0xff] %v5755
        %5766 = vst [vmem:[%s541 + $0x20] sm:$0xff] %v5757
        %5767 = vst [vmem:[%s541 + $0x28] sm:$0xff] %v5759
        %5768 = vst [vmem:[%s541 + $0x30] sm:$0xff] %v5761
        %s5769 = sand.u32 %s401, 1
        %s5770 = scalar_lea.sflag [#allocation3], %s5769
        %s5771 = sand.u32 %s401, 1
        %s5772 = smul.addr %s5771, 56
        %s5773 = scalar_lea.vmem [#allocation2], %s5772
        // Predicated region
        $region89: #{mnist_autoencoder.1} parent=87 // pred_check
          %p5774 = pneg %p411
        $region90: #{mnist_autoencoder.1} parent=87 // pred_check_branch
          %5776 = sbr.rel (%p5774) target = $region92
        $region91: #{mnist_autoencoder.1} parent=87 // pred_region
          %s5778 = ssub.s32 896, 896
          %5779 = vsyncadd %s5770, %s5778
          %s5780 = smul.addr %s31, 7
          %s5781 = smul.addr %s5780, 128
          %s5782 = scalar_lea.hbm %s17, %s5781
          %s5784 = sshll.u32 %s5773, 4
          %s5785 = int_to_ptr.vmem [resolvable:$true] %s5784
          %5787 = dma.vmem_to_hbm [thread:$0]  %s5785, 896, %s5782, %s5770
        $region92: #{mnist_autoencoder.1} parent=87 // pred_fallthru
          _
      $region88: #{mnist_autoencoder.1} parent=5 // pred_fallthru
        _
      %p5788 = scmp.le.s32.totalorder 2, %s26
      // Predicated region
      $region93: #{mnist_autoencoder.1} parent=5 // pred_check
        %p5789 = pneg %p5788
      $region94: #{mnist_autoencoder.1} parent=5 // pred_check_branch
        %5791 = sbr.rel (%p5789) target = $region96
      $region95: #{mnist_autoencoder.1} parent=5 // pred_region
        %s5792 = ssub.s32 %s26, 2
        // Predicated region
        $region97: #{mnist_autoencoder.1} parent=95 // pred_check
          %p5793 = pneg %p417
        $region98: #{mnist_autoencoder.1} parent=95 // pred_check_branch
          %5795 = sbr.rel (%p5793) target = $region100
        $region99: #{mnist_autoencoder.1} parent=95 // pred_region
          %s5796 = sand.u32 %s402, 1
          %s5797 = scalar_lea.sflag [#allocation3], %s5796
          %s5798 = sand.u32 %s402, 1
          %s5799 = smul.addr %s5798, 56
          %s5800 = scalar_lea.vmem [#allocation2], %s5799
          %5801 = dma.done %s5797, 896
        $region100: #{mnist_autoencoder.1} parent=95 // pred_fallthru
          _
      $region96: #{mnist_autoencoder.1} parent=5 // pred_fallthru
        _
    $region6: #{mnist_autoencoder.1} parent=1 // loop_footer
      %s30 = sadd.s32 1, %s26
    $region7: #{mnist_autoencoder.1} parent=1 // loop_footer_branch
      %25 = sbr.rel target = $region3
    $region8: #{mnist_autoencoder.1} parent=1 // loop_exit
      _
    %5802 = vsyncpa [#allocation3], 1
    %s5803 = scalar_lea.sflag [#allocation3], 1
    %5804 = vsyncpa %s5803, 1

</llo_original>
